<compile_context>
chip_gen: v6e
topology: v6e:2x2x1
jax: 0.10.0
libtpu: 0.0.40
codegen_flags: <defaults>
</compile_context>

<pallas_src>
import math

import jax
import jax.numpy as jnp
from jax.experimental import pallas as pl
from jax.experimental.pallas import tpu as pltpu

# ----------------------------- small synthetic config ------------------------
# (full PointNeRF config: num_points=512, feat_dim=32, hidden=256, n_freqs=10,
#  resolution=128, depth_resolution=128 — scaled down here for a small test)
N_OBJ       = 4
NUM_POINTS  = 64     # opt.model.kp.num
FEAT_DIM    = 8      # opt.model.kp.feat_dim
HIDDEN      = 32     # field / aggregator hidden width
N_FREQS     = 4      # aggregator positional-encoding frequencies
RESOLUTION  = 8      # opt.sizes.default_resolution
DEPTH_RES   = 16     # renderer depth_resolution
NEAR, FAR   = 1.0, 4.0
LEAKY_SLOPE = 0.01   # nn.LeakyReLU default negative slope
MAX_TILE_R  = 512    # rays per grid step (cap; full-config value, multiple of 128)

DZ     = (FAR - NEAR) / (DEPTH_RES - 1)   # constant depth-sample spacing
PE_DIM = 3 + 6 * N_FREQS                  # xyz + sin/cos per frequency
AGG_IN = FEAT_DIM + PE_DIM                # aggregator MLP input width


def _round16(n):
    return ((n + 15) // 16) * 16          # bf16 sublane-tile aligned row offsets


# row offsets of each weight block inside the packed bf16 weight slab
_R_W1   = 0
_R_W2   = _R_W1  + _round16(AGG_IN)
_R_W3   = _R_W2  + _round16(HIDDEN)
_R_WH1  = _R_W3  + _round16(HIDDEN)        # [ws1 | wc1]               (H, 2H)
_R_WH2  = _R_WH1 + _round16(HIDDEN)        # block-diag [wc2 | ws2]    (2H, 4)
_W_ROWS = _R_WH2 + _round16(2 * HIDDEN)
_W_COLS = 2 * HIDDEN
_B_ROWS = 8                                # bias slab rows (padded to 8)


# ----------------------------- in-kernel helpers ------------------------------
def _leaky_relu(x):
    return jnp.where(x >= 0.0, x, LEAKY_SLOPE * x)


def _softplus(x):
    return jnp.log(1.0 + jnp.exp(-jnp.abs(x))) + jnp.maximum(x, 0.0)


def _sigmoid(x):
    return pl.reciprocal(1.0 + jnp.exp(-x), approx=True)


# ----------------------------- fused field + renderer kernel ------------------
def _pointnerf_kernel(ro_ref, rd_ref, ct_ref, f_ref, w_ref, b_ref,
                      out_ref, acc_ref, trans_ref):
    """One (ray-tile, depth-slice) step: point aggregation + aggregator MLP +
    fused NeRF heads + online alpha compositing.  Grid = (B, ray tiles, depth)."""
    d = pl.program_id(2)
    H = HIDDEN

    @pl.when(d == 0)
    def _():
        acc_ref[...] = jnp.zeros_like(acc_ref)
        trans_ref[...] = jnp.ones_like(trans_ref)

    # ---- sample positions for this depth slice (built in-kernel, no HBM pts) ----
    zval = NEAR + DZ * d.astype(jnp.float32)
    x = ro_ref[0] + zval * rd_ref[0]                            # (TR, 3)

    # ---- inverse-distance aggregation over the point cloud (MXU) ----
    # TODO(synk): the original VoxelGrid k-NN (k=8, radius r) is a data-dependent
    # hash-grid scatter/gather; replaced by dense inverse-squared-distance weights.
    ct = ct_ref[0]                                              # (3, P)
    f = f_ref[0]                                                # (P, FEAT_DIM)
    x2 = jnp.sum(x * x, axis=-1, keepdims=True)                 # (TR, 1)
    c2 = jnp.sum(ct * ct, axis=0, keepdims=True)                # (1, P)
    xc = jnp.dot(x, ct, preferred_element_type=jnp.float32)     # (TR, P)
    d2 = jnp.maximum(x2 + c2 - 2.0 * xc, 0.0)
    w = pl.reciprocal(d2 + 1e-6, approx=True)
    w = w * pl.reciprocal(jnp.sum(w, axis=-1, keepdims=True), approx=True)
    agg = jnp.dot(w, f, preferred_element_type=jnp.float32)     # (TR, FEAT_DIM)

    # ---- positional encoding: full-width buffer, one sin + one cos call ----
    xf = jnp.concatenate(
        [x * (float(2.0 ** l) * math.pi) for l in range(N_FREQS)], axis=-1)
    h_in = jnp.concatenate([agg, x, jnp.sin(xf), jnp.cos(xf)], axis=-1)  # (TR, AGG_IN)

    # ---- packed parameter slabs (loaded once; static slices are free views) ----
    w1 = w_ref[_R_W1:_R_W1 + AGG_IN, 0:H]
    w2 = w_ref[_R_W2:_R_W2 + H, 0:H]
    w3 = w_ref[_R_W3:_R_W3 + H, 0:H]
    wh1 = w_ref[_R_WH1:_R_WH1 + H, 0:2 * H]
    wh2 = w_ref[_R_WH2:_R_WH2 + 2 * H, 0:4]
    b1 = b_ref[0:1, 0:H]
    b2 = b_ref[1:2, 0:H]
    b3 = b_ref[2:3, 0:H]
    bh1 = b_ref[3:4, 0:2 * H]
    bh2 = b_ref[4:5, 0:4]

    # ---- aggregator MLP (bf16 matmuls, f32 accumulation, LeakyReLU) ----
    h = _leaky_relu(jnp.dot(h_in.astype(jnp.bfloat16), w1,
                            preferred_element_type=jnp.float32) + b1)
    h = _leaky_relu(jnp.dot(h.astype(jnp.bfloat16), w2,
                            preferred_element_type=jnp.float32) + b2)
    h = jnp.dot(h.astype(jnp.bfloat16), w3,
                preferred_element_type=jnp.float32) + b3

    # ---- fused NeRF heads: shape|channel hidden in one matmul, one head matmul ----
    hh = _leaky_relu(jnp.dot(h.astype(jnp.bfloat16), wh1,
                             preferred_element_type=jnp.float32) + bh1)  # (TR, 2H)
    pre = jnp.dot(hh.astype(jnp.bfloat16), wh2,
                  preferred_element_type=jnp.float32) + bh2              # (TR, 4)
    rgb = _sigmoid(pre[:, 0:3])                                          # (TR, 3)
    sigma = _softplus(pre[:, 3:4])                                       # (TR, 1)

    # ---- online volume rendering (VolumeRenderer, white_back=True) ----
    e = jnp.exp(-sigma * DZ)                     # exp(-tau), tau = sigma * dz
    alpha = 1.0 - e
    t = trans_ref[...]                           # running transmittance
    wgt = t * alpha                              # (TR, 1)
    acc_ref[...] += jnp.concatenate([wgt * rgb, wgt], axis=-1)
    trans_ref[...] = t * e

    @pl.when(d == pl.num_programs(2) - 1)
    def _():
        a = acc_ref[...]
        white = 1.0 - a[:, 3:4]                  # white background
        out_ref[0] = jnp.concatenate([a[:, 0:3] + white, a[:, 3:4]], axis=-1)


def render_rays(rays_o, rays_d, coords_t, feats, wslab, bslab):
    """rays_o/rays_d: (B, R, 3); coords_t: (B, 3, P); feats: (B, P, F);
    wslab: bf16 packed weights; bslab: f32 packed biases -> (B, R, 4) [rgb, acc]."""
    B, R, _ = rays_o.shape
    P = coords_t.shape[-1]
    Fd = feats.shape[-1]
    tile_r = R if R <= MAX_TILE_R else MAX_TILE_R
    assert R % tile_r == 0 and tile_r % 8 == 0

    ray_spec = pl.BlockSpec((1, tile_r, 3), lambda b, rt, d: (b, rt, 0))
    return pl.pallas_call(
        _pointnerf_kernel,
        out_shape=jax.ShapeDtypeStruct((B, R, 4), jnp.float32),
        grid=(B, R // tile_r, DEPTH_RES),
        in_specs=[
            ray_spec,                                                   # rays_o
            ray_spec,                                                   # rays_d
            pl.BlockSpec((1, 3, P), lambda b, rt, d: (b, 0, 0)),        # coords^T
            pl.BlockSpec((1, P, Fd), lambda b, rt, d: (b, 0, 0)),       # feats
            pl.BlockSpec((_W_ROWS, _W_COLS), lambda b, rt, d: (0, 0)),  # weight slab
            pl.BlockSpec((_B_ROWS, _W_COLS), lambda b, rt, d: (0, 0)),  # bias slab
        ],
        out_specs=pl.BlockSpec((1, tile_r, 4), lambda b, rt, d: (b, rt, 0)),
        scratch_shapes=[
            pltpu.VMEM((tile_r, 4), jnp.float32),   # [rgb accumulator | acc]
            pltpu.VMEM((tile_r, 1), jnp.float32),   # running transmittance
        ],
        compiler_params=pltpu.CompilerParams(
            dimension_semantics=("parallel", "parallel", "arbitrary"),
            vmem_limit_bytes=64 * 1024 * 1024),
    )(rays_o, rays_d, coords_t, feats, wslab, bslab)


# ----------------------------- glue: rays, embeddings, model ------------------
def generate_rays(intrinsics, extrinsics, resolution):
    """intrinsics (B,3,3), extrinsics (B,4,4) camera-to-world -> origins/dirs (B,R,3)."""
    px = jnp.arange(resolution, dtype=jnp.float32) + 0.5
    u, v = jnp.meshgrid(px, px, indexing="xy")
    pix = jnp.stack([u.ravel(), v.ravel(),
                     jnp.ones(resolution * resolution, jnp.float32)], axis=-1)
    k_inv = jnp.linalg.inv(intrinsics)                       # (B, 3, 3)
    dirs_cam = jnp.einsum("bij,rj->bri", k_inv, pix)         # (B, R, 3)
    rot = extrinsics[:, :3, :3]
    trans = extrinsics[:, :3, 3]
    dirs = jnp.einsum("bij,brj->bri", rot, dirs_cam)
    dirs = dirs / jnp.linalg.norm(dirs, axis=-1, keepdims=True)
    origins = jnp.broadcast_to(trans[:, None, :], dirs.shape)
    return origins, dirs


class PointNeRF:
    """JAX/Pallas re-implementation of npcd PointNeRF (forward pass only)."""

    def __init__(self, n_obj, feats_dim, num_points, use_view_dir, key):
        assert not use_view_dir  # opt.model.field.kwargs.use_dir = False config
        self.n_obj = n_obj
        self.feat_dim = feats_dim
        self.num_points = num_points
        keys = jax.random.split(key, 16)
        # VariationalEmbedding weight: (n_obj, num_points * 2*feat_dim) = mean || log_var
        self.feats_weight = 0.1 * jax.random.normal(
            keys[0], (n_obj, num_points * 2 * feats_dim), jnp.float32)
        # (frozen) coords Embedding weight: (n_obj, num_points * 3)
        self.coords_weight = jax.random.uniform(
            keys[1], (n_obj, num_points * 3), jnp.float32, -0.5, 0.5)

        def dense(k, fan_in, fan_out):
            return jax.random.normal(k, (fan_in, fan_out), jnp.float32) / jnp.sqrt(float(fan_in))

        H = HIDDEN
        # aggregator MLP + field heads (reduced depth/width vs the 256-wide config)
        w1, w2, w3 = dense(keys[2], AGG_IN, H), dense(keys[3], H, H), dense(keys[4], H, H)
        ws1, ws2 = dense(keys[5], H, H), dense(keys[6], H, 1)
        wc1, wc2 = dense(keys[7], H, H), dense(keys[8], H, 3)
        b1 = b2 = b3 = bs1 = bc1 = jnp.zeros((H,), jnp.float32)
        bs2 = jnp.zeros((1,), jnp.float32)
        bc2 = jnp.zeros((3,), jnp.float32)

        # ---- pack all weights into one bf16 slab (heads fused block-diagonally) ----
        wslab = jnp.zeros((_W_ROWS, _W_COLS), jnp.float32)
        wslab = wslab.at[_R_W1:_R_W1 + AGG_IN, 0:H].set(w1)
        wslab = wslab.at[_R_W2:_R_W2 + H, 0:H].set(w2)
        wslab = wslab.at[_R_W3:_R_W3 + H, 0:H].set(w3)
        wslab = wslab.at[_R_WH1:_R_WH1 + H, 0:H].set(ws1)           # shape hidden
        wslab = wslab.at[_R_WH1:_R_WH1 + H, H:2 * H].set(wc1)       # channel hidden
        wslab = wslab.at[_R_WH2:_R_WH2 + H, 3:4].set(ws2)           # sigma column
        wslab = wslab.at[_R_WH2 + H:_R_WH2 + 2 * H, 0:3].set(wc2)   # rgb columns
        self.wslab = wslab.astype(jnp.bfloat16)

        # ---- pack all biases into one small f32 slab ----
        bslab = jnp.zeros((_B_ROWS, _W_COLS), jnp.float32)
        bslab = bslab.at[0, 0:H].set(b1)
        bslab = bslab.at[1, 0:H].set(b2)
        bslab = bslab.at[2, 0:H].set(b3)
        bslab = bslab.at[3, 0:H].set(bs1)
        bslab = bslab.at[3, H:2 * H].set(bc1)
        bslab = bslab.at[4, 0:3].set(bc2)
        bslab = bslab.at[4, 3:4].set(bs2)
        self.bslab = bslab

    def get_all_coords(self):
        return self.coords_weight.reshape(self.n_obj, self.num_points, 3)

    def get_all_feats(self):
        f = self.feats_weight.reshape(self.n_obj, self.num_points, 2 * self.feat_dim)
        return f[:, :, : self.feat_dim]

    def forward(self, obj_idx, intrinsics, extrinsics, sample_rays=False):
        # TODO(synk): sample_rays=True ray-subsampling path (ray_subsamples=112) not implemented.
        del sample_rays
        B = obj_idx.shape[0]
        P, Fd = self.num_points, self.feat_dim

        # --- embedding lookups (VariationalEmbedding: use the mean at eval time) ---
        fw = self.feats_weight[obj_idx].reshape(B, P, 2 * Fd)
        feats_mean, feats_log_var = fw[..., :Fd], fw[..., Fd:]
        feats_std = jnp.exp(0.5 * feats_log_var)
        feats = feats_mean
        coords = self.coords_weight[obj_idx].reshape(B, P, 3)

        # TODO(synk): VoxelGrid.set_pointset (hash-grid scatter + k-NN gather) has no clean
        # Pallas equivalent; the fused kernel aggregates over all points instead.

        # --- ray generation (glue); sample points are built inside the kernel ---
        rays_o, rays_d = generate_rays(intrinsics, extrinsics, RESOLUTION)   # (B, R, 3)
        coords_t = jnp.transpose(coords, (0, 2, 1))                          # (B, 3, P)

        # --- fused field evaluation + volume rendering (single Pallas kernel) ---
        out = render_rays(rays_o, rays_d, coords_t, feats, self.wslab, self.bslab)

        pred = {
            "channels": out[..., :3].reshape(B, RESOLUTION, RESOLUTION, 3),
            "acc": out[..., 3].reshape(B, RESOLUTION, RESOLUTION),
        }
        aux = {"coords": coords, "feats": feats_mean, "feats_mean": feats_mean,
               "feats_log_var": feats_log_var, "feats_std": feats_std}
        return pred, aux


# ----------------------------- main -------------------------------------------
if __name__ == "__main__":
    key = jax.random.PRNGKey(0)
    model = PointNeRF(n_obj=N_OBJ, feats_dim=FEAT_DIM, num_points=NUM_POINTS,
                      use_view_dir=False, key=key)

    B = 2
    obj_idx = jnp.array([0, 1], dtype=jnp.int32)
    fx = fy = float(RESOLUTION)
    cx = cy = RESOLUTION / 2.0
    K = jnp.array([[fx, 0.0, cx], [0.0, fy, cy], [0.0, 0.0, 1.0]], jnp.float32)
    intrinsics = jnp.broadcast_to(K, (B, 3, 3))
    E = jnp.eye(4, dtype=jnp.float32).at[2, 3].set(-2.5)   # camera-to-world pose
    extrinsics = jnp.broadcast_to(E, (B, 4, 4))

    pred, aux = model.forward(obj_idx, intrinsics, extrinsics, sample_rays=False)
    jax.block_until_ready((pred, aux))

    assert pred["channels"].shape == (B, RESOLUTION, RESOLUTION, 3)
    assert pred["acc"].shape == (B, RESOLUTION, RESOLUTION)
    assert bool(jnp.all(jnp.isfinite(pred["channels"])))
    assert bool(jnp.all(jnp.isfinite(pred["acc"])))
    print("KERNEL_OK")
</pallas_src>

<mosaic_0001>
module attributes {stable_mosaic.version = 11 : i64} {
  func.func @_pointnerf_kernel(%arg0: i32, %arg1: i32, %arg2: i32, %arg3: memref<1x64x3xf32, #tpu.memory_space<vmem>>, %arg4: memref<1x64x3xf32, #tpu.memory_space<vmem>>, %arg5: memref<1x3x64xf32, #tpu.memory_space<vmem>>, %arg6: memref<1x64x8xf32, #tpu.memory_space<vmem>>, %arg7: memref<208x64xbf16, #tpu.memory_space<vmem>>, %arg8: memref<8x64xf32, #tpu.memory_space<vmem>>, %arg9: memref<1x64x4xf32, #tpu.memory_space<vmem>>, %arg10: memref<64x4xf32, #tpu.memory_space<vmem>>, %arg11: memref<64x1xf32, #tpu.memory_space<vmem>>) attributes {dimension_semantics = [#tpu.dimension_semantics<parallel>, #tpu.dimension_semantics<parallel>, #tpu.dimension_semantics<arbitrary>], iteration_bounds = array<i64: 2, 1, 16>, scalar_prefetch = 0 : i64, scratch_operands = 2 : i64, tpu.core_type = #tpu.core_type<tc>, window_params = [{transform_indices = @transform_0, window_bounds = array<i64: 1, 64, 3>}, {transform_indices = @transform_1, window_bounds = array<i64: 1, 64, 3>}, {transform_indices = @transform_2, window_bounds = array<i64: 1, 3, 64>}, {transform_indices = @transform_3, window_bounds = array<i64: 1, 64, 8>}, {pipeline_mode = #tpu.pipeline_mode<synchronous>, transform_indices = @transform_4, window_bounds = array<i64: 208, 64>}, {pipeline_mode = #tpu.pipeline_mode<synchronous>, transform_indices = @transform_5, window_bounds = array<i64: 8, 64>}, {transform_indices = @transform_6, window_bounds = array<i64: 1, 64, 4>}]} {
    %c0_i32 = arith.constant 0 : i32
    %0 = arith.cmpi eq, %arg2, %c0_i32 : i32
    %1 = arith.extui %0 : i1 to i32
    %c0_i32_0 = arith.constant 0 : i32
    %2 = arith.cmpi ne, %1, %c0_i32_0 : i32
    scf.if %2 {
      %cst_65 = arith.constant 0.000000e+00 : f32
      %136 = vector.broadcast %cst_65 : f32 to vector<64x4xf32>
      %c0_66 = arith.constant 0 : index
      %c0_67 = arith.constant 0 : index
      %137 = vector.load %arg10[%c0_66, %c0_67] : memref<64x4xf32, #tpu.memory_space<vmem>>, vector<64x4xf32>
      tpu.vector_store %arg10[%c0_66, %c0_67], %136 {strides = array<i32>} : memref<64x4xf32, #tpu.memory_space<vmem>>, vector<64x4xf32>,
      %cst_68 = arith.constant 1.000000e+00 : f32
      %138 = vector.broadcast %cst_68 : f32 to vector<64x1xf32>
      %c0_69 = arith.constant 0 : index
      %c0_70 = arith.constant 0 : index
      %139 = vector.load %arg11[%c0_69, %c0_70] : memref<64x1xf32, #tpu.memory_space<vmem>>, vector<64x1xf32>
      tpu.vector_store %arg11[%c0_69, %c0_70], %138 {strides = array<i32>} : memref<64x1xf32, #tpu.memory_space<vmem>>, vector<64x1xf32>,
    } else {
    }
    %3 = arith.sitofp %arg2 : i32 to f32
    %cst = arith.constant 2.000000e-01 : f32
    %4 = arith.mulf %cst, %3 : f32
    %cst_1 = arith.constant 1.000000e+00 : f32
    %5 = arith.addf %cst_1, %4 : f32
    %c0 = arith.constant 0 : index
    %c0_2 = arith.constant 0 : index
    %c0_3 = arith.constant 0 : index
    %6 = vector.load %arg3[%c0, %c0_2, %c0_3] : memref<1x64x3xf32, #tpu.memory_space<vmem>>, vector<1x64x3xf32>
    %7 = vector.shape_cast %6 : vector<1x64x3xf32> to vector<64x3xf32>
    %c0_4 = arith.constant 0 : index
    %c0_5 = arith.constant 0 : index
    %c0_6 = arith.constant 0 : index
    %8 = vector.load %arg4[%c0_4, %c0_5, %c0_6] : memref<1x64x3xf32, #tpu.memory_space<vmem>>, vector<1x64x3xf32>
    %9 = vector.shape_cast %8 : vector<1x64x3xf32> to vector<64x3xf32>
    %10 = vector.broadcast %5 : f32 to vector<64x3xf32>
    %11 = arith.mulf %10, %9 : vector<64x3xf32>
    %12 = arith.addf %7, %11 : vector<64x3xf32>
    %c0_7 = arith.constant 0 : index
    %c0_8 = arith.constant 0 : index
    %c0_9 = arith.constant 0 : index
    %13 = vector.load %arg5[%c0_7, %c0_8, %c0_9] : memref<1x3x64xf32, #tpu.memory_space<vmem>>, vector<1x3x64xf32>
    %14 = vector.shape_cast %13 : vector<1x3x64xf32> to vector<3x64xf32>
    %c0_10 = arith.constant 0 : index
    %c0_11 = arith.constant 0 : index
    %c0_12 = arith.constant 0 : index
    %15 = vector.load %arg6[%c0_10, %c0_11, %c0_12] : memref<1x64x8xf32, #tpu.memory_space<vmem>>, vector<1x64x8xf32>
    %16 = vector.shape_cast %15 : vector<1x64x8xf32> to vector<64x8xf32>
    %17 = arith.mulf %12, %12 : vector<64x3xf32>
    %cst_13 = arith.constant dense<0.000000e+00> : vector<64xf32>
    %18 = vector.multi_reduction <add>, %17, %cst_13 [1] : vector<64x3xf32> to vector<64xf32>
    %19 = vector.shape_cast %18 : vector<64xf32> to vector<64x1xf32>
    %20 = arith.mulf %14, %14 : vector<3x64xf32>
    %cst_14 = arith.constant dense<0.000000e+00> : vector<64xf32>
    %21 = vector.multi_reduction <add>, %20, %cst_14 [0] : vector<3x64xf32> to vector<64xf32>
    %22 = vector.shape_cast %21 : vector<64xf32> to vector<1x64xf32>
    %cst_15 = arith.constant dense<0.000000e+00> : vector<64x64xf32>
    %23 = tpu.matmul %12, %14, %cst_15 {dimension_numbers = #tpu.dot_dimension_numbers<[1], [0], [0], [1], [0, 0, 1, 1], [], []>} : vector<64x3xf32>, vector<3x64xf32>, vector<64x64xf32> -> vector<64x64xf32>
    %24 = vector.broadcast %19 : vector<64x1xf32> to vector<64x64xf32>
    %25 = vector.broadcast %22 : vector<1x64xf32> to vector<64x64xf32>
    %26 = arith.addf %24, %25 : vector<64x64xf32>
    %cst_16 = arith.constant 2.000000e+00 : f32
    %27 = vector.broadcast %cst_16 : f32 to vector<64x64xf32>
    %28 = arith.mulf %27, %23 : vector<64x64xf32>
    %29 = arith.subf %26, %28 : vector<64x64xf32>
    %cst_17 = arith.constant 0.000000e+00 : f32
    %30 = vector.broadcast %cst_17 : f32 to vector<64x64xf32>
    %31 = arith.maximumf %29, %30 : vector<64x64xf32>
    %cst_18 = arith.constant 9.99999997E-7 : f32
    %32 = vector.broadcast %cst_18 : f32 to vector<64x64xf32>
    %33 = arith.addf %31, %32 : vector<64x64xf32>
    %34 = tpu.reciprocal %33 {approx = true} : vector<64x64xf32> -> vector<64x64xf32>
    %cst_19 = arith.constant dense<0.000000e+00> : vector<64xf32>
    %35 = vector.multi_reduction <add>, %34, %cst_19 [1] : vector<64x64xf32> to vector<64xf32>
    %36 = vector.shape_cast %35 : vector<64xf32> to vector<64x1xf32>
    %37 = tpu.reciprocal %36 {approx = true} : vector<64x1xf32> -> vector<64x1xf32>
    %38 = vector.broadcast %37 : vector<64x1xf32> to vector<64x64xf32>
    %39 = arith.mulf %34, %38 : vector<64x64xf32>
    %cst_20 = arith.constant dense<0.000000e+00> : vector<64x8xf32>
    %40 = tpu.matmul %39, %16, %cst_20 {dimension_numbers = #tpu.dot_dimension_numbers<[1], [0], [0], [1], [0, 0, 1, 1], [], []>} : vector<64x64xf32>, vector<64x8xf32>, vector<64x8xf32> -> vector<64x8xf32>
    %cst_21 = arith.constant 3.14159274 : f32
    %41 = vector.broadcast %cst_21 : f32 to vector<64x3xf32>
    %42 = arith.mulf %12, %41 : vector<64x3xf32>
    %cst_22 = arith.constant 6.28318548 : f32
    %43 = vector.broadcast %cst_22 : f32 to vector<64x3xf32>
    %44 = arith.mulf %12, %43 : vector<64x3xf32>
    %cst_23 = arith.constant 12.566371 : f32
    %45 = vector.broadcast %cst_23 : f32 to vector<64x3xf32>
    %46 = arith.mulf %12, %45 : vector<64x3xf32>
    %cst_24 = arith.constant 25.1327419 : f32
    %47 = vector.broadcast %cst_24 : f32 to vector<64x3xf32>
    %48 = arith.mulf %12, %47 : vector<64x3xf32>
    %49 = tpu.concatenate %42, %44, %46, %48 in 1 : vector<64x3xf32>, vector<64x3xf32>, vector<64x3xf32>, vector<64x3xf32> -> vector<64x12xf32>
    %50 = math.sin %49 : vector<64x12xf32>
    %51 = math.cos %49 : vector<64x12xf32>
    %52 = tpu.concatenate %40, %12, %50, %51 in 1 : vector<64x8xf32>, vector<64x3xf32>, vector<64x12xf32>, vector<64x12xf32> -> vector<64x35xf32>
    %c0_25 = arith.constant 0 : index
    %c0_26 = arith.constant 0 : index
    %53 = vector.load %arg7[%c0_25, %c0_26] : memref<208x64xbf16, #tpu.memory_space<vmem>>, vector<35x32xbf16>
    %c48 = arith.constant 48 : index
    %c0_27 = arith.constant 0 : index
    %54 = vector.load %arg7[%c48, %c0_27] : memref<208x64xbf16, #tpu.memory_space<vmem>>, vector<32x32xbf16>
    %c80 = arith.constant 80 : index
    %c0_28 = arith.constant 0 : index
    %55 = vector.load %arg7[%c80, %c0_28] : memref<208x64xbf16, #tpu.memory_space<vmem>>, vector<32x32xbf16>
    %c112 = arith.constant 112 : index
    %c0_29 = arith.constant 0 : index
    %56 = vector.load %arg7[%c112, %c0_29] : memref<208x64xbf16, #tpu.memory_space<vmem>>, vector<32x64xbf16>
    %c144 = arith.constant 144 : index
    %c0_30 = arith.constant 0 : index
    %57 = vector.load %arg7[%c144, %c0_30] : memref<208x64xbf16, #tpu.memory_space<vmem>>, vector<64x4xbf16>
    %c0_31 = arith.constant 0 : index
    %c0_32 = arith.constant 0 : index
    %58 = vector.load %arg8[%c0_31, %c0_32] : memref<8x64xf32, #tpu.memory_space<vmem>>, vector<1x32xf32>
    %c1 = arith.constant 1 : index
    %c0_33 = arith.constant 0 : index
    %59 = vector.load %arg8[%c1, %c0_33] : memref<8x64xf32, #tpu.memory_space<vmem>>, vector<1x32xf32>
    %c2 = arith.constant 2 : index
    %c0_34 = arith.constant 0 : index
    %60 = vector.load %arg8[%c2, %c0_34] : memref<8x64xf32, #tpu.memory_space<vmem>>, vector<1x32xf32>
    %c3 = arith.constant 3 : index
    %c0_35 = arith.constant 0 : index
    %61 = vector.load %arg8[%c3, %c0_35] : memref<8x64xf32, #tpu.memory_space<vmem>>, vector<1x64xf32>
    %c4 = arith.constant 4 : index
    %c0_36 = arith.constant 0 : index
    %62 = vector.load %arg8[%c4, %c0_36] : memref<8x64xf32, #tpu.memory_space<vmem>>, vector<1x4xf32>
    %63 = arith.truncf %52 : vector<64x35xf32> to vector<64x35xbf16>
    %cst_37 = arith.constant dense<0.000000e+00> : vector<64x32xf32>
    %64 = tpu.matmul %63, %53, %cst_37 {dimension_numbers = #tpu.dot_dimension_numbers<[1], [0], [0], [1], [0, 0, 1, 1], [], []>} : vector<64x35xbf16>, vector<35x32xbf16>, vector<64x32xf32> -> vector<64x32xf32>
    %65 = vector.broadcast %58 : vector<1x32xf32> to vector<64x32xf32>
    %66 = arith.addf %64, %65 : vector<64x32xf32>
    %cst_38 = arith.constant 0.000000e+00 : f32
    %67 = vector.broadcast %cst_38 : f32 to vector<64x32xf32>
    %68 = arith.cmpf oge, %66, %67 : vector<64x32xf32>
    %cst_39 = arith.constant 0.00999999977 : f32
    %69 = vector.broadcast %cst_39 : f32 to vector<64x32xf32>
    %70 = arith.mulf %69, %66 : vector<64x32xf32>
    %71 = arith.select %68, %66, %70 : vector<64x32xi1>, vector<64x32xf32>
    %72 = arith.truncf %71 : vector<64x32xf32> to vector<64x32xbf16>
    %cst_40 = arith.constant dense<0.000000e+00> : vector<64x32xf32>
    %73 = tpu.matmul %72, %54, %cst_40 {dimension_numbers = #tpu.dot_dimension_numbers<[1], [0], [0], [1], [0, 0, 1, 1], [], []>} : vector<64x32xbf16>, vector<32x32xbf16>, vector<64x32xf32> -> vector<64x32xf32>
    %74 = vector.broadcast %59 : vector<1x32xf32> to vector<64x32xf32>
    %75 = arith.addf %73, %74 : vector<64x32xf32>
    %cst_41 = arith.constant 0.000000e+00 : f32
    %76 = vector.broadcast %cst_41 : f32 to vector<64x32xf32>
    %77 = arith.cmpf oge, %75, %76 : vector<64x32xf32>
    %cst_42 = arith.constant 0.00999999977 : f32
    %78 = vector.broadcast %cst_42 : f32 to vector<64x32xf32>
    %79 = arith.mulf %78, %75 : vector<64x32xf32>
    %80 = arith.select %77, %75, %79 : vector<64x32xi1>, vector<64x32xf32>
    %81 = arith.truncf %80 : vector<64x32xf32> to vector<64x32xbf16>
    %cst_43 = arith.constant dense<0.000000e+00> : vector<64x32xf32>
    %82 = tpu.matmul %81, %55, %cst_43 {dimension_numbers = #tpu.dot_dimension_numbers<[1], [0], [0], [1], [0, 0, 1, 1], [], []>} : vector<64x32xbf16>, vector<32x32xbf16>, vector<64x32xf32> -> vector<64x32xf32>
    %83 = vector.broadcast %60 : vector<1x32xf32> to vector<64x32xf32>
    %84 = arith.addf %82, %83 : vector<64x32xf32>
    %85 = arith.truncf %84 : vector<64x32xf32> to vector<64x32xbf16>
    %cst_44 = arith.constant dense<0.000000e+00> : vector<64x64xf32>
    %86 = tpu.matmul %85, %56, %cst_44 {dimension_numbers = #tpu.dot_dimension_numbers<[1], [0], [0], [1], [0, 0, 1, 1], [], []>} : vector<64x32xbf16>, vector<32x64xbf16>, vector<64x64xf32> -> vector<64x64xf32>
    %87 = vector.broadcast %61 : vector<1x64xf32> to vector<64x64xf32>
    %88 = arith.addf %86, %87 : vector<64x64xf32>
    %cst_45 = arith.constant 0.000000e+00 : f32
    %89 = vector.broadcast %cst_45 : f32 to vector<64x64xf32>
    %90 = arith.cmpf oge, %88, %89 : vector<64x64xf32>
    %cst_46 = arith.constant 0.00999999977 : f32
    %91 = vector.broadcast %cst_46 : f32 to vector<64x64xf32>
    %92 = arith.mulf %91, %88 : vector<64x64xf32>
    %93 = arith.select %90, %88, %92 : vector<64x64xi1>, vector<64x64xf32>
    %94 = arith.truncf %93 : vector<64x64xf32> to vector<64x64xbf16>
    %cst_47 = arith.constant dense<0.000000e+00> : vector<64x4xf32>
    %95 = tpu.matmul %94, %57, %cst_47 {dimension_numbers = #tpu.dot_dimension_numbers<[1], [0], [0], [1], [0, 0, 1, 1], [], []>} : vector<64x64xbf16>, vector<64x4xbf16>, vector<64x4xf32> -> vector<64x4xf32>
    %96 = vector.broadcast %62 : vector<1x4xf32> to vector<64x4xf32>
    %97 = arith.addf %95, %96 : vector<64x4xf32>
    %98 = vector.extract_strided_slice %97 {offsets = [0, 0], sizes = [64, 3], strides = [1, 1]} : vector<64x4xf32> to vector<64x3xf32>
    %cst_48 = arith.constant 0.000000e+00 : f32
    %99 = vector.broadcast %cst_48 : f32 to vector<64x3xf32>
    %100 = arith.subf %99, %98 : vector<64x3xf32>
    %101 = math.exp %100 : vector<64x3xf32>
    %cst_49 = arith.constant 1.000000e+00 : f32
    %102 = vector.broadcast %cst_49 : f32 to vector<64x3xf32>
    %103 = arith.addf %102, %101 : vector<64x3xf32>
    %104 = tpu.reciprocal %103 {approx = true} : vector<64x3xf32> -> vector<64x3xf32>
    %105 = vector.extract_strided_slice %97 {offsets = [0, 3], sizes = [64, 1], strides = [1, 1]} : vector<64x4xf32> to vector<64x1xf32>
    %106 = math.absf %105 : vector<64x1xf32>
    %cst_50 = arith.constant 0.000000e+00 : f32
    %107 = vector.broadcast %cst_50 : f32 to vector<64x1xf32>
    %108 = arith.subf %107, %106 : vector<64x1xf32>
    %109 = math.exp %108 : vector<64x1xf32>
    %cst_51 = arith.constant 1.000000e+00 : f32
    %110 = vector.broadcast %cst_51 : f32 to vector<64x1xf32>
    %111 = arith.addf %110, %109 : vector<64x1xf32>
    %112 = math.log %111 : vector<64x1xf32>
    %cst_52 = arith.constant 0.000000e+00 : f32
    %113 = vector.broadcast %cst_52 : f32 to vector<64x1xf32>
    %114 = arith.maximumf %105, %113 : vector<64x1xf32>
    %115 = arith.addf %112, %114 : vector<64x1xf32>
    %cst_53 = arith.constant 0.000000e+00 : f32
    %116 = vector.broadcast %cst_53 : f32 to vector<64x1xf32>
    %117 = arith.subf %116, %115 : vector<64x1xf32>
    %cst_54 = arith.constant 2.000000e-01 : f32
    %118 = vector.broadcast %cst_54 : f32 to vector<64x1xf32>
    %119 = arith.mulf %117, %118 : vector<64x1xf32>
    %120 = math.exp %119 : vector<64x1xf32>
    %cst_55 = arith.constant 1.000000e+00 : f32
    %121 = vector.broadcast %cst_55 : f32 to vector<64x1xf32>
    %122 = arith.subf %121, %120 : vector<64x1xf32>
    %c0_56 = arith.constant 0 : index
    %c0_57 = arith.constant 0 : index
    %123 = vector.load %arg11[%c0_56, %c0_57] : memref<64x1xf32, #tpu.memory_space<vmem>>, vector<64x1xf32>
    %124 = arith.mulf %123, %122 : vector<64x1xf32>
    %c0_58 = arith.constant 0 : index
    %c0_59 = arith.constant 0 : index
    %125 = vector.load %arg10[%c0_58, %c0_59] : memref<64x4xf32, #tpu.memory_space<vmem>>, vector<64x4xf32>
    %126 = vector.broadcast %124 : vector<64x1xf32> to vector<64x3xf32>
    %127 = arith.mulf %126, %104 : vector<64x3xf32>
    %128 = tpu.concatenate %127, %124 in 1 : vector<64x3xf32>, vector<64x1xf32> -> vector<64x4xf32>
    %129 = arith.addf %125, %128 : vector<64x4xf32>
    %c0_60 = arith.constant 0 : index
    %c0_61 = arith.constant 0 : index
    %130 = vector.load %arg10[%c0_60, %c0_61] : memref<64x4xf32, #tpu.memory_space<vmem>>, vector<64x4xf32>
    tpu.vector_store %arg10[%c0_60, %c0_61], %129 {strides = array<i32>} : memref<64x4xf32, #tpu.memory_space<vmem>>, vector<64x4xf32>,
    %131 = arith.mulf %123, %120 : vector<64x1xf32>
    %c0_62 = arith.constant 0 : index
    %c0_63 = arith.constant 0 : index
    %132 = vector.load %arg11[%c0_62, %c0_63] : memref<64x1xf32, #tpu.memory_space<vmem>>, vector<64x1xf32>
    tpu.vector_store %arg11[%c0_62, %c0_63], %131 {strides = array<i32>} : memref<64x1xf32, #tpu.memory_space<vmem>>, vector<64x1xf32>,
    %c15_i32 = arith.constant 15 : i32
    %133 = arith.cmpi eq, %arg2, %c15_i32 : i32
    %134 = arith.extui %133 : i1 to i32
    %c0_i32_64 = arith.constant 0 : i32
    %135 = arith.cmpi ne, %134, %c0_i32_64 : i32
    scf.if %135 {
      %c0_65 = arith.constant 0 : index
      %c0_66 = arith.constant 0 : index
      %136 = vector.load %arg10[%c0_65, %c0_66] : memref<64x4xf32, #tpu.memory_space<vmem>>, vector<64x4xf32>
      %137 = vector.extract_strided_slice %136 {offsets = [0, 3], sizes = [64, 1], strides = [1, 1]} : vector<64x4xf32> to vector<64x1xf32>
      %cst_67 = arith.constant 1.000000e+00 : f32
      %138 = vector.broadcast %cst_67 : f32 to vector<64x1xf32>
      %139 = arith.subf %138, %137 : vector<64x1xf32>
      %140 = vector.extract_strided_slice %136 {offsets = [0, 0], sizes = [64, 3], strides = [1, 1]} : vector<64x4xf32> to vector<64x3xf32>
      %141 = vector.broadcast %139 : vector<64x1xf32> to vector<64x3xf32>
      %142 = arith.addf %140, %141 : vector<64x3xf32>
      %143 = vector.extract_strided_slice %136 {offsets = [0, 3], sizes = [64, 1], strides = [1, 1]} : vector<64x4xf32> to vector<64x1xf32>
      %144 = tpu.concatenate %142, %143 in 1 : vector<64x3xf32>, vector<64x1xf32> -> vector<64x4xf32>
      %c0_68 = arith.constant 0 : index
      %c0_69 = arith.constant 0 : index
      %c0_70 = arith.constant 0 : index
      %145 = vector.load %arg9[%c0_68, %c0_69, %c0_70] : memref<1x64x4xf32, #tpu.memory_space<vmem>>, vector<1x64x4xf32>
      %146 = vector.shape_cast %145 : vector<1x64x4xf32> to vector<64x4xf32>
      %147 = vector.shape_cast %144 : vector<64x4xf32> to vector<1x64x4xf32>
      tpu.vector_store %arg9[%c0_68, %c0_69, %c0_70], %147 {strides = array<i32>} : memref<1x64x4xf32, #tpu.memory_space<vmem>>, vector<1x64x4xf32>,
    } else {
    }
    return
  }
  func.func @transform_0(%arg0: i32, %arg1: i32, %arg2: i32) -> (i32, i32, i32) {
    %c0_i32 = arith.constant 0 : i32
    %c0_i32_0 = arith.constant 0 : i32
    return %arg0, %arg1, %c0_i32 : i32, i32, i32
  }
  func.func @transform_1(%arg0: i32, %arg1: i32, %arg2: i32) -> (i32, i32, i32) {
    %c0_i32 = arith.constant 0 : i32
    %c0_i32_0 = arith.constant 0 : i32
    return %arg0, %arg1, %c0_i32 : i32, i32, i32
  }
  func.func @transform_2(%arg0: i32, %arg1: i32, %arg2: i32) -> (i32, i32, i32) {
    %c0_i32 = arith.constant 0 : i32
    %c0_i32_0 = arith.constant 0 : i32
    %c0_i32_1 = arith.constant 0 : i32
    return %arg0, %c0_i32, %c0_i32_0 : i32, i32, i32
  }
  func.func @transform_3(%arg0: i32, %arg1: i32, %arg2: i32) -> (i32, i32, i32) {
    %c0_i32 = arith.constant 0 : i32
    %c0_i32_0 = arith.constant 0 : i32
    %c0_i32_1 = arith.constant 0 : i32
    return %arg0, %c0_i32, %c0_i32_0 : i32, i32, i32
  }
  func.func @transform_4(%arg0: i32, %arg1: i32, %arg2: i32) -> (i32, i32) {
    %c0_i32 = arith.constant 0 : i32
    %c0_i32_0 = arith.constant 0 : i32
    %c0_i32_1 = arith.constant 0 : i32
    return %c0_i32, %c0_i32_0 : i32, i32
  }
  func.func @transform_5(%arg0: i32, %arg1: i32, %arg2: i32) -> (i32, i32) {
    %c0_i32 = arith.constant 0 : i32
    %c0_i32_0 = arith.constant 0 : i32
    %c0_i32_1 = arith.constant 0 : i32
    return %c0_i32, %c0_i32_0 : i32, i32
  }
  func.func @transform_6(%arg0: i32, %arg1: i32, %arg2: i32) -> (i32, i32, i32) {
    %c0_i32 = arith.constant 0 : i32
    %c0_i32_0 = arith.constant 0 : i32
    return %arg0, %arg1, %c0_i32 : i32, i32, i32
  }
}

</mosaic_0001>

<llo_original>
// kernel: tpu_custom_call.1
$region0: #{tpu_custom_call.1}
  #allocation0 [shape = 'u32[]', space=smem, size = 0x4, offset = 0x4, fixed_abs, tag = 'smem constant byte address 0x4 - core index']
  #allocation1 [shape = 'u32[144,128]{1,0:T(1,128)}', space=vmem, size = 0x12000, scoped, tag = 'internal scratch']
  #allocation2 [shape = 'f32[64,4]{1,0:T(8,128)}', space=vmem, size = 0x8000, scoped, tag = 'scratch operand']
  #allocation3 [shape = 'f32[64,1]{1,0:T(8,128)}', space=vmem, size = 0x8000, scoped, tag = 'scratch operand']
  %s0 = inlined_call_operand.vmem [shape: f32[2,64,3], index: 0, kind: input, shape index: {}]
  %s1 = inlined_call_operand.vmem [shape: f32[2,64,3], index: 1, kind: input, shape index: {}]
  %s2 = inlined_call_operand.vmem [shape: f32[2,3,64], index: 2, kind: input, shape index: {}]
  %s3 = inlined_call_operand.vmem [shape: f32[2,64,8], index: 3, kind: input, shape index: {}]
  %s4 = inlined_call_operand.vmem [shape: bf16[208,64], index: 4, kind: input, shape index: {}]
  %s5 = inlined_call_operand.vmem [shape: f32[8,64], index: 5, kind: input, shape index: {}]
  %s6 = inlined_call_operand.vmem [shape: f32[2,64,4], index: 6, kind: output, shape index: {}]
  %s7 = sld [smem:[#allocation0]]
  $region65: #{tpu_custom_call.1} parent=0
    _
  %s9 = ssub.s32 1, %s7
  %s10 = scalar_select 0, %s9, %s7
  loop: start=0, step=1, limit=34
  $region2: #{tpu_custom_call.1} parent=0 // loop_pre_header
    _
  $region3: #{tpu_custom_call.1} parent=0 // loop_header
    %s12 = sphi 0, %s16
    %p13 = scmp.ge.s32.totalorder %s12, 34
    %s19 = sphi 0, %s38
    %s20 = sphi 0, %s34
    %s21 = sphi 0, %s30
    %s22 = sphi 0, %s19
    %s23 = sphi 0, %s20
    %s24 = sphi 0, %s21
    %s25 = sphi 0, %s22
    %s26 = sphi 0, %s23
    %s27 = sphi 0, %s24
    %s43 = sphi 0, %s45
    %s46 = sphi 0, %s43
    %s47 = sphi 0, %s46
    %s63 = sphi 0, %s47
    %s71 = sphi 0, %s73
    %s74 = sphi 0, %s71
    %s75 = sphi 0, %s74
    %s91 = sphi 0, %s75
    %s97 = sphi 0, %s99
    %s100 = sphi 0, %s97
    %s101 = sphi 0, %s100
    %s117 = sphi 0, %s101
    %s123 = sphi 0, %s125
    %s126 = sphi 0, %s123
    %s127 = sphi 0, %s126
    %s143 = sphi 0, %s127
    %s147 = sphi 0, %s147
    %s149 = sphi 0, %s147
    %s150 = sphi 0, %s149
    %s164 = sphi 0, %s150
    %s168 = sphi 0, %s168
    %s170 = sphi 0, %s168
    %s171 = sphi 0, %s170
    %s185 = sphi 0, %s171
    %s193 = sphi 0, %s195
    %s196 = sphi 0, %s193
    %s197 = sphi 0, %s196
    %s213 = sphi 0, %s197
  $region4: #{tpu_custom_call.1} parent=0 // loop_header_branch
    %15 = sbr.rel (%p13) target = $region8
  $region5: #{tpu_custom_call.1} parent=0 // loop_body
    %s17 = ssub.s32 %s12, 1
    %s18 = ssub.s32 %s12, 2
    %s28 = sadd.s32 1, %s21
    %p29 = scmp.ge.s32.totalorder %s28, 16
    %s30 = scalar_select %p29, 0, %s28
    %s31 = sadd.s32 1, %s20
    %s32 = scalar_select %p29, %s31, %s20
    %p33 = scmp.ge.s32.totalorder %s32, 1
    %s34 = scalar_select %p33, 0, %s32
    %s35 = sadd.s32 1, %s19
    %s36 = scalar_select %p33, %s35, %s19
    %p37 = scmp.ge.s32.totalorder %s36, 2
    %s38 = scalar_select %p37, 0, %s36
    %s39 = ssub.s32 %s19, %s38
    %s40 = ssub.s32 %s20, %s34
    %s41 = sor.u32 %s39, %s40
    %p42 = scmp.eq.s32.totalorder %s41, 0
    %s44 = sadd.s32 %s43, 1
    %s45 = scalar_select %p42, %s43, %s44
    %p48 = pneg %p42
    %p49 = scmp.eq.s32.totalorder %s12, 31
    %p50 = por %p48, %p49
    %p51 = scmp.ne.s32.totalorder %s43, %s46
    %p52 = scmp.eq.s32.totalorder %s12, 0
    %p53 = por %p51, %p52
    %p54 = scmp.ne.s32.totalorder %s43, %s46
    %p55 = scmp.eq.s32.totalorder %s17, 31
    %p56 = por %p54, %p55
    %p57 = scmp.ne.s32.totalorder %s46, %s47
    %p58 = scmp.eq.s32.totalorder %s17, 0
    %p59 = por %p57, %p58
    %p60 = scmp.ne.s32.totalorder %s46, %s47
    %p61 = scmp.eq.s32.totalorder %s18, 31
    %p62 = por %p60, %p61
    %p64 = scmp.ne.s32.totalorder %s47, %s63
    %p65 = scmp.eq.s32.totalorder %s18, 0
    %p66 = por %p64, %p65
    %s67 = ssub.s32 %s19, %s38
    %s68 = ssub.s32 %s20, %s34
    %s69 = sor.u32 %s67, %s68
    %p70 = scmp.eq.s32.totalorder %s69, 0
    %s72 = sadd.s32 %s71, 1
    %s73 = scalar_select %p70, %s71, %s72
    %p76 = pneg %p70
    %p77 = scmp.eq.s32.totalorder %s12, 31
    %p78 = por %p76, %p77
    %p79 = scmp.ne.s32.totalorder %s71, %s74
    %p80 = scmp.eq.s32.totalorder %s12, 0
    %p81 = por %p79, %p80
    %p82 = scmp.ne.s32.totalorder %s71, %s74
    %p83 = scmp.eq.s32.totalorder %s17, 31
    %p84 = por %p82, %p83
    %p85 = scmp.ne.s32.totalorder %s74, %s75
    %p86 = scmp.eq.s32.totalorder %s17, 0
    %p87 = por %p85, %p86
    %p88 = scmp.ne.s32.totalorder %s74, %s75
    %p89 = scmp.eq.s32.totalorder %s18, 31
    %p90 = por %p88, %p89
    %p92 = scmp.ne.s32.totalorder %s75, %s91
    %p93 = scmp.eq.s32.totalorder %s18, 0
    %p94 = por %p92, %p93
    %s95 = ssub.s32 %s19, %s38
    %p96 = scmp.eq.s32.totalorder %s95, 0
    %s98 = sadd.s32 %s97, 1
    %s99 = scalar_select %p96, %s97, %s98
    %p102 = pneg %p96
    %p103 = scmp.eq.s32.totalorder %s12, 31
    %p104 = por %p102, %p103
    %p105 = scmp.ne.s32.totalorder %s97, %s100
    %p106 = scmp.eq.s32.totalorder %s12, 0
    %p107 = por %p105, %p106
    %p108 = scmp.ne.s32.totalorder %s97, %s100
    %p109 = scmp.eq.s32.totalorder %s17, 31
    %p110 = por %p108, %p109
    %p111 = scmp.ne.s32.totalorder %s100, %s101
    %p112 = scmp.eq.s32.totalorder %s17, 0
    %p113 = por %p111, %p112
    %p114 = scmp.ne.s32.totalorder %s100, %s101
    %p115 = scmp.eq.s32.totalorder %s18, 31
    %p116 = por %p114, %p115
    %p118 = scmp.ne.s32.totalorder %s101, %s117
    %p119 = scmp.eq.s32.totalorder %s18, 0
    %p120 = por %p118, %p119
    %s121 = ssub.s32 %s19, %s38
    %p122 = scmp.eq.s32.totalorder %s121, 0
    %s124 = sadd.s32 %s123, 1
    %s125 = scalar_select %p122, %s123, %s124
    %p128 = pneg %p122
    %p129 = scmp.eq.s32.totalorder %s12, 31
    %p130 = por %p128, %p129
    %p131 = scmp.ne.s32.totalorder %s123, %s126
    %p132 = scmp.eq.s32.totalorder %s12, 0
    %p133 = por %p131, %p132
    %p134 = scmp.ne.s32.totalorder %s123, %s126
    %p135 = scmp.eq.s32.totalorder %s17, 31
    %p136 = por %p134, %p135
    %p137 = scmp.ne.s32.totalorder %s126, %s127
    %p138 = scmp.eq.s32.totalorder %s17, 0
    %p139 = por %p137, %p138
    %p140 = scmp.ne.s32.totalorder %s126, %s127
    %p141 = scmp.eq.s32.totalorder %s18, 31
    %p142 = por %p140, %p141
    %p144 = scmp.ne.s32.totalorder %s127, %s143
    %p145 = scmp.eq.s32.totalorder %s18, 0
    %p146 = por %p144, %p145
    %s148 = sadd.s32 %s147, 1
    %p151 = scmp.eq.s32.totalorder %s12, 31
    %p152 = scmp.ne.s32.totalorder %s147, %s149
    %p153 = scmp.eq.s32.totalorder %s12, 0
    %p154 = por %p152, %p153
    %p155 = scmp.ne.s32.totalorder %s147, %s149
    %p156 = scmp.eq.s32.totalorder %s17, 31
    %p157 = por %p155, %p156
    %p158 = scmp.ne.s32.totalorder %s149, %s150
    %p159 = scmp.eq.s32.totalorder %s17, 0
    %p160 = por %p158, %p159
    %p161 = scmp.ne.s32.totalorder %s149, %s150
    %p162 = scmp.eq.s32.totalorder %s18, 31
    %p163 = por %p161, %p162
    %p165 = scmp.ne.s32.totalorder %s150, %s164
    %p166 = scmp.eq.s32.totalorder %s18, 0
    %p167 = por %p165, %p166
    %s169 = sadd.s32 %s168, 1
    %p172 = scmp.eq.s32.totalorder %s12, 31
    %p173 = scmp.ne.s32.totalorder %s168, %s170
    %p174 = scmp.eq.s32.totalorder %s12, 0
    %p175 = por %p173, %p174
    %p176 = scmp.ne.s32.totalorder %s168, %s170
    %p177 = scmp.eq.s32.totalorder %s17, 31
    %p178 = por %p176, %p177
    %p179 = scmp.ne.s32.totalorder %s170, %s171
    %p180 = scmp.eq.s32.totalorder %s17, 0
    %p181 = por %p179, %p180
    %p182 = scmp.ne.s32.totalorder %s170, %s171
    %p183 = scmp.eq.s32.totalorder %s18, 31
    %p184 = por %p182, %p183
    %p186 = scmp.ne.s32.totalorder %s171, %s185
    %p187 = scmp.eq.s32.totalorder %s18, 0
    %p188 = por %p186, %p187
    %s189 = ssub.s32 %s19, %s38
    %s190 = ssub.s32 %s20, %s34
    %s191 = sor.u32 %s189, %s190
    %p192 = scmp.eq.s32.totalorder %s191, 0
    %s194 = sadd.s32 %s193, 1
    %s195 = scalar_select %p192, %s193, %s194
    %p198 = pneg %p192
    %p199 = scmp.eq.s32.totalorder %s12, 31
    %p200 = por %p198, %p199
    %p201 = scmp.ne.s32.totalorder %s193, %s196
    %p202 = scmp.eq.s32.totalorder %s12, 0
    %p203 = por %p201, %p202
    %p204 = scmp.ne.s32.totalorder %s193, %s196
    %p205 = scmp.eq.s32.totalorder %s17, 31
    %p206 = por %p204, %p205
    %p207 = scmp.ne.s32.totalorder %s196, %s197
    %p208 = scmp.eq.s32.totalorder %s17, 0
    %p209 = por %p207, %p208
    %p210 = scmp.ne.s32.totalorder %s196, %s197
    %p211 = scmp.eq.s32.totalorder %s18, 31
    %p212 = por %p210, %p211
    %p214 = scmp.ne.s32.totalorder %s197, %s213
    %p215 = scmp.eq.s32.totalorder %s18, 0
    %p216 = por %p214, %p215
    %p217 = scmp.le.s32.totalorder 1, %s12
    %p218 = scmp.lt.s32.totalorder %s12, 33
    %p219 = pnand %p217, %p218
    %p220 = pneg %p219
    // Predicated region
    $region9: #{tpu_custom_call.1} parent=5 // pred_check
      _
    $region10: #{tpu_custom_call.1} parent=5 // pred_check_branch
      %222 = sbr.rel (%p219) target = $region12
    $region11: #{tpu_custom_call.1} parent=5 // pred_region
      %s223 = ssub.s32 %s12, 1
      // Predicated region
      $region13: #{tpu_custom_call.1} parent=11 // pred_check
        %p224 = pneg %p160
      $region14: #{tpu_custom_call.1} parent=11 // pred_check_branch
        %226 = sbr.rel (%p224) target = $region16
      $region15: #{tpu_custom_call.1} parent=11 // pred_region
        _
      $region16: #{tpu_custom_call.1} parent=11 // pred_fallthru
        _
      // Predicated region
      $region17: #{tpu_custom_call.1} parent=11 // pred_check
        %p227 = pneg %p181
      $region18: #{tpu_custom_call.1} parent=11 // pred_check_branch
        %229 = sbr.rel (%p227) target = $region20
      $region19: #{tpu_custom_call.1} parent=11 // pred_region
        _
      $region20: #{tpu_custom_call.1} parent=11 // pred_fallthru
        _
    $region12: #{tpu_custom_call.1} parent=5 // pred_fallthru
      _
    %p230 = scmp.lt.s32.totalorder %s12, 32
    // Predicated region
    $region21: #{tpu_custom_call.1} parent=5 // pred_check
      %p231 = pneg %p230
    $region22: #{tpu_custom_call.1} parent=5 // pred_check_branch
      %233 = sbr.rel (%p231) target = $region24
    $region23: #{tpu_custom_call.1} parent=5 // pred_region
      // Predicated region
      $region25: #{tpu_custom_call.1} parent=23 // pred_check
        %p234 = pneg %p53
      $region26: #{tpu_custom_call.1} parent=23 // pred_check_branch
        %236 = sbr.rel (%p234) target = $region28
      $region27: #{tpu_custom_call.1} parent=23 // pred_region
        %s237 = smul.u32 8, %s20
        %p238 = scmp.lt.s32.totalorder %s19, 1
        %s239 = scalar_select %p238, %s19, 1
        %p240 = scmp.lt.s32.totalorder %s237, 7
        %s241 = scalar_select %p240, %s237, 7
        %s242 = smul.addr %s239, 8
        %s243 = sadd.s32 %s241, %s242
        %s244 = smul.addr %s243, 8
        %s245 = scalar_lea.vmem %s0, %s244
        %s246 = smul.u32 8, %s20
      $region28: #{tpu_custom_call.1} parent=23 // pred_fallthru
        _
      // Predicated region
      $region29: #{tpu_custom_call.1} parent=23 // pred_check
        %p247 = pneg %p81
      $region30: #{tpu_custom_call.1} parent=23 // pred_check_branch
        %249 = sbr.rel (%p247) target = $region32
      $region31: #{tpu_custom_call.1} parent=23 // pred_region
        %s250 = smul.u32 8, %s20
        %p251 = scmp.lt.s32.totalorder %s19, 1
        %s252 = scalar_select %p251, %s19, 1
        %p253 = scmp.lt.s32.totalorder %s250, 7
        %s254 = scalar_select %p253, %s250, 7
        %s255 = smul.addr %s252, 8
        %s256 = sadd.s32 %s254, %s255
        %s257 = smul.addr %s256, 8
        %s258 = scalar_lea.vmem %s1, %s257
        %s259 = smul.u32 8, %s20
      $region32: #{tpu_custom_call.1} parent=23 // pred_fallthru
        _
      // Predicated region
      $region33: #{tpu_custom_call.1} parent=23 // pred_check
        %p260 = pneg %p107
      $region34: #{tpu_custom_call.1} parent=23 // pred_check_branch
        %262 = sbr.rel (%p260) target = $region36
      $region35: #{tpu_custom_call.1} parent=23 // pred_region
        %p263 = scmp.lt.s32.totalorder %s19, 1
        %s264 = scalar_select %p263, %s19, 1
        %s265 = smul.addr %s264, 4
        %s266 = scalar_lea.vmem %s2, %s265
      $region36: #{tpu_custom_call.1} parent=23 // pred_fallthru
        _
      // Predicated region
      $region37: #{tpu_custom_call.1} parent=23 // pred_check
        %p267 = pneg %p133
      $region38: #{tpu_custom_call.1} parent=23 // pred_check_branch
        %269 = sbr.rel (%p267) target = $region40
      $region39: #{tpu_custom_call.1} parent=23 // pred_region
        %p270 = scmp.lt.s32.totalorder %s19, 1
        %s271 = scalar_select %p270, %s19, 1
        %s272 = smul.addr %s271, 8
        %s273 = smul.addr %s272, 8
        %s274 = scalar_lea.vmem %s3, %s273
      $region40: #{tpu_custom_call.1} parent=23 // pred_fallthru
        _
    $region24: #{tpu_custom_call.1} parent=5 // pred_fallthru
      _
    %p275 = scmp.le.s32.totalorder 1, %s12
    %p276 = scmp.lt.s32.totalorder %s12, 33
    %p277 = pnand %p275, %p276
    %p278 = pneg %p277
    // Predicated region
    $region41: #{tpu_custom_call.1} parent=5 // pred_check
      _
    $region42: #{tpu_custom_call.1} parent=5 // pred_check_branch
      %280 = sbr.rel (%p277) target = $region44
    $region43: #{tpu_custom_call.1} parent=5 // pred_region
      %s281 = ssub.s32 %s12, 1
      %s282 = smul.u32 8, %s23
      %p283 = scmp.lt.s32.totalorder %s22, 1
      %s284 = scalar_select %p283, %s22, 1
      %p285 = scmp.lt.s32.totalorder %s282, 7
      %s286 = scalar_select %p285, %s282, 7
      %s287 = smul.addr %s284, 8
      %s288 = sadd.s32 %s286, %s287
      %s289 = smul.addr %s288, 8
      %s290 = scalar_lea.vmem %s0, %s289
      %p291 = pneg %p59
      %p292 = pneg %p56
      %s293 = smul.u32 8, %s23
      %p294 = scmp.lt.s32.totalorder %s22, 1
      %s295 = scalar_select %p294, %s22, 1
      %p296 = scmp.lt.s32.totalorder %s293, 7
      %s297 = scalar_select %p296, %s293, 7
      %s298 = smul.addr %s295, 8
      %s299 = sadd.s32 %s297, %s298
      %s300 = smul.addr %s299, 8
      %s301 = scalar_lea.vmem %s1, %s300
      %p302 = pneg %p87
      %p303 = pneg %p84
      %p304 = scmp.lt.s32.totalorder %s22, 1
      %s305 = scalar_select %p304, %s22, 1
      %s306 = smul.addr %s305, 4
      %s307 = scalar_lea.vmem %s2, %s306
      %p308 = pneg %p113
      %p309 = pneg %p110
      %p310 = scmp.lt.s32.totalorder %s22, 1
      %s311 = scalar_select %p310, %s22, 1
      %s312 = smul.addr %s311, 8
      %s313 = smul.addr %s312, 8
      %s314 = scalar_lea.vmem %s3, %s313
      %p315 = pneg %p139
      %p316 = pneg %p136
      %p317 = pneg %p160
      %p318 = pneg %p157
      %p319 = pneg %p181
      %p320 = pneg %p178
      %p321 = pneg %p209
      %p322 = pneg %p206
      %s323 = smul.u32 8, %s23
      %p324 = scmp.lt.s32.totalorder %s22, 1
      %s325 = scalar_select %p324, %s22, 1
      %p326 = scmp.lt.s32.totalorder %s323, 7
      %s327 = scalar_select %p326, %s323, 7
      %s328 = smul.addr %s325, 8
      %s329 = sadd.s32 %s327, %s328
      %s330 = smul.addr %s329, 8
      %s331 = scalar_lea.vmem %s6, %s330
      %s332 = smul.u32 8, %s23
      %p333 = scmp.lt.s32.totalorder %s22, 1
      %s334 = scalar_select %p333, %s22, 1
      %p335 = scmp.lt.s32.totalorder %s332, 7
      %s336 = scalar_select %p335, %s332, 7
      %s337 = smul.addr %s334, 8
      %s338 = sadd.s32 %s336, %s337
      %s339 = smul.addr %s338, 8
      %s340 = scalar_lea.vmem %s0, %s339
      %s341 = smul.u32 8, %s23
      %s342 = smul.u32 8, %s23
      %p343 = scmp.lt.s32.totalorder %s22, 1
      %s344 = scalar_select %p343, %s22, 1
      %p345 = scmp.lt.s32.totalorder %s342, 7
      %s346 = scalar_select %p345, %s342, 7
      %s347 = smul.addr %s344, 8
      %s348 = sadd.s32 %s346, %s347
      %s349 = smul.addr %s348, 8
      %s350 = scalar_lea.vmem %s1, %s349
      %s351 = smul.u32 8, %s23
      %p352 = scmp.lt.s32.totalorder %s22, 1
      %s353 = scalar_select %p352, %s22, 1
      %s354 = smul.addr %s353, 4
      %s355 = scalar_lea.vmem %s2, %s354
      %p356 = scmp.lt.s32.totalorder %s22, 1
      %s357 = scalar_select %p356, %s22, 1
      %s358 = smul.addr %s357, 8
      %s359 = smul.addr %s358, 8
      %s360 = scalar_lea.vmem %s3, %s359
      %s361 = smul.u32 8, %s23
      %p362 = scmp.lt.s32.totalorder %s22, 1
      %s363 = scalar_select %p362, %s22, 1
      %p364 = scmp.lt.s32.totalorder %s361, 7
      %s365 = scalar_select %p364, %s361, 7
      %s366 = smul.addr %s363, 8
      %s367 = sadd.s32 %s365, %s366
      %s368 = smul.addr %s367, 8
      %s369 = scalar_lea.vmem %s6, %s368
      %s370 = smul.u32 8, %s23
      %p372 = scmp.eq.s32.totalorder %s24, 0
      // Predicated region
      $region45: #{tpu_custom_call.1} parent=43 // pred_check
        %p373 = pneg %p372
      $region46: #{tpu_custom_call.1} parent=43 // pred_check_branch
        %375 = sbr.rel (%p373) target = $region48
      $region47: #{tpu_custom_call.1} parent=43 // pred_region
        %vm376 = vcmask 31744
        %377 = vst.msk [vmem:[#allocation2] sm:$0xff] %vm376, 0.0
        %378 = vst.msk [vmem:[#allocation2 + $0x8] sm:$0xff] %vm376, 0.0
        %379 = vst.msk [vmem:[#allocation2 + $0x10] sm:$0xff] %vm376, 0.0
        %380 = vst.msk [vmem:[#allocation2 + $0x18] sm:$0xff] %vm376, 0.0
        %381 = vst.msk [vmem:[#allocation2 + $0x20] sm:$0xff] %vm376, 0.0
        %382 = vst.msk [vmem:[#allocation2 + $0x28] sm:$0xff] %vm376, 0.0
        %383 = vst.msk [vmem:[#allocation2 + $0x30] sm:$0xff] %vm376, 0.0
        %384 = vst.msk [vmem:[#allocation2 + $0x38] sm:$0xff] %vm376, 0.0
        %vm385 = vcmask 7168
        %386 = vst.msk [vmem:[#allocation3] sm:$0xff] %vm385, 1.0
        %387 = vst.msk [vmem:[#allocation3 + $0x8] sm:$0xff] %vm385, 1.0
        %388 = vst.msk [vmem:[#allocation3 + $0x10] sm:$0xff] %vm385, 1.0
        %389 = vst.msk [vmem:[#allocation3 + $0x18] sm:$0xff] %vm385, 1.0
        %390 = vst.msk [vmem:[#allocation3 + $0x20] sm:$0xff] %vm385, 1.0
        %391 = vst.msk [vmem:[#allocation3 + $0x28] sm:$0xff] %vm385, 1.0
        %392 = vst.msk [vmem:[#allocation3 + $0x30] sm:$0xff] %vm385, 1.0
        %393 = vst.msk [vmem:[#allocation3 + $0x38] sm:$0xff] %vm385, 1.0
      $region48: #{tpu_custom_call.1} parent=43 // pred_fallthru
        _
      %s394 = scvt.s32.f32 %s24
      %s395 = smul.f32 %s394, 0.2
      %s396 = sadd.f32 %s395, 1.0
      %v397 = vld [vmem:[%s340] sm:$0xff]
      %v398 = vld [vmem:[%s340 + $0x8] sm:$0xff]
      %v399 = vld [vmem:[%s340 + $0x10] sm:$0xff]
      %v400 = vld [vmem:[%s340 + $0x18] sm:$0xff]
      %v401 = vld [vmem:[%s340 + $0x20] sm:$0xff]
      %v402 = vld [vmem:[%s340 + $0x28] sm:$0xff]
      %v403 = vld [vmem:[%s340 + $0x30] sm:$0xff]
      %v404 = vld [vmem:[%s340 + $0x38] sm:$0xff]
      %v405 = vld [vmem:[%s350] sm:$0xff]
      %v406 = vld [vmem:[%s350 + $0x8] sm:$0xff]
      %v407 = vld [vmem:[%s350 + $0x10] sm:$0xff]
      %v408 = vld [vmem:[%s350 + $0x18] sm:$0xff]
      %v409 = vld [vmem:[%s350 + $0x20] sm:$0xff]
      %v410 = vld [vmem:[%s350 + $0x28] sm:$0xff]
      %v411 = vld [vmem:[%s350 + $0x30] sm:$0xff]
      %v412 = vld [vmem:[%s350 + $0x38] sm:$0xff]
      %v413 = vstv %s396
      %v414 = vmul.f32 %v413, %v405
      %v415 = vmul.f32 %v413, %v406
      %v416 = vmul.f32 %v413, %v407
      %v417 = vmul.f32 %v413, %v408
      %v418 = vmul.f32 %v413, %v409
      %v419 = vmul.f32 %v413, %v410
      %v420 = vmul.f32 %v413, %v411
      %v421 = vmul.f32 %v413, %v412
      %v422 = vadd.f32 %v397, %v414
      %v423 = vadd.f32 %v398, %v415
      %v424 = vadd.f32 %v399, %v416
      %v425 = vadd.f32 %v400, %v417
      %v426 = vadd.f32 %v401, %v418
      %v427 = vadd.f32 %v402, %v419
      %v428 = vadd.f32 %v403, %v420
      %v429 = vadd.f32 %v404, %v421
      %v430 = vld [vmem:[%s355] sm:$0x7]
      %v431 = vld [vmem:[%s360] sm:$0xff]
      %v432 = vld [vmem:[%s360 + $0x8] sm:$0xff]
      %v433 = vld [vmem:[%s360 + $0x10] sm:$0xff]
      %v434 = vld [vmem:[%s360 + $0x18] sm:$0xff]
      %v435 = vld [vmem:[%s360 + $0x20] sm:$0xff]
      %v436 = vld [vmem:[%s360 + $0x28] sm:$0xff]
      %v437 = vld [vmem:[%s360 + $0x30] sm:$0xff]
      %v438 = vld [vmem:[%s360 + $0x38] sm:$0xff]
      %v439 = vmul.f32 %v422, %v422
      %v440 = vmul.f32 %v423, %v423
      %v441 = vmul.f32 %v424, %v424
      %v442 = vmul.f32 %v425, %v425
      %v443 = vmul.f32 %v426, %v426
      %v444 = vmul.f32 %v427, %v427
      %v445 = vmul.f32 %v428, %v428
      %v446 = vmul.f32 %v429, %v429
      %vm447 = vcmask 23552
      %v448 = vsel %vm447, %v439, 0.0
      %449 = vadd.xlane.f32.xlu0 %v448
      %v450 = vpop.xlane.xlu0 %449
      %v451 = vsel %vm447, %v440, 0.0
      %452 = vadd.xlane.f32.xlu0 %v451
      %v453 = vpop.xlane.xlu0 %452
      %v454 = vsel %vm447, %v441, 0.0
      %455 = vadd.xlane.f32.xlu0 %v454
      %v456 = vpop.xlane.xlu0 %455
      %v457 = vsel %vm447, %v442, 0.0
      %458 = vadd.xlane.f32.xlu0 %v457
      %v459 = vpop.xlane.xlu0 %458
      %v460 = vsel %vm447, %v443, 0.0
      %461 = vadd.xlane.f32.xlu0 %v460
      %v462 = vpop.xlane.xlu0 %461
      %v463 = vsel %vm447, %v444, 0.0
      %464 = vadd.xlane.f32.xlu0 %v463
      %v465 = vpop.xlane.xlu0 %464
      %v466 = vsel %vm447, %v445, 0.0
      %467 = vadd.xlane.f32.xlu0 %v466
      %v468 = vpop.xlane.xlu0 %467
      %v469 = vsel %vm447, %v446, 0.0
      %470 = vadd.xlane.f32.xlu0 %v469
      %v471 = vpop.xlane.xlu0 %470
      %v472 = vmul.f32 %v430, %v430
      %vm473 = vcmask 518144
      %v474 = vsel %vm473, %v472, 0.0
      %v475 = vrot.slane %v474, 4
      %v476 = vadd.f32 %v474, %v475
      %v477 = vrot.slane %v476, 2
      %v478 = vadd.f32 %v476, %v477
      %v479 = vrot.slane %v478, 1
      %v480 = vadd.f32 %v478, %v479
      %v482 = vsel %vm447, %v422, 0
      %v485 = vsel %vm447, %v423, 0
      %v488 = vsel %vm447, %v424, 0
      %v491 = vsel %vm447, %v425, 0
      %v494 = vsel %vm447, %v426, 0
      %v497 = vsel %vm447, %v427, 0
      %v500 = vsel %vm447, %v428, 0
      %v503 = vsel %vm447, %v429, 0
      %vm505 = vcmask 1042432
      %v507 = vsel %vm505, %v430, 0
      %509 = vmatprep.subr.mxu0 0.0
      %510 = vmatpush1.msra.mxu0 0.0
      %511 = vmatprep.subr.mxu0 0.0
      %512 = vmatpush1.msra.mxu0 0.0
      %513 = vmatprep.subr.mxu0 0.0
      %514 = vmatpush1.msra.mxu0 0.0
      %515 = vmatprep.subr.mxu0 0.0
      %516 = vmatpush1.msra.mxu0 0.0
      %517 = vmatprep.subr.mxu0 0.0
      %518 = vmatpush1.msra.mxu0 0.0
      %519 = vmatprep.subr.mxu0 0.0
      %520 = vmatpush1.msra.mxu0 0.0
      %521 = vmatprep.subr.mxu0 0.0
      %522 = vmatpush1.msra.mxu0 0.0
      %523 = vmatprep.subr.mxu0 0.0
      %524 = vmatpush1.msra.mxu0 0.0
      %525 = vmatprep.subr.mxu0 0.0
      %526 = vmatpush1.msra.mxu0 0.0
      %527 = vmatprep.subr.mxu0 0.0
      %528 = vmatpush1.msra.mxu0 0.0
      %529 = vmatprep.subr.mxu0 0.0
      %530 = vmatpush1.msra.mxu0 0.0
      %531 = vmatprep.subr.mxu0 0.0
      %532 = vmatpush1.msra.mxu0 0.0
      %533 = vmatprep.subr.mxu0 0.0
      %534 = vmatpush1.msra.mxu0 0.0
      %535 = vmatprep.subr.mxu0 0.0
      %536 = vmatpush1.msra.mxu0 0.0
      %537 = vmatprep.subr.mxu0 0.0
      %538 = vmatpush1.msra.mxu0 0.0
      %539 = vmatprep.subr.mxu0 0.0
      %540 = vmatpush1.msra.mxu0 %v507
      %541 = vmatprep.subr.mxu0 0.0
      %542 = vmatpush2.msra.mxu0 0.0
      %543 = vmatprep.subr.mxu0 0.0
      %544 = vmatpush2.msra.mxu0 0.0
      %545 = vmatprep.subr.mxu0 0.0
      %546 = vmatpush2.msra.mxu0 0.0
      %547 = vmatprep.subr.mxu0 0.0
      %548 = vmatpush2.msra.mxu0 0.0
      %549 = vmatprep.subr.mxu0 0.0
      %550 = vmatpush2.msra.mxu0 0.0
      %551 = vmatprep.subr.mxu0 0.0
      %552 = vmatpush2.msra.mxu0 0.0
      %553 = vmatprep.subr.mxu0 0.0
      %554 = vmatpush2.msra.mxu0 0.0
      %555 = vmatprep.subr.mxu0 0.0
      %556 = vmatpush2.msra.mxu0 0.0
      %557 = vmatprep.subr.mxu0 0.0
      %558 = vmatpush2.msra.mxu0 0.0
      %559 = vmatprep.subr.mxu0 0.0
      %560 = vmatpush2.msra.mxu0 0.0
      %561 = vmatprep.subr.mxu0 0.0
      %562 = vmatpush2.msra.mxu0 0.0
      %563 = vmatprep.subr.mxu0 0.0
      %564 = vmatpush2.msra.mxu0 0.0
      %565 = vmatprep.subr.mxu0 0.0
      %566 = vmatpush2.msra.mxu0 0.0
      %567 = vmatprep.subr.mxu0 0.0
      %568 = vmatpush2.msra.mxu0 0.0
      %569 = vmatprep.subr.mxu0 0.0
      %570 = vmatpush2.msra.mxu0 0.0
      %571 = vmatprep.subr.mxu0 0.0
      %572 = vmatpush2.msra.mxu0 0.0
      %573 = vmatprep.mubr.f32.mxu0 0.0
      %574 = vmatmul.mubr.f32.gmra.mxu0 %v482
      %v575 = vpop.f32.mrf.mxu0
      %v576 = vadd.f32 0.0, %v575
      %v577 = vpop.f32.mrf.mxu0
      %578 = vmatprep.mubr.f32.mxu0 0.0
      %579 = vmatmul.mubr.f32.gmra.mxu0 %v485
      %v580 = vpop.f32.mrf.mxu0
      %v581 = vadd.f32 0.0, %v580
      %v582 = vpop.f32.mrf.mxu0
      %583 = vmatprep.mubr.f32.mxu0 0.0
      %584 = vmatmul.mubr.f32.gmra.mxu0 %v488
      %v585 = vpop.f32.mrf.mxu0
      %v586 = vadd.f32 0.0, %v585
      %v587 = vpop.f32.mrf.mxu0
      %588 = vmatprep.mubr.f32.mxu0 0.0
      %589 = vmatmul.mubr.f32.gmra.mxu0 %v491
      %v590 = vpop.f32.mrf.mxu0
      %v591 = vadd.f32 0.0, %v590
      %v592 = vpop.f32.mrf.mxu0
      %593 = vmatprep.mubr.f32.mxu0 0.0
      %594 = vmatmul.mubr.f32.gmra.mxu0 %v494
      %v595 = vpop.f32.mrf.mxu0
      %v596 = vadd.f32 0.0, %v595
      %v597 = vpop.f32.mrf.mxu0
      %598 = vmatprep.mubr.f32.mxu0 0.0
      %599 = vmatmul.mubr.f32.gmra.mxu0 %v497
      %v600 = vpop.f32.mrf.mxu0
      %v601 = vadd.f32 0.0, %v600
      %v602 = vpop.f32.mrf.mxu0
      %603 = vmatprep.mubr.f32.mxu0 0.0
      %604 = vmatmul.mubr.f32.gmra.mxu0 %v500
      %v605 = vpop.f32.mrf.mxu0
      %v606 = vadd.f32 0.0, %v605
      %v607 = vpop.f32.mrf.mxu0
      %608 = vmatprep.mubr.f32.mxu0 0.0
      %609 = vmatmul.mubr.f32.gmra.mxu0 %v503
      %v610 = vpop.f32.mrf.mxu0
      %v611 = vadd.f32 0.0, %v610
      %v612 = vpop.f32.mrf.mxu0
      %613 = vdwg.mxu0
      %v614 = vadd.f32 %v450, %v480
      %v615 = vadd.f32 %v453, %v480
      %v616 = vadd.f32 %v456, %v480
      %v617 = vadd.f32 %v459, %v480
      %v618 = vadd.f32 %v462, %v480
      %v619 = vadd.f32 %v465, %v480
      %v620 = vadd.f32 %v468, %v480
      %v621 = vadd.f32 %v471, %v480
      %v622 = vmul.f32 %v576, 2.0
      %v623 = vmul.f32 %v581, 2.0
      %v624 = vmul.f32 %v586, 2.0
      %v625 = vmul.f32 %v591, 2.0
      %v626 = vmul.f32 %v596, 2.0
      %v627 = vmul.f32 %v601, 2.0
      %v628 = vmul.f32 %v606, 2.0
      %v629 = vmul.f32 %v611, 2.0
      %v630 = vsub.f32 %v614, %v622
      %v631 = vsub.f32 %v615, %v623
      %v632 = vsub.f32 %v616, %v624
      %v633 = vsub.f32 %v617, %v625
      %v634 = vsub.f32 %v618, %v626
      %v635 = vsub.f32 %v619, %v627
      %v636 = vsub.f32 %v620, %v628
      %v637 = vsub.f32 %v621, %v629
      %v638 = vmax.f32 %v630, 0.0
      %v639 = vmax.f32 %v631, 0.0
      %v640 = vmax.f32 %v632, 0.0
      %v641 = vmax.f32 %v633, 0.0
      %v642 = vmax.f32 %v634, 0.0
      %v643 = vmax.f32 %v635, 0.0
      %v644 = vmax.f32 %v636, 0.0
      %v645 = vmax.f32 %v637, 0.0
      %v646 = vadd.f32 %v638, 1e-06
      %v647 = vadd.f32 %v639, 1e-06
      %v648 = vadd.f32 %v640, 1e-06
      %v649 = vadd.f32 %v641, 1e-06
      %v650 = vadd.f32 %v642, 1e-06
      %v651 = vadd.f32 %v643, 1e-06
      %v652 = vadd.f32 %v644, 1e-06
      %v653 = vadd.f32 %v645, 1e-06
      %v654 = vrcp.pop %v646
      %v655 = vrcp.pop %v647
      %v656 = vrcp.pop %v648
      %v657 = vrcp.pop %v649
      %v658 = vrcp.pop %v650
      %v659 = vrcp.pop %v651
      %v660 = vrcp.pop %v652
      %v661 = vrcp.pop %v653
      %vm662 = vcmask 523264
      %v663 = vsel %vm662, %v654, 0.0
      %664 = vadd.xlane.f32.xlu0 %v663
      %v665 = vpop.xlane.xlu0 %664
      %v666 = vsel %vm662, %v655, 0.0
      %667 = vadd.xlane.f32.xlu0 %v666
      %v668 = vpop.xlane.xlu0 %667
      %v669 = vsel %vm662, %v656, 0.0
      %670 = vadd.xlane.f32.xlu0 %v669
      %v671 = vpop.xlane.xlu0 %670
      %v672 = vsel %vm662, %v657, 0.0
      %673 = vadd.xlane.f32.xlu0 %v672
      %v674 = vpop.xlane.xlu0 %673
      %v675 = vsel %vm662, %v658, 0.0
      %676 = vadd.xlane.f32.xlu0 %v675
      %v677 = vpop.xlane.xlu0 %676
      %v678 = vsel %vm662, %v659, 0.0
      %679 = vadd.xlane.f32.xlu0 %v678
      %v680 = vpop.xlane.xlu0 %679
      %v681 = vsel %vm662, %v660, 0.0
      %682 = vadd.xlane.f32.xlu0 %v681
      %v683 = vpop.xlane.xlu0 %682
      %v684 = vsel %vm662, %v661, 0.0
      %685 = vadd.xlane.f32.xlu0 %v684
      %v686 = vpop.xlane.xlu0 %685
      %v687 = vrcp.pop %v665
      %v688 = vrcp.pop %v668
      %v689 = vrcp.pop %v671
      %v690 = vrcp.pop %v674
      %v691 = vrcp.pop %v677
      %v692 = vrcp.pop %v680
      %v693 = vrcp.pop %v683
      %v694 = vrcp.pop %v686
      %v695 = vmul.f32 %v654, %v687
      %v696 = vmul.f32 %v655, %v688
      %v697 = vmul.f32 %v656, %v689
      %v698 = vmul.f32 %v657, %v690
      %v699 = vmul.f32 %v658, %v691
      %v700 = vmul.f32 %v659, %v692
      %v701 = vmul.f32 %v660, %v693
      %v702 = vmul.f32 %v661, %v694
      %v704 = vsel %vm662, %v695, 0
      %v707 = vsel %vm662, %v696, 0
      %v710 = vsel %vm662, %v697, 0
      %v713 = vsel %vm662, %v698, 0
      %v716 = vsel %vm662, %v699, 0
      %v719 = vsel %vm662, %v700, 0
      %v722 = vsel %vm662, %v701, 0
      %v725 = vsel %vm662, %v702, 0
      %727 = vmatprep.subr.mxu0 0.0
      %728 = vmatpush1.msra.mxu0 0.0
      %729 = vmatprep.subr.mxu0 0.0
      %730 = vmatpush1.msra.mxu0 0.0
      %731 = vmatprep.subr.mxu0 0.0
      %732 = vmatpush1.msra.mxu0 0.0
      %733 = vmatprep.subr.mxu0 0.0
      %734 = vmatpush1.msra.mxu0 0.0
      %735 = vmatprep.subr.mxu0 0.0
      %736 = vmatpush1.msra.mxu0 0.0
      %737 = vmatprep.subr.mxu0 0.0
      %738 = vmatpush1.msra.mxu0 0.0
      %739 = vmatprep.subr.mxu0 0.0
      %740 = vmatpush1.msra.mxu0 0.0
      %741 = vmatprep.subr.mxu0 0.0
      %742 = vmatpush1.msra.mxu0 0.0
      %743 = vmatprep.subr.mxu0 0.0
      %744 = vmatpush1.msra.mxu0 %v438
      %745 = vmatprep.subr.mxu0 0.0
      %746 = vmatpush1.msra.mxu0 %v437
      %747 = vmatprep.subr.mxu0 0.0
      %748 = vmatpush1.msra.mxu0 %v436
      %749 = vmatprep.subr.mxu0 0.0
      %750 = vmatpush1.msra.mxu0 %v435
      %751 = vmatprep.subr.mxu0 0.0
      %752 = vmatpush1.msra.mxu0 %v434
      %753 = vmatprep.subr.mxu0 0.0
      %754 = vmatpush1.msra.mxu0 %v433
      %755 = vmatprep.subr.mxu0 0.0
      %756 = vmatpush1.msra.mxu0 %v432
      %757 = vmatprep.subr.mxu0 0.0
      %758 = vmatpush1.msra.mxu0 %v431
      %759 = vmatprep.subr.mxu0 0.0
      %760 = vmatpush2.msra.mxu0 0.0
      %761 = vmatprep.subr.mxu0 0.0
      %762 = vmatpush2.msra.mxu0 0.0
      %763 = vmatprep.subr.mxu0 0.0
      %764 = vmatpush2.msra.mxu0 0.0
      %765 = vmatprep.subr.mxu0 0.0
      %766 = vmatpush2.msra.mxu0 0.0
      %767 = vmatprep.subr.mxu0 0.0
      %768 = vmatpush2.msra.mxu0 0.0
      %769 = vmatprep.subr.mxu0 0.0
      %770 = vmatpush2.msra.mxu0 0.0
      %771 = vmatprep.subr.mxu0 0.0
      %772 = vmatpush2.msra.mxu0 0.0
      %773 = vmatprep.subr.mxu0 0.0
      %774 = vmatpush2.msra.mxu0 0.0
      %775 = vmatprep.subr.mxu0 0.0
      %776 = vmatpush2.msra.mxu0 0.0
      %777 = vmatprep.subr.mxu0 0.0
      %778 = vmatpush2.msra.mxu0 0.0
      %779 = vmatprep.subr.mxu0 0.0
      %780 = vmatpush2.msra.mxu0 0.0
      %781 = vmatprep.subr.mxu0 0.0
      %782 = vmatpush2.msra.mxu0 0.0
      %783 = vmatprep.subr.mxu0 0.0
      %784 = vmatpush2.msra.mxu0 0.0
      %785 = vmatprep.subr.mxu0 0.0
      %786 = vmatpush2.msra.mxu0 0.0
      %787 = vmatprep.subr.mxu0 0.0
      %788 = vmatpush2.msra.mxu0 0.0
      %789 = vmatprep.subr.mxu0 0.0
      %790 = vmatpush2.msra.mxu0 0.0
      %791 = vmatprep.mubr.f32.mxu0 0.0
      %792 = vmatmul.mubr.f32.gmra.mxu0 %v704
      %v793 = vpop.f32.mrf.mxu0
      %v794 = vadd.f32 0.0, %v793
      %v795 = vpop.f32.mrf.mxu0
      %796 = vmatprep.mubr.f32.mxu0 0.0
      %797 = vmatmul.mubr.f32.gmra.mxu0 %v707
      %v798 = vpop.f32.mrf.mxu0
      %v799 = vadd.f32 0.0, %v798
      %v800 = vpop.f32.mrf.mxu0
      %801 = vmatprep.mubr.f32.mxu0 0.0
      %802 = vmatmul.mubr.f32.gmra.mxu0 %v710
      %v803 = vpop.f32.mrf.mxu0
      %v804 = vadd.f32 0.0, %v803
      %v805 = vpop.f32.mrf.mxu0
      %806 = vmatprep.mubr.f32.mxu0 0.0
      %807 = vmatmul.mubr.f32.gmra.mxu0 %v713
      %v808 = vpop.f32.mrf.mxu0
      %v809 = vadd.f32 0.0, %v808
      %v810 = vpop.f32.mrf.mxu0
      %811 = vmatprep.mubr.f32.mxu0 0.0
      %812 = vmatmul.mubr.f32.gmra.mxu0 %v716
      %v813 = vpop.f32.mrf.mxu0
      %v814 = vadd.f32 0.0, %v813
      %v815 = vpop.f32.mrf.mxu0
      %816 = vmatprep.mubr.f32.mxu0 0.0
      %817 = vmatmul.mubr.f32.gmra.mxu0 %v719
      %v818 = vpop.f32.mrf.mxu0
      %v819 = vadd.f32 0.0, %v818
      %v820 = vpop.f32.mrf.mxu0
      %821 = vmatprep.mubr.f32.mxu0 0.0
      %822 = vmatmul.mubr.f32.gmra.mxu0 %v722
      %v823 = vpop.f32.mrf.mxu0
      %v824 = vadd.f32 0.0, %v823
      %v825 = vpop.f32.mrf.mxu0
      %826 = vmatprep.mubr.f32.mxu0 0.0
      %827 = vmatmul.mubr.f32.gmra.mxu0 %v725
      %v828 = vpop.f32.mrf.mxu0
      %v829 = vadd.f32 0.0, %v828
      %v830 = vpop.f32.mrf.mxu0
      %831 = vdwg.mxu0
      %v832 = vmul.f32 %v422, 3.1415927
      %v833 = vmul.f32 %v423, 3.1415927
      %v834 = vmul.f32 %v424, 3.1415927
      %v835 = vmul.f32 %v425, 3.1415927
      %v836 = vmul.f32 %v426, 3.1415927
      %v837 = vmul.f32 %v427, 3.1415927
      %v838 = vmul.f32 %v428, 3.1415927
      %v839 = vmul.f32 %v429, 3.1415927
      %v840 = vmul.f32 %v422, 6.2831855
      %v841 = vmul.f32 %v423, 6.2831855
      %v842 = vmul.f32 %v424, 6.2831855
      %v843 = vmul.f32 %v425, 6.2831855
      %v844 = vmul.f32 %v426, 6.2831855
      %v845 = vmul.f32 %v427, 6.2831855
      %v846 = vmul.f32 %v428, 6.2831855
      %v847 = vmul.f32 %v429, 6.2831855
      %v848 = vmul.f32 %v422, 12.566371
      %v849 = vmul.f32 %v423, 12.566371
      %v850 = vmul.f32 %v424, 12.566371
      %v851 = vmul.f32 %v425, 12.566371
      %v852 = vmul.f32 %v426, 12.566371
      %v853 = vmul.f32 %v427, 12.566371
      %v854 = vmul.f32 %v428, 12.566371
      %v855 = vmul.f32 %v429, 12.566371
      %v856 = vmul.f32 %v422, 25.132742
      %v857 = vmul.f32 %v423, 25.132742
      %v858 = vmul.f32 %v424, 25.132742
      %v859 = vmul.f32 %v425, 25.132742
      %v860 = vmul.f32 %v426, 25.132742
      %v861 = vmul.f32 %v427, 25.132742
      %v862 = vmul.f32 %v428, 25.132742
      %v863 = vmul.f32 %v429, 25.132742
      %872 = vrot.lane.b32.xlu0 %v840, 3
      %v873 = vpop.permute.xlu0 %872
      %874 = vrot.lane.b32.xlu0 %v841, 3
      %v875 = vpop.permute.xlu0 %874
      %876 = vrot.lane.b32.xlu0 %v842, 3
      %v877 = vpop.permute.xlu0 %876
      %878 = vrot.lane.b32.xlu0 %v843, 3
      %v879 = vpop.permute.xlu0 %878
      %880 = vrot.lane.b32.xlu0 %v844, 3
      %v881 = vpop.permute.xlu0 %880
      %882 = vrot.lane.b32.xlu0 %v845, 3
      %v883 = vpop.permute.xlu0 %882
      %884 = vrot.lane.b32.xlu0 %v846, 3
      %v885 = vpop.permute.xlu0 %884
      %886 = vrot.lane.b32.xlu0 %v847, 3
      %v887 = vpop.permute.xlu0 %886
      %904 = vrot.lane.b32.xlu0 %v848, 6
      %v905 = vpop.permute.xlu0 %904
      %906 = vrot.lane.b32.xlu0 %v849, 6
      %v907 = vpop.permute.xlu0 %906
      %908 = vrot.lane.b32.xlu0 %v850, 6
      %v909 = vpop.permute.xlu0 %908
      %910 = vrot.lane.b32.xlu0 %v851, 6
      %v911 = vpop.permute.xlu0 %910
      %912 = vrot.lane.b32.xlu0 %v852, 6
      %v913 = vpop.permute.xlu0 %912
      %914 = vrot.lane.b32.xlu0 %v853, 6
      %v915 = vpop.permute.xlu0 %914
      %916 = vrot.lane.b32.xlu0 %v854, 6
      %v917 = vpop.permute.xlu0 %916
      %918 = vrot.lane.b32.xlu0 %v855, 6
      %v919 = vpop.permute.xlu0 %918
      %936 = vrot.lane.b32.xlu0 %v856, 9
      %v937 = vpop.permute.xlu0 %936
      %938 = vrot.lane.b32.xlu0 %v857, 9
      %v939 = vpop.permute.xlu0 %938
      %940 = vrot.lane.b32.xlu0 %v858, 9
      %v941 = vpop.permute.xlu0 %940
      %942 = vrot.lane.b32.xlu0 %v859, 9
      %v943 = vpop.permute.xlu0 %942
      %944 = vrot.lane.b32.xlu0 %v860, 9
      %v945 = vpop.permute.xlu0 %944
      %946 = vrot.lane.b32.xlu0 %v861, 9
      %v947 = vpop.permute.xlu0 %946
      %948 = vrot.lane.b32.xlu0 %v862, 9
      %v949 = vpop.permute.xlu0 %948
      %950 = vrot.lane.b32.xlu0 %v863, 9
      %v951 = vpop.permute.xlu0 %950
      %v960 = vsel %vm447, %v832, %v873
      %v961 = vsel %vm447, %v833, %v875
      %v962 = vsel %vm447, %v834, %v877
      %v963 = vsel %vm447, %v835, %v879
      %v964 = vsel %vm447, %v836, %v881
      %v965 = vsel %vm447, %v837, %v883
      %v966 = vsel %vm447, %v838, %v885
      %v967 = vsel %vm447, %v839, %v887
      %vm968 = vcmask 48128
      %v969 = vsel %vm968, %v960, %v905
      %v970 = vsel %vm968, %v961, %v907
      %v971 = vsel %vm968, %v962, %v909
      %v972 = vsel %vm968, %v963, %v911
      %v973 = vsel %vm968, %v964, %v913
      %v974 = vsel %vm968, %v965, %v915
      %v975 = vsel %vm968, %v966, %v917
      %v976 = vsel %vm968, %v967, %v919
      %vm977 = vcmask 72704
      %v978 = vsel %vm977, %v969, %v937
      %v979 = vsel %vm977, %v970, %v939
      %v980 = vsel %vm977, %v971, %v941
      %v981 = vsel %vm977, %v972, %v943
      %v982 = vsel %vm977, %v973, %v945
      %v983 = vsel %vm977, %v974, %v947
      %v984 = vsel %vm977, %v975, %v949
      %v985 = vsel %vm977, %v976, %v951
      %v986 = vand.u32 2147483647, %v978
      %vm987 = vcmp.le.f32.partialorder %v986, 0.7853982
      %vm988 = vcmp.lt.s32.totalorder %v978, 0
      %v989 = vand.u32 %v978, 2139095040
      %v990 = vshrl.u32 %v989, 23
      %v991 = vsub.s32 %v990, 127
      %v992 = vand.u32 2147483647, %v978
      %v993 = vand.u32 %v992, 8388607
      %v994 = vor.u32 %v993, 8388608
      %v995 = vsub.s32 0, %v994
      %v996 = vadd.s32 %v991, 1
      %vm997 = vcmp.gt.s32.totalorder %v996, 0
      %v998 = vsel %vm997, %v996, 0
      %v999 = vshrl.u32 %v998, 5
      %v1000 = vand.u32 %v998, 31
      %v1001 = vsub.s32 32, %v1000
      %v1002 = vshrl.u32 683565275, %v1001
      %v1003 = vshll.u32 683565275, %v1000
      %v1004 = vshrl.u32 2475754826, %v1001
      %v1005 = vor.u32 %v1003, %v1004
      %v1006 = vshll.u32 2475754826, %v1000
      %v1007 = vshrl.u32 2131351028, %v1001
      %v1008 = vor.u32 %v1006, %v1007
      %v1009 = vshll.u32 2131351028, %v1000
      %v1010 = vshrl.u32 2102212464, %v1001
      %v1011 = vor.u32 %v1009, %v1010
      %v1012 = vshll.u32 2102212464, %v1000
      %v1013 = vshrl.u32 920167782, %v1001
      %v1014 = vor.u32 %v1012, %v1013
      %v1015 = vshll.u32 920167782, %v1000
      %v1016 = vshrl.u32 1326507024, %v1001
      %v1017 = vor.u32 %v1015, %v1016
      %vm1018 = vcmp.lt.s32.totalorder %v999, 1
      %vm1019 = vcmp.lt.s32.totalorder %v999, 2
      %vm1020 = vcmp.lt.s32.totalorder %v999, 3
      %vm1021 = vcmp.lt.s32.totalorder %v999, 4
      %v1022 = vsel %vm1018, %v1002, %v1005
      %v1023 = vsel %vm1021, %v1011, 2102212464
      %v1024 = vsel %vm1020, %v1008, %v1023
      %v1025 = vsel %vm1019, %v1022, %v1024
      %v1026 = vsel %vm1018, %v1005, %v1008
      %v1027 = vsel %vm1021, %v1014, 920167782
      %v1028 = vsel %vm1020, %v1011, %v1027
      %v1029 = vsel %vm1019, %v1026, %v1028
      %v1030 = vsel %vm1018, %v1008, %v1011
      %v1031 = vsel %vm1021, %v1017, 1326507024
      %v1032 = vsel %vm1020, %v1014, %v1031
      %v1033 = vsel %vm1019, %v1030, %v1032
      %v1034 = vshll.u32 %v994, 8
      %v1035 = vmul.u32.u64.compose %v1034, %v1033
      %v1036 = vextract.low.u32 %v1035
      %v1037 = vextract.high.u32 %v1035
      %v1038 = vmul.u32.u64.compose %v1034, %v1029
      %v1039 = vextract.low.u32 %v1038
      %v1040 = vextract.high.u32 %v1038
      %v1041 = vmul.u32 %v1034, %v1025
      %v1042 = vadd.s32 %v1037, %v1039
      %vm1043 = vc.u32 %v1037, %v1039
      %v1044 = vadd.s32 %v1040, 1
      %v1045 = vsel %vm1043, %v1044, %v1040
      %v1046 = vadd.s32 %v1041, %v1045
      %v1047 = vadd.s32 %v1046, 536870912
      %v1048 = vshrl.u32 %v1047, 30
      %v1049 = vshll.u32 %v1048, 30
      %v1050 = vsub.s32 %v1046, %v1049
      %vm1051 = vcmp.lt.s32.totalorder %v1050, 0
      %v1052 = vsub.s32 0, %v1050
      %v1053 = vsel %vm1051, %v1052, %v1050
      %v1054 = vclz %v1053
      %v1055 = vsub.s32 %v1054, 2
      %vm1056 = vcmp.gt.s32.totalorder 0, %v1055
      %v1057 = vsel %vm1056, 0, %v1055
      %v1058 = vsub.s32 32, %v1057
      %v1059 = vshll.u32 %v1050, %v1057
      %v1060 = vshrl.u32 %v1042, %v1058
      %v1061 = vor.u32 %v1059, %v1060
      %v1062 = vsub.s32 4294967266, %v1057
      %v1063 = vadd.s32 %v1062, 127
      %v1064 = vshll.u32 %v1063, 23
      %v1065 = vor.u32 4788187, %v1064
      %v1066 = vand.u32 2147483647, %v1065
      %v1068 = vcvt.s32.f32 %v1061
      %v1069 = vmul.f32 %v1068, %v1066
      %v1070 = vxor.u32 %v1069, 2147483648
      %v1071 = vsel %vm988, %v1070, %v1069
      %v1072 = vsub.s32 4, %v1048
      %v1073 = vsel %vm988, %v1072, %v1048
      %v1074 = vsel %vm987, %v978, %v1071
      %v1075 = vsel %vm987, 0, %v1073
      %v1076 = vcosq.f32.pop %v1074
      %v1077 = vsinq.f32.pop %v1074
      %vm1078 = vweird.f32 %v978
      %v1079 = vadd.s32 %v1075, 3
      %v1080 = vand.u32 %v1079, 3
      %vm1081 = vcmp.lt.s32.totalorder %v1080, 2
      %vm1082 = vcmp.eq.s32.totalorder %v1080, 0
      %v1083 = vxor.u32 %v1077, 2147483648
      %v1084 = vsel %vm1082, %v1076, %v1083
      %vm1085 = vcmp.eq.s32.totalorder %v1080, 2
      %v1086 = vxor.u32 %v1076, 2147483648
      %v1087 = vsel %vm1085, %v1086, %v1077
      %v1088 = vsel %vm1081, %v1084, %v1087
      %v1089 = vsel %vm1078, nan, %v1088
      %v1090 = vand.u32 2147483647, %v979
      %vm1091 = vcmp.le.f32.partialorder %v1090, 0.7853982
      %vm1092 = vcmp.lt.s32.totalorder %v979, 0
      %v1093 = vand.u32 %v979, 2139095040
      %v1094 = vshrl.u32 %v1093, 23
      %v1095 = vsub.s32 %v1094, 127
      %v1096 = vand.u32 2147483647, %v979
      %v1097 = vand.u32 %v1096, 8388607
      %v1098 = vor.u32 %v1097, 8388608
      %v1099 = vsub.s32 0, %v1098
      %v1100 = vadd.s32 %v1095, 1
      %vm1101 = vcmp.gt.s32.totalorder %v1100, 0
      %v1102 = vsel %vm1101, %v1100, 0
      %v1103 = vshrl.u32 %v1102, 5
      %v1104 = vand.u32 %v1102, 31
      %v1105 = vsub.s32 32, %v1104
      %v1106 = vshrl.u32 683565275, %v1105
      %v1107 = vshll.u32 683565275, %v1104
      %v1108 = vshrl.u32 2475754826, %v1105
      %v1109 = vor.u32 %v1107, %v1108
      %v1110 = vshll.u32 2475754826, %v1104
      %v1111 = vshrl.u32 2131351028, %v1105
      %v1112 = vor.u32 %v1110, %v1111
      %v1113 = vshll.u32 2131351028, %v1104
      %v1114 = vshrl.u32 2102212464, %v1105
      %v1115 = vor.u32 %v1113, %v1114
      %v1116 = vshll.u32 2102212464, %v1104
      %v1117 = vshrl.u32 920167782, %v1105
      %v1118 = vor.u32 %v1116, %v1117
      %v1119 = vshll.u32 920167782, %v1104
      %v1120 = vshrl.u32 1326507024, %v1105
      %v1121 = vor.u32 %v1119, %v1120
      %vm1122 = vcmp.lt.s32.totalorder %v1103, 1
      %vm1123 = vcmp.lt.s32.totalorder %v1103, 2
      %vm1124 = vcmp.lt.s32.totalorder %v1103, 3
      %vm1125 = vcmp.lt.s32.totalorder %v1103, 4
      %v1126 = vsel %vm1122, %v1106, %v1109
      %v1127 = vsel %vm1125, %v1115, 2102212464
      %v1128 = vsel %vm1124, %v1112, %v1127
      %v1129 = vsel %vm1123, %v1126, %v1128
      %v1130 = vsel %vm1122, %v1109, %v1112
      %v1131 = vsel %vm1125, %v1118, 920167782
      %v1132 = vsel %vm1124, %v1115, %v1131
      %v1133 = vsel %vm1123, %v1130, %v1132
      %v1134 = vsel %vm1122, %v1112, %v1115
      %v1135 = vsel %vm1125, %v1121, 1326507024
      %v1136 = vsel %vm1124, %v1118, %v1135
      %v1137 = vsel %vm1123, %v1134, %v1136
      %v1138 = vshll.u32 %v1098, 8
      %v1139 = vmul.u32.u64.compose %v1138, %v1137
      %v1140 = vextract.low.u32 %v1139
      %v1141 = vextract.high.u32 %v1139
      %v1142 = vmul.u32.u64.compose %v1138, %v1133
      %v1143 = vextract.low.u32 %v1142
      %v1144 = vextract.high.u32 %v1142
      %v1145 = vmul.u32 %v1138, %v1129
      %v1146 = vadd.s32 %v1141, %v1143
      %vm1147 = vc.u32 %v1141, %v1143
      %v1148 = vadd.s32 %v1144, 1
      %v1149 = vsel %vm1147, %v1148, %v1144
      %v1150 = vadd.s32 %v1145, %v1149
      %v1151 = vadd.s32 %v1150, 536870912
      %v1152 = vshrl.u32 %v1151, 30
      %v1153 = vshll.u32 %v1152, 30
      %v1154 = vsub.s32 %v1150, %v1153
      %vm1155 = vcmp.lt.s32.totalorder %v1154, 0
      %v1156 = vsub.s32 0, %v1154
      %v1157 = vsel %vm1155, %v1156, %v1154
      %v1158 = vclz %v1157
      %v1159 = vsub.s32 %v1158, 2
      %vm1160 = vcmp.gt.s32.totalorder 0, %v1159
      %v1161 = vsel %vm1160, 0, %v1159
      %v1162 = vsub.s32 32, %v1161
      %v1163 = vshll.u32 %v1154, %v1161
      %v1164 = vshrl.u32 %v1146, %v1162
      %v1165 = vor.u32 %v1163, %v1164
      %v1166 = vsub.s32 4294967266, %v1161
      %v1167 = vadd.s32 %v1166, 127
      %v1168 = vshll.u32 %v1167, 23
      %v1169 = vor.u32 4788187, %v1168
      %v1170 = vand.u32 2147483647, %v1169
      %v1172 = vcvt.s32.f32 %v1165
      %v1173 = vmul.f32 %v1172, %v1170
      %v1174 = vxor.u32 %v1173, 2147483648
      %v1175 = vsel %vm1092, %v1174, %v1173
      %v1176 = vsub.s32 4, %v1152
      %v1177 = vsel %vm1092, %v1176, %v1152
      %v1178 = vsel %vm1091, %v979, %v1175
      %v1179 = vsel %vm1091, 0, %v1177
      %v1180 = vcosq.f32.pop %v1178
      %v1181 = vsinq.f32.pop %v1178
      %vm1182 = vweird.f32 %v979
      %v1183 = vadd.s32 %v1179, 3
      %v1184 = vand.u32 %v1183, 3
      %vm1185 = vcmp.lt.s32.totalorder %v1184, 2
      %vm1186 = vcmp.eq.s32.totalorder %v1184, 0
      %v1187 = vxor.u32 %v1181, 2147483648
      %v1188 = vsel %vm1186, %v1180, %v1187
      %vm1189 = vcmp.eq.s32.totalorder %v1184, 2
      %v1190 = vxor.u32 %v1180, 2147483648
      %v1191 = vsel %vm1189, %v1190, %v1181
      %v1192 = vsel %vm1185, %v1188, %v1191
      %v1193 = vsel %vm1182, nan, %v1192
      %v1194 = vand.u32 2147483647, %v980
      %vm1195 = vcmp.le.f32.partialorder %v1194, 0.7853982
      %vm1196 = vcmp.lt.s32.totalorder %v980, 0
      %v1197 = vand.u32 %v980, 2139095040
      %v1198 = vshrl.u32 %v1197, 23
      %v1199 = vsub.s32 %v1198, 127
      %v1200 = vand.u32 2147483647, %v980
      %v1201 = vand.u32 %v1200, 8388607
      %v1202 = vor.u32 %v1201, 8388608
      %v1203 = vsub.s32 0, %v1202
      %v1204 = vadd.s32 %v1199, 1
      %vm1205 = vcmp.gt.s32.totalorder %v1204, 0
      %v1206 = vsel %vm1205, %v1204, 0
      %v1207 = vshrl.u32 %v1206, 5
      %v1208 = vand.u32 %v1206, 31
      %v1209 = vsub.s32 32, %v1208
      %v1210 = vshrl.u32 683565275, %v1209
      %v1211 = vshll.u32 683565275, %v1208
      %v1212 = vshrl.u32 2475754826, %v1209
      %v1213 = vor.u32 %v1211, %v1212
      %v1214 = vshll.u32 2475754826, %v1208
      %v1215 = vshrl.u32 2131351028, %v1209
      %v1216 = vor.u32 %v1214, %v1215
      %v1217 = vshll.u32 2131351028, %v1208
      %v1218 = vshrl.u32 2102212464, %v1209
      %v1219 = vor.u32 %v1217, %v1218
      %v1220 = vshll.u32 2102212464, %v1208
      %v1221 = vshrl.u32 920167782, %v1209
      %v1222 = vor.u32 %v1220, %v1221
      %v1223 = vshll.u32 920167782, %v1208
      %v1224 = vshrl.u32 1326507024, %v1209
      %v1225 = vor.u32 %v1223, %v1224
      %vm1226 = vcmp.lt.s32.totalorder %v1207, 1
      %vm1227 = vcmp.lt.s32.totalorder %v1207, 2
      %vm1228 = vcmp.lt.s32.totalorder %v1207, 3
      %vm1229 = vcmp.lt.s32.totalorder %v1207, 4
      %v1230 = vsel %vm1226, %v1210, %v1213
      %v1231 = vsel %vm1229, %v1219, 2102212464
      %v1232 = vsel %vm1228, %v1216, %v1231
      %v1233 = vsel %vm1227, %v1230, %v1232
      %v1234 = vsel %vm1226, %v1213, %v1216
      %v1235 = vsel %vm1229, %v1222, 920167782
      %v1236 = vsel %vm1228, %v1219, %v1235
      %v1237 = vsel %vm1227, %v1234, %v1236
      %v1238 = vsel %vm1226, %v1216, %v1219
      %v1239 = vsel %vm1229, %v1225, 1326507024
      %v1240 = vsel %vm1228, %v1222, %v1239
      %v1241 = vsel %vm1227, %v1238, %v1240
      %v1242 = vshll.u32 %v1202, 8
      %v1243 = vmul.u32.u64.compose %v1242, %v1241
      %v1244 = vextract.low.u32 %v1243
      %v1245 = vextract.high.u32 %v1243
      %v1246 = vmul.u32.u64.compose %v1242, %v1237
      %v1247 = vextract.low.u32 %v1246
      %v1248 = vextract.high.u32 %v1246
      %v1249 = vmul.u32 %v1242, %v1233
      %v1250 = vadd.s32 %v1245, %v1247
      %vm1251 = vc.u32 %v1245, %v1247
      %v1252 = vadd.s32 %v1248, 1
      %v1253 = vsel %vm1251, %v1252, %v1248
      %v1254 = vadd.s32 %v1249, %v1253
      %v1255 = vadd.s32 %v1254, 536870912
      %v1256 = vshrl.u32 %v1255, 30
      %v1257 = vshll.u32 %v1256, 30
      %v1258 = vsub.s32 %v1254, %v1257
      %vm1259 = vcmp.lt.s32.totalorder %v1258, 0
      %v1260 = vsub.s32 0, %v1258
      %v1261 = vsel %vm1259, %v1260, %v1258
      %v1262 = vclz %v1261
      %v1263 = vsub.s32 %v1262, 2
      %vm1264 = vcmp.gt.s32.totalorder 0, %v1263
      %v1265 = vsel %vm1264, 0, %v1263
      %v1266 = vsub.s32 32, %v1265
      %v1267 = vshll.u32 %v1258, %v1265
      %v1268 = vshrl.u32 %v1250, %v1266
      %v1269 = vor.u32 %v1267, %v1268
      %v1270 = vsub.s32 4294967266, %v1265
      %v1271 = vadd.s32 %v1270, 127
      %v1272 = vshll.u32 %v1271, 23
      %v1273 = vor.u32 4788187, %v1272
      %v1274 = vand.u32 2147483647, %v1273
      %v1276 = vcvt.s32.f32 %v1269
      %v1277 = vmul.f32 %v1276, %v1274
      %v1278 = vxor.u32 %v1277, 2147483648
      %v1279 = vsel %vm1196, %v1278, %v1277
      %v1280 = vsub.s32 4, %v1256
      %v1281 = vsel %vm1196, %v1280, %v1256
      %v1282 = vsel %vm1195, %v980, %v1279
      %v1283 = vsel %vm1195, 0, %v1281
      %v1284 = vcosq.f32.pop %v1282
      %v1285 = vsinq.f32.pop %v1282
      %vm1286 = vweird.f32 %v980
      %v1287 = vadd.s32 %v1283, 3
      %v1288 = vand.u32 %v1287, 3
      %vm1289 = vcmp.lt.s32.totalorder %v1288, 2
      %vm1290 = vcmp.eq.s32.totalorder %v1288, 0
      %v1291 = vxor.u32 %v1285, 2147483648
      %v1292 = vsel %vm1290, %v1284, %v1291
      %vm1293 = vcmp.eq.s32.totalorder %v1288, 2
      %v1294 = vxor.u32 %v1284, 2147483648
      %v1295 = vsel %vm1293, %v1294, %v1285
      %v1296 = vsel %vm1289, %v1292, %v1295
      %v1297 = vsel %vm1286, nan, %v1296
      %v1298 = vand.u32 2147483647, %v981
      %vm1299 = vcmp.le.f32.partialorder %v1298, 0.7853982
      %vm1300 = vcmp.lt.s32.totalorder %v981, 0
      %v1301 = vand.u32 %v981, 2139095040
      %v1302 = vshrl.u32 %v1301, 23
      %v1303 = vsub.s32 %v1302, 127
      %v1304 = vand.u32 2147483647, %v981
      %v1305 = vand.u32 %v1304, 8388607
      %v1306 = vor.u32 %v1305, 8388608
      %v1307 = vsub.s32 0, %v1306
      %v1308 = vadd.s32 %v1303, 1
      %vm1309 = vcmp.gt.s32.totalorder %v1308, 0
      %v1310 = vsel %vm1309, %v1308, 0
      %v1311 = vshrl.u32 %v1310, 5
      %v1312 = vand.u32 %v1310, 31
      %v1313 = vsub.s32 32, %v1312
      %v1314 = vshrl.u32 683565275, %v1313
      %v1315 = vshll.u32 683565275, %v1312
      %v1316 = vshrl.u32 2475754826, %v1313
      %v1317 = vor.u32 %v1315, %v1316
      %v1318 = vshll.u32 2475754826, %v1312
      %v1319 = vshrl.u32 2131351028, %v1313
      %v1320 = vor.u32 %v1318, %v1319
      %v1321 = vshll.u32 2131351028, %v1312
      %v1322 = vshrl.u32 2102212464, %v1313
      %v1323 = vor.u32 %v1321, %v1322
      %v1324 = vshll.u32 2102212464, %v1312
      %v1325 = vshrl.u32 920167782, %v1313
      %v1326 = vor.u32 %v1324, %v1325
      %v1327 = vshll.u32 920167782, %v1312
      %v1328 = vshrl.u32 1326507024, %v1313
      %v1329 = vor.u32 %v1327, %v1328
      %vm1330 = vcmp.lt.s32.totalorder %v1311, 1
      %vm1331 = vcmp.lt.s32.totalorder %v1311, 2
      %vm1332 = vcmp.lt.s32.totalorder %v1311, 3
      %vm1333 = vcmp.lt.s32.totalorder %v1311, 4
      %v1334 = vsel %vm1330, %v1314, %v1317
      %v1335 = vsel %vm1333, %v1323, 2102212464
      %v1336 = vsel %vm1332, %v1320, %v1335
      %v1337 = vsel %vm1331, %v1334, %v1336
      %v1338 = vsel %vm1330, %v1317, %v1320
      %v1339 = vsel %vm1333, %v1326, 920167782
      %v1340 = vsel %vm1332, %v1323, %v1339
      %v1341 = vsel %vm1331, %v1338, %v1340
      %v1342 = vsel %vm1330, %v1320, %v1323
      %v1343 = vsel %vm1333, %v1329, 1326507024
      %v1344 = vsel %vm1332, %v1326, %v1343
      %v1345 = vsel %vm1331, %v1342, %v1344
      %v1346 = vshll.u32 %v1306, 8
      %v1347 = vmul.u32.u64.compose %v1346, %v1345
      %v1348 = vextract.low.u32 %v1347
      %v1349 = vextract.high.u32 %v1347
      %v1350 = vmul.u32.u64.compose %v1346, %v1341
      %v1351 = vextract.low.u32 %v1350
      %v1352 = vextract.high.u32 %v1350
      %v1353 = vmul.u32 %v1346, %v1337
      %v1354 = vadd.s32 %v1349, %v1351
      %vm1355 = vc.u32 %v1349, %v1351
      %v1356 = vadd.s32 %v1352, 1
      %v1357 = vsel %vm1355, %v1356, %v1352
      %v1358 = vadd.s32 %v1353, %v1357
      %v1359 = vadd.s32 %v1358, 536870912
      %v1360 = vshrl.u32 %v1359, 30
      %v1361 = vshll.u32 %v1360, 30
      %v1362 = vsub.s32 %v1358, %v1361
      %vm1363 = vcmp.lt.s32.totalorder %v1362, 0
      %v1364 = vsub.s32 0, %v1362
      %v1365 = vsel %vm1363, %v1364, %v1362
      %v1366 = vclz %v1365
      %v1367 = vsub.s32 %v1366, 2
      %vm1368 = vcmp.gt.s32.totalorder 0, %v1367
      %v1369 = vsel %vm1368, 0, %v1367
      %v1370 = vsub.s32 32, %v1369
      %v1371 = vshll.u32 %v1362, %v1369
      %v1372 = vshrl.u32 %v1354, %v1370
      %v1373 = vor.u32 %v1371, %v1372
      %v1374 = vsub.s32 4294967266, %v1369
      %v1375 = vadd.s32 %v1374, 127
      %v1376 = vshll.u32 %v1375, 23
      %v1377 = vor.u32 4788187, %v1376
      %v1378 = vand.u32 2147483647, %v1377
      %v1380 = vcvt.s32.f32 %v1373
      %v1381 = vmul.f32 %v1380, %v1378
      %v1382 = vxor.u32 %v1381, 2147483648
      %v1383 = vsel %vm1300, %v1382, %v1381
      %v1384 = vsub.s32 4, %v1360
      %v1385 = vsel %vm1300, %v1384, %v1360
      %v1386 = vsel %vm1299, %v981, %v1383
      %v1387 = vsel %vm1299, 0, %v1385
      %v1388 = vcosq.f32.pop %v1386
      %v1389 = vsinq.f32.pop %v1386
      %vm1390 = vweird.f32 %v981
      %v1391 = vadd.s32 %v1387, 3
      %v1392 = vand.u32 %v1391, 3
      %vm1393 = vcmp.lt.s32.totalorder %v1392, 2
      %vm1394 = vcmp.eq.s32.totalorder %v1392, 0
      %v1395 = vxor.u32 %v1389, 2147483648
      %v1396 = vsel %vm1394, %v1388, %v1395
      %vm1397 = vcmp.eq.s32.totalorder %v1392, 2
      %v1398 = vxor.u32 %v1388, 2147483648
      %v1399 = vsel %vm1397, %v1398, %v1389
      %v1400 = vsel %vm1393, %v1396, %v1399
      %v1401 = vsel %vm1390, nan, %v1400
      %v1402 = vand.u32 2147483647, %v982
      %vm1403 = vcmp.le.f32.partialorder %v1402, 0.7853982
      %vm1404 = vcmp.lt.s32.totalorder %v982, 0
      %v1405 = vand.u32 %v982, 2139095040
      %v1406 = vshrl.u32 %v1405, 23
      %v1407 = vsub.s32 %v1406, 127
      %v1408 = vand.u32 2147483647, %v982
      %v1409 = vand.u32 %v1408, 8388607
      %v1410 = vor.u32 %v1409, 8388608
      %v1411 = vsub.s32 0, %v1410
      %v1412 = vadd.s32 %v1407, 1
      %vm1413 = vcmp.gt.s32.totalorder %v1412, 0
      %v1414 = vsel %vm1413, %v1412, 0
      %v1415 = vshrl.u32 %v1414, 5
      %v1416 = vand.u32 %v1414, 31
      %v1417 = vsub.s32 32, %v1416
      %v1418 = vshrl.u32 683565275, %v1417
      %v1419 = vshll.u32 683565275, %v1416
      %v1420 = vshrl.u32 2475754826, %v1417
      %v1421 = vor.u32 %v1419, %v1420
      %v1422 = vshll.u32 2475754826, %v1416
      %v1423 = vshrl.u32 2131351028, %v1417
      %v1424 = vor.u32 %v1422, %v1423
      %v1425 = vshll.u32 2131351028, %v1416
      %v1426 = vshrl.u32 2102212464, %v1417
      %v1427 = vor.u32 %v1425, %v1426
      %v1428 = vshll.u32 2102212464, %v1416
      %v1429 = vshrl.u32 920167782, %v1417
      %v1430 = vor.u32 %v1428, %v1429
      %v1431 = vshll.u32 920167782, %v1416
      %v1432 = vshrl.u32 1326507024, %v1417
      %v1433 = vor.u32 %v1431, %v1432
      %vm1434 = vcmp.lt.s32.totalorder %v1415, 1
      %vm1435 = vcmp.lt.s32.totalorder %v1415, 2
      %vm1436 = vcmp.lt.s32.totalorder %v1415, 3
      %vm1437 = vcmp.lt.s32.totalorder %v1415, 4
      %v1438 = vsel %vm1434, %v1418, %v1421
      %v1439 = vsel %vm1437, %v1427, 2102212464
      %v1440 = vsel %vm1436, %v1424, %v1439
      %v1441 = vsel %vm1435, %v1438, %v1440
      %v1442 = vsel %vm1434, %v1421, %v1424
      %v1443 = vsel %vm1437, %v1430, 920167782
      %v1444 = vsel %vm1436, %v1427, %v1443
      %v1445 = vsel %vm1435, %v1442, %v1444
      %v1446 = vsel %vm1434, %v1424, %v1427
      %v1447 = vsel %vm1437, %v1433, 1326507024
      %v1448 = vsel %vm1436, %v1430, %v1447
      %v1449 = vsel %vm1435, %v1446, %v1448
      %v1450 = vshll.u32 %v1410, 8
      %v1451 = vmul.u32.u64.compose %v1450, %v1449
      %v1452 = vextract.low.u32 %v1451
      %v1453 = vextract.high.u32 %v1451
      %v1454 = vmul.u32.u64.compose %v1450, %v1445
      %v1455 = vextract.low.u32 %v1454
      %v1456 = vextract.high.u32 %v1454
      %v1457 = vmul.u32 %v1450, %v1441
      %v1458 = vadd.s32 %v1453, %v1455
      %vm1459 = vc.u32 %v1453, %v1455
      %v1460 = vadd.s32 %v1456, 1
      %v1461 = vsel %vm1459, %v1460, %v1456
      %v1462 = vadd.s32 %v1457, %v1461
      %v1463 = vadd.s32 %v1462, 536870912
      %v1464 = vshrl.u32 %v1463, 30
      %v1465 = vshll.u32 %v1464, 30
      %v1466 = vsub.s32 %v1462, %v1465
      %vm1467 = vcmp.lt.s32.totalorder %v1466, 0
      %v1468 = vsub.s32 0, %v1466
      %v1469 = vsel %vm1467, %v1468, %v1466
      %v1470 = vclz %v1469
      %v1471 = vsub.s32 %v1470, 2
      %vm1472 = vcmp.gt.s32.totalorder 0, %v1471
      %v1473 = vsel %vm1472, 0, %v1471
      %v1474 = vsub.s32 32, %v1473
      %v1475 = vshll.u32 %v1466, %v1473
      %v1476 = vshrl.u32 %v1458, %v1474
      %v1477 = vor.u32 %v1475, %v1476
      %v1478 = vsub.s32 4294967266, %v1473
      %v1479 = vadd.s32 %v1478, 127
      %v1480 = vshll.u32 %v1479, 23
      %v1481 = vor.u32 4788187, %v1480
      %v1482 = vand.u32 2147483647, %v1481
      %v1484 = vcvt.s32.f32 %v1477
      %v1485 = vmul.f32 %v1484, %v1482
      %v1486 = vxor.u32 %v1485, 2147483648
      %v1487 = vsel %vm1404, %v1486, %v1485
      %v1488 = vsub.s32 4, %v1464
      %v1489 = vsel %vm1404, %v1488, %v1464
      %v1490 = vsel %vm1403, %v982, %v1487
      %v1491 = vsel %vm1403, 0, %v1489
      %v1492 = vcosq.f32.pop %v1490
      %v1493 = vsinq.f32.pop %v1490
      %vm1494 = vweird.f32 %v982
      %v1495 = vadd.s32 %v1491, 3
      %v1496 = vand.u32 %v1495, 3
      %vm1497 = vcmp.lt.s32.totalorder %v1496, 2
      %vm1498 = vcmp.eq.s32.totalorder %v1496, 0
      %v1499 = vxor.u32 %v1493, 2147483648
      %v1500 = vsel %vm1498, %v1492, %v1499
      %vm1501 = vcmp.eq.s32.totalorder %v1496, 2
      %v1502 = vxor.u32 %v1492, 2147483648
      %v1503 = vsel %vm1501, %v1502, %v1493
      %v1504 = vsel %vm1497, %v1500, %v1503
      %v1505 = vsel %vm1494, nan, %v1504
      %v1506 = vand.u32 2147483647, %v983
      %vm1507 = vcmp.le.f32.partialorder %v1506, 0.7853982
      %vm1508 = vcmp.lt.s32.totalorder %v983, 0
      %v1509 = vand.u32 %v983, 2139095040
      %v1510 = vshrl.u32 %v1509, 23
      %v1511 = vsub.s32 %v1510, 127
      %v1512 = vand.u32 2147483647, %v983
      %v1513 = vand.u32 %v1512, 8388607
      %v1514 = vor.u32 %v1513, 8388608
      %v1515 = vsub.s32 0, %v1514
      %v1516 = vadd.s32 %v1511, 1
      %vm1517 = vcmp.gt.s32.totalorder %v1516, 0
      %v1518 = vsel %vm1517, %v1516, 0
      %v1519 = vshrl.u32 %v1518, 5
      %v1520 = vand.u32 %v1518, 31
      %v1521 = vsub.s32 32, %v1520
      %v1522 = vshrl.u32 683565275, %v1521
      %v1523 = vshll.u32 683565275, %v1520
      %v1524 = vshrl.u32 2475754826, %v1521
      %v1525 = vor.u32 %v1523, %v1524
      %v1526 = vshll.u32 2475754826, %v1520
      %v1527 = vshrl.u32 2131351028, %v1521
      %v1528 = vor.u32 %v1526, %v1527
      %v1529 = vshll.u32 2131351028, %v1520
      %v1530 = vshrl.u32 2102212464, %v1521
      %v1531 = vor.u32 %v1529, %v1530
      %v1532 = vshll.u32 2102212464, %v1520
      %v1533 = vshrl.u32 920167782, %v1521
      %v1534 = vor.u32 %v1532, %v1533
      %v1535 = vshll.u32 920167782, %v1520
      %v1536 = vshrl.u32 1326507024, %v1521
      %v1537 = vor.u32 %v1535, %v1536
      %vm1538 = vcmp.lt.s32.totalorder %v1519, 1
      %vm1539 = vcmp.lt.s32.totalorder %v1519, 2
      %vm1540 = vcmp.lt.s32.totalorder %v1519, 3
      %vm1541 = vcmp.lt.s32.totalorder %v1519, 4
      %v1542 = vsel %vm1538, %v1522, %v1525
      %v1543 = vsel %vm1541, %v1531, 2102212464
      %v1544 = vsel %vm1540, %v1528, %v1543
      %v1545 = vsel %vm1539, %v1542, %v1544
      %v1546 = vsel %vm1538, %v1525, %v1528
      %v1547 = vsel %vm1541, %v1534, 920167782
      %v1548 = vsel %vm1540, %v1531, %v1547
      %v1549 = vsel %vm1539, %v1546, %v1548
      %v1550 = vsel %vm1538, %v1528, %v1531
      %v1551 = vsel %vm1541, %v1537, 1326507024
      %v1552 = vsel %vm1540, %v1534, %v1551
      %v1553 = vsel %vm1539, %v1550, %v1552
      %v1554 = vshll.u32 %v1514, 8
      %v1555 = vmul.u32.u64.compose %v1554, %v1553
      %v1556 = vextract.low.u32 %v1555
      %v1557 = vextract.high.u32 %v1555
      %v1558 = vmul.u32.u64.compose %v1554, %v1549
      %v1559 = vextract.low.u32 %v1558
      %v1560 = vextract.high.u32 %v1558
      %v1561 = vmul.u32 %v1554, %v1545
      %v1562 = vadd.s32 %v1557, %v1559
      %vm1563 = vc.u32 %v1557, %v1559
      %v1564 = vadd.s32 %v1560, 1
      %v1565 = vsel %vm1563, %v1564, %v1560
      %v1566 = vadd.s32 %v1561, %v1565
      %v1567 = vadd.s32 %v1566, 536870912
      %v1568 = vshrl.u32 %v1567, 30
      %v1569 = vshll.u32 %v1568, 30
      %v1570 = vsub.s32 %v1566, %v1569
      %vm1571 = vcmp.lt.s32.totalorder %v1570, 0
      %v1572 = vsub.s32 0, %v1570
      %v1573 = vsel %vm1571, %v1572, %v1570
      %v1574 = vclz %v1573
      %v1575 = vsub.s32 %v1574, 2
      %vm1576 = vcmp.gt.s32.totalorder 0, %v1575
      %v1577 = vsel %vm1576, 0, %v1575
      %v1578 = vsub.s32 32, %v1577
      %v1579 = vshll.u32 %v1570, %v1577
      %v1580 = vshrl.u32 %v1562, %v1578
      %v1581 = vor.u32 %v1579, %v1580
      %v1582 = vsub.s32 4294967266, %v1577
      %v1583 = vadd.s32 %v1582, 127
      %v1584 = vshll.u32 %v1583, 23
      %v1585 = vor.u32 4788187, %v1584
      %v1586 = vand.u32 2147483647, %v1585
      %v1588 = vcvt.s32.f32 %v1581
      %v1589 = vmul.f32 %v1588, %v1586
      %v1590 = vxor.u32 %v1589, 2147483648
      %v1591 = vsel %vm1508, %v1590, %v1589
      %v1592 = vsub.s32 4, %v1568
      %v1593 = vsel %vm1508, %v1592, %v1568
      %v1594 = vsel %vm1507, %v983, %v1591
      %v1595 = vsel %vm1507, 0, %v1593
      %v1596 = vcosq.f32.pop %v1594
      %v1597 = vsinq.f32.pop %v1594
      %vm1598 = vweird.f32 %v983
      %v1599 = vadd.s32 %v1595, 3
      %v1600 = vand.u32 %v1599, 3
      %vm1601 = vcmp.lt.s32.totalorder %v1600, 2
      %vm1602 = vcmp.eq.s32.totalorder %v1600, 0
      %v1603 = vxor.u32 %v1597, 2147483648
      %v1604 = vsel %vm1602, %v1596, %v1603
      %vm1605 = vcmp.eq.s32.totalorder %v1600, 2
      %v1606 = vxor.u32 %v1596, 2147483648
      %v1607 = vsel %vm1605, %v1606, %v1597
      %v1608 = vsel %vm1601, %v1604, %v1607
      %v1609 = vsel %vm1598, nan, %v1608
      %v1610 = vand.u32 2147483647, %v984
      %vm1611 = vcmp.le.f32.partialorder %v1610, 0.7853982
      %vm1612 = vcmp.lt.s32.totalorder %v984, 0
      %v1613 = vand.u32 %v984, 2139095040
      %v1614 = vshrl.u32 %v1613, 23
      %v1615 = vsub.s32 %v1614, 127
      %v1616 = vand.u32 2147483647, %v984
      %v1617 = vand.u32 %v1616, 8388607
      %v1618 = vor.u32 %v1617, 8388608
      %v1619 = vsub.s32 0, %v1618
      %v1620 = vadd.s32 %v1615, 1
      %vm1621 = vcmp.gt.s32.totalorder %v1620, 0
      %v1622 = vsel %vm1621, %v1620, 0
      %v1623 = vshrl.u32 %v1622, 5
      %v1624 = vand.u32 %v1622, 31
      %v1625 = vsub.s32 32, %v1624
      %v1626 = vshrl.u32 683565275, %v1625
      %v1627 = vshll.u32 683565275, %v1624
      %v1628 = vshrl.u32 2475754826, %v1625
      %v1629 = vor.u32 %v1627, %v1628
      %v1630 = vshll.u32 2475754826, %v1624
      %v1631 = vshrl.u32 2131351028, %v1625
      %v1632 = vor.u32 %v1630, %v1631
      %v1633 = vshll.u32 2131351028, %v1624
      %v1634 = vshrl.u32 2102212464, %v1625
      %v1635 = vor.u32 %v1633, %v1634
      %v1636 = vshll.u32 2102212464, %v1624
      %v1637 = vshrl.u32 920167782, %v1625
      %v1638 = vor.u32 %v1636, %v1637
      %v1639 = vshll.u32 920167782, %v1624
      %v1640 = vshrl.u32 1326507024, %v1625
      %v1641 = vor.u32 %v1639, %v1640
      %vm1642 = vcmp.lt.s32.totalorder %v1623, 1
      %vm1643 = vcmp.lt.s32.totalorder %v1623, 2
      %vm1644 = vcmp.lt.s32.totalorder %v1623, 3
      %vm1645 = vcmp.lt.s32.totalorder %v1623, 4
      %v1646 = vsel %vm1642, %v1626, %v1629
      %v1647 = vsel %vm1645, %v1635, 2102212464
      %v1648 = vsel %vm1644, %v1632, %v1647
      %v1649 = vsel %vm1643, %v1646, %v1648
      %v1650 = vsel %vm1642, %v1629, %v1632
      %v1651 = vsel %vm1645, %v1638, 920167782
      %v1652 = vsel %vm1644, %v1635, %v1651
      %v1653 = vsel %vm1643, %v1650, %v1652
      %v1654 = vsel %vm1642, %v1632, %v1635
      %v1655 = vsel %vm1645, %v1641, 1326507024
      %v1656 = vsel %vm1644, %v1638, %v1655
      %v1657 = vsel %vm1643, %v1654, %v1656
      %v1658 = vshll.u32 %v1618, 8
      %v1659 = vmul.u32.u64.compose %v1658, %v1657
      %v1660 = vextract.low.u32 %v1659
      %v1661 = vextract.high.u32 %v1659
      %v1662 = vmul.u32.u64.compose %v1658, %v1653
      %v1663 = vextract.low.u32 %v1662
      %v1664 = vextract.high.u32 %v1662
      %v1665 = vmul.u32 %v1658, %v1649
      %v1666 = vadd.s32 %v1661, %v1663
      %vm1667 = vc.u32 %v1661, %v1663
      %v1668 = vadd.s32 %v1664, 1
      %v1669 = vsel %vm1667, %v1668, %v1664
      %v1670 = vadd.s32 %v1665, %v1669
      %v1671 = vadd.s32 %v1670, 536870912
      %v1672 = vshrl.u32 %v1671, 30
      %v1673 = vshll.u32 %v1672, 30
      %v1674 = vsub.s32 %v1670, %v1673
      %vm1675 = vcmp.lt.s32.totalorder %v1674, 0
      %v1676 = vsub.s32 0, %v1674
      %v1677 = vsel %vm1675, %v1676, %v1674
      %v1678 = vclz %v1677
      %v1679 = vsub.s32 %v1678, 2
      %vm1680 = vcmp.gt.s32.totalorder 0, %v1679
      %v1681 = vsel %vm1680, 0, %v1679
      %v1682 = vsub.s32 32, %v1681
      %v1683 = vshll.u32 %v1674, %v1681
      %v1684 = vshrl.u32 %v1666, %v1682
      %v1685 = vor.u32 %v1683, %v1684
      %v1686 = vsub.s32 4294967266, %v1681
      %v1687 = vadd.s32 %v1686, 127
      %v1688 = vshll.u32 %v1687, 23
      %v1689 = vor.u32 4788187, %v1688
      %v1690 = vand.u32 2147483647, %v1689
      %v1692 = vcvt.s32.f32 %v1685
      %v1693 = vmul.f32 %v1692, %v1690
      %v1694 = vxor.u32 %v1693, 2147483648
      %v1695 = vsel %vm1612, %v1694, %v1693
      %v1696 = vsub.s32 4, %v1672
      %v1697 = vsel %vm1612, %v1696, %v1672
      %v1698 = vsel %vm1611, %v984, %v1695
      %v1699 = vsel %vm1611, 0, %v1697
      %v1700 = vcosq.f32.pop %v1698
      %v1701 = vsinq.f32.pop %v1698
      %vm1702 = vweird.f32 %v984
      %v1703 = vadd.s32 %v1699, 3
      %v1704 = vand.u32 %v1703, 3
      %vm1705 = vcmp.lt.s32.totalorder %v1704, 2
      %vm1706 = vcmp.eq.s32.totalorder %v1704, 0
      %v1707 = vxor.u32 %v1701, 2147483648
      %v1708 = vsel %vm1706, %v1700, %v1707
      %vm1709 = vcmp.eq.s32.totalorder %v1704, 2
      %v1710 = vxor.u32 %v1700, 2147483648
      %v1711 = vsel %vm1709, %v1710, %v1701
      %v1712 = vsel %vm1705, %v1708, %v1711
      %v1713 = vsel %vm1702, nan, %v1712
      %v1714 = vand.u32 2147483647, %v985
      %vm1715 = vcmp.le.f32.partialorder %v1714, 0.7853982
      %vm1716 = vcmp.lt.s32.totalorder %v985, 0
      %v1717 = vand.u32 %v985, 2139095040
      %v1718 = vshrl.u32 %v1717, 23
      %v1719 = vsub.s32 %v1718, 127
      %v1720 = vand.u32 2147483647, %v985
      %v1721 = vand.u32 %v1720, 8388607
      %v1722 = vor.u32 %v1721, 8388608
      %v1723 = vsub.s32 0, %v1722
      %v1724 = vadd.s32 %v1719, 1
      %vm1725 = vcmp.gt.s32.totalorder %v1724, 0
      %v1726 = vsel %vm1725, %v1724, 0
      %v1727 = vshrl.u32 %v1726, 5
      %v1728 = vand.u32 %v1726, 31
      %v1729 = vsub.s32 32, %v1728
      %v1730 = vshrl.u32 683565275, %v1729
      %v1731 = vshll.u32 683565275, %v1728
      %v1732 = vshrl.u32 2475754826, %v1729
      %v1733 = vor.u32 %v1731, %v1732
      %v1734 = vshll.u32 2475754826, %v1728
      %v1735 = vshrl.u32 2131351028, %v1729
      %v1736 = vor.u32 %v1734, %v1735
      %v1737 = vshll.u32 2131351028, %v1728
      %v1738 = vshrl.u32 2102212464, %v1729
      %v1739 = vor.u32 %v1737, %v1738
      %v1740 = vshll.u32 2102212464, %v1728
      %v1741 = vshrl.u32 920167782, %v1729
      %v1742 = vor.u32 %v1740, %v1741
      %v1743 = vshll.u32 920167782, %v1728
      %v1744 = vshrl.u32 1326507024, %v1729
      %v1745 = vor.u32 %v1743, %v1744
      %vm1746 = vcmp.lt.s32.totalorder %v1727, 1
      %vm1747 = vcmp.lt.s32.totalorder %v1727, 2
      %vm1748 = vcmp.lt.s32.totalorder %v1727, 3
      %vm1749 = vcmp.lt.s32.totalorder %v1727, 4
      %v1750 = vsel %vm1746, %v1730, %v1733
      %v1751 = vsel %vm1749, %v1739, 2102212464
      %v1752 = vsel %vm1748, %v1736, %v1751
      %v1753 = vsel %vm1747, %v1750, %v1752
      %v1754 = vsel %vm1746, %v1733, %v1736
      %v1755 = vsel %vm1749, %v1742, 920167782
      %v1756 = vsel %vm1748, %v1739, %v1755
      %v1757 = vsel %vm1747, %v1754, %v1756
      %v1758 = vsel %vm1746, %v1736, %v1739
      %v1759 = vsel %vm1749, %v1745, 1326507024
      %v1760 = vsel %vm1748, %v1742, %v1759
      %v1761 = vsel %vm1747, %v1758, %v1760
      %v1762 = vshll.u32 %v1722, 8
      %v1763 = vmul.u32.u64.compose %v1762, %v1761
      %v1764 = vextract.low.u32 %v1763
      %v1765 = vextract.high.u32 %v1763
      %v1766 = vmul.u32.u64.compose %v1762, %v1757
      %v1767 = vextract.low.u32 %v1766
      %v1768 = vextract.high.u32 %v1766
      %v1769 = vmul.u32 %v1762, %v1753
      %v1770 = vadd.s32 %v1765, %v1767
      %vm1771 = vc.u32 %v1765, %v1767
      %v1772 = vadd.s32 %v1768, 1
      %v1773 = vsel %vm1771, %v1772, %v1768
      %v1774 = vadd.s32 %v1769, %v1773
      %v1775 = vadd.s32 %v1774, 536870912
      %v1776 = vshrl.u32 %v1775, 30
      %v1777 = vshll.u32 %v1776, 30
      %v1778 = vsub.s32 %v1774, %v1777
      %vm1779 = vcmp.lt.s32.totalorder %v1778, 0
      %v1780 = vsub.s32 0, %v1778
      %v1781 = vsel %vm1779, %v1780, %v1778
      %v1782 = vclz %v1781
      %v1783 = vsub.s32 %v1782, 2
      %vm1784 = vcmp.gt.s32.totalorder 0, %v1783
      %v1785 = vsel %vm1784, 0, %v1783
      %v1786 = vsub.s32 32, %v1785
      %v1787 = vshll.u32 %v1778, %v1785
      %v1788 = vshrl.u32 %v1770, %v1786
      %v1789 = vor.u32 %v1787, %v1788
      %v1790 = vsub.s32 4294967266, %v1785
      %v1791 = vadd.s32 %v1790, 127
      %v1792 = vshll.u32 %v1791, 23
      %v1793 = vor.u32 4788187, %v1792
      %v1794 = vand.u32 2147483647, %v1793
      %v1796 = vcvt.s32.f32 %v1789
      %v1797 = vmul.f32 %v1796, %v1794
      %v1798 = vxor.u32 %v1797, 2147483648
      %v1799 = vsel %vm1716, %v1798, %v1797
      %v1800 = vsub.s32 4, %v1776
      %v1801 = vsel %vm1716, %v1800, %v1776
      %v1802 = vsel %vm1715, %v985, %v1799
      %v1803 = vsel %vm1715, 0, %v1801
      %v1804 = vcosq.f32.pop %v1802
      %v1805 = vsinq.f32.pop %v1802
      %vm1806 = vweird.f32 %v985
      %v1807 = vadd.s32 %v1803, 3
      %v1808 = vand.u32 %v1807, 3
      %vm1809 = vcmp.lt.s32.totalorder %v1808, 2
      %vm1810 = vcmp.eq.s32.totalorder %v1808, 0
      %v1811 = vxor.u32 %v1805, 2147483648
      %v1812 = vsel %vm1810, %v1804, %v1811
      %vm1813 = vcmp.eq.s32.totalorder %v1808, 2
      %v1814 = vxor.u32 %v1804, 2147483648
      %v1815 = vsel %vm1813, %v1814, %v1805
      %v1816 = vsel %vm1809, %v1812, %v1815
      %v1817 = vsel %vm1806, nan, %v1816
      %v1818 = vand.u32 2147483647, %v978
      %vm1819 = vcmp.le.f32.partialorder %v1818, 0.7853982
      %vm1820 = vcmp.lt.s32.totalorder %v978, 0
      %v1821 = vand.u32 %v978, 2139095040
      %v1822 = vshrl.u32 %v1821, 23
      %v1823 = vsub.s32 %v1822, 127
      %v1824 = vand.u32 2147483647, %v978
      %v1825 = vand.u32 %v1824, 8388607
      %v1826 = vor.u32 %v1825, 8388608
      %v1827 = vsub.s32 0, %v1826
      %v1828 = vadd.s32 %v1823, 1
      %vm1829 = vcmp.gt.s32.totalorder %v1828, 0
      %v1830 = vsel %vm1829, %v1828, 0
      %v1831 = vshrl.u32 %v1830, 5
      %v1832 = vand.u32 %v1830, 31
      %v1833 = vsub.s32 32, %v1832
      %v1834 = vshrl.u32 683565275, %v1833
      %v1835 = vshll.u32 683565275, %v1832
      %v1836 = vshrl.u32 2475754826, %v1833
      %v1837 = vor.u32 %v1835, %v1836
      %v1838 = vshll.u32 2475754826, %v1832
      %v1839 = vshrl.u32 2131351028, %v1833
      %v1840 = vor.u32 %v1838, %v1839
      %v1841 = vshll.u32 2131351028, %v1832
      %v1842 = vshrl.u32 2102212464, %v1833
      %v1843 = vor.u32 %v1841, %v1842
      %v1844 = vshll.u32 2102212464, %v1832
      %v1845 = vshrl.u32 920167782, %v1833
      %v1846 = vor.u32 %v1844, %v1845
      %v1847 = vshll.u32 920167782, %v1832
      %v1848 = vshrl.u32 1326507024, %v1833
      %v1849 = vor.u32 %v1847, %v1848
      %vm1850 = vcmp.lt.s32.totalorder %v1831, 1
      %vm1851 = vcmp.lt.s32.totalorder %v1831, 2
      %vm1852 = vcmp.lt.s32.totalorder %v1831, 3
      %vm1853 = vcmp.lt.s32.totalorder %v1831, 4
      %v1854 = vsel %vm1850, %v1834, %v1837
      %v1855 = vsel %vm1853, %v1843, 2102212464
      %v1856 = vsel %vm1852, %v1840, %v1855
      %v1857 = vsel %vm1851, %v1854, %v1856
      %v1858 = vsel %vm1850, %v1837, %v1840
      %v1859 = vsel %vm1853, %v1846, 920167782
      %v1860 = vsel %vm1852, %v1843, %v1859
      %v1861 = vsel %vm1851, %v1858, %v1860
      %v1862 = vsel %vm1850, %v1840, %v1843
      %v1863 = vsel %vm1853, %v1849, 1326507024
      %v1864 = vsel %vm1852, %v1846, %v1863
      %v1865 = vsel %vm1851, %v1862, %v1864
      %v1866 = vshll.u32 %v1826, 8
      %v1867 = vmul.u32.u64.compose %v1866, %v1865
      %v1868 = vextract.low.u32 %v1867
      %v1869 = vextract.high.u32 %v1867
      %v1870 = vmul.u32.u64.compose %v1866, %v1861
      %v1871 = vextract.low.u32 %v1870
      %v1872 = vextract.high.u32 %v1870
      %v1873 = vmul.u32 %v1866, %v1857
      %v1874 = vadd.s32 %v1869, %v1871
      %vm1875 = vc.u32 %v1869, %v1871
      %v1876 = vadd.s32 %v1872, 1
      %v1877 = vsel %vm1875, %v1876, %v1872
      %v1878 = vadd.s32 %v1873, %v1877
      %v1879 = vadd.s32 %v1878, 536870912
      %v1880 = vshrl.u32 %v1879, 30
      %v1881 = vshll.u32 %v1880, 30
      %v1882 = vsub.s32 %v1878, %v1881
      %vm1883 = vcmp.lt.s32.totalorder %v1882, 0
      %v1884 = vsub.s32 0, %v1882
      %v1885 = vsel %vm1883, %v1884, %v1882
      %v1886 = vclz %v1885
      %v1887 = vsub.s32 %v1886, 2
      %vm1888 = vcmp.gt.s32.totalorder 0, %v1887
      %v1889 = vsel %vm1888, 0, %v1887
      %v1890 = vsub.s32 32, %v1889
      %v1891 = vshll.u32 %v1882, %v1889
      %v1892 = vshrl.u32 %v1874, %v1890
      %v1893 = vor.u32 %v1891, %v1892
      %v1894 = vsub.s32 4294967266, %v1889
      %v1895 = vadd.s32 %v1894, 127
      %v1896 = vshll.u32 %v1895, 23
      %v1897 = vor.u32 4788187, %v1896
      %v1898 = vand.u32 2147483647, %v1897
      %v1900 = vcvt.s32.f32 %v1893
      %v1901 = vmul.f32 %v1900, %v1898
      %v1902 = vxor.u32 %v1901, 2147483648
      %v1903 = vsel %vm1820, %v1902, %v1901
      %v1904 = vsub.s32 4, %v1880
      %v1905 = vsel %vm1820, %v1904, %v1880
      %v1906 = vsel %vm1819, %v978, %v1903
      %v1907 = vsel %vm1819, 0, %v1905
      %v1908 = vcosq.f32.pop %v1906
      %v1909 = vsinq.f32.pop %v1906
      %vm1910 = vweird.f32 %v978
      %v1911 = vand.u32 %v1907, 3
      %vm1912 = vcmp.lt.s32.totalorder %v1911, 2
      %vm1913 = vcmp.eq.s32.totalorder %v1911, 0
      %v1914 = vxor.u32 %v1909, 2147483648
      %v1915 = vsel %vm1913, %v1908, %v1914
      %vm1916 = vcmp.eq.s32.totalorder %v1911, 2
      %v1917 = vxor.u32 %v1908, 2147483648
      %v1918 = vsel %vm1916, %v1917, %v1909
      %v1919 = vsel %vm1912, %v1915, %v1918
      %v1920 = vsel %vm1910, nan, %v1919
      %v1921 = vand.u32 2147483647, %v979
      %vm1922 = vcmp.le.f32.partialorder %v1921, 0.7853982
      %vm1923 = vcmp.lt.s32.totalorder %v979, 0
      %v1924 = vand.u32 %v979, 2139095040
      %v1925 = vshrl.u32 %v1924, 23
      %v1926 = vsub.s32 %v1925, 127
      %v1927 = vand.u32 2147483647, %v979
      %v1928 = vand.u32 %v1927, 8388607
      %v1929 = vor.u32 %v1928, 8388608
      %v1930 = vsub.s32 0, %v1929
      %v1931 = vadd.s32 %v1926, 1
      %vm1932 = vcmp.gt.s32.totalorder %v1931, 0
      %v1933 = vsel %vm1932, %v1931, 0
      %v1934 = vshrl.u32 %v1933, 5
      %v1935 = vand.u32 %v1933, 31
      %v1936 = vsub.s32 32, %v1935
      %v1937 = vshrl.u32 683565275, %v1936
      %v1938 = vshll.u32 683565275, %v1935
      %v1939 = vshrl.u32 2475754826, %v1936
      %v1940 = vor.u32 %v1938, %v1939
      %v1941 = vshll.u32 2475754826, %v1935
      %v1942 = vshrl.u32 2131351028, %v1936
      %v1943 = vor.u32 %v1941, %v1942
      %v1944 = vshll.u32 2131351028, %v1935
      %v1945 = vshrl.u32 2102212464, %v1936
      %v1946 = vor.u32 %v1944, %v1945
      %v1947 = vshll.u32 2102212464, %v1935
      %v1948 = vshrl.u32 920167782, %v1936
      %v1949 = vor.u32 %v1947, %v1948
      %v1950 = vshll.u32 920167782, %v1935
      %v1951 = vshrl.u32 1326507024, %v1936
      %v1952 = vor.u32 %v1950, %v1951
      %vm1953 = vcmp.lt.s32.totalorder %v1934, 1
      %vm1954 = vcmp.lt.s32.totalorder %v1934, 2
      %vm1955 = vcmp.lt.s32.totalorder %v1934, 3
      %vm1956 = vcmp.lt.s32.totalorder %v1934, 4
      %v1957 = vsel %vm1953, %v1937, %v1940
      %v1958 = vsel %vm1956, %v1946, 2102212464
      %v1959 = vsel %vm1955, %v1943, %v1958
      %v1960 = vsel %vm1954, %v1957, %v1959
      %v1961 = vsel %vm1953, %v1940, %v1943
      %v1962 = vsel %vm1956, %v1949, 920167782
      %v1963 = vsel %vm1955, %v1946, %v1962
      %v1964 = vsel %vm1954, %v1961, %v1963
      %v1965 = vsel %vm1953, %v1943, %v1946
      %v1966 = vsel %vm1956, %v1952, 1326507024
      %v1967 = vsel %vm1955, %v1949, %v1966
      %v1968 = vsel %vm1954, %v1965, %v1967
      %v1969 = vshll.u32 %v1929, 8
      %v1970 = vmul.u32.u64.compose %v1969, %v1968
      %v1971 = vextract.low.u32 %v1970
      %v1972 = vextract.high.u32 %v1970
      %v1973 = vmul.u32.u64.compose %v1969, %v1964
      %v1974 = vextract.low.u32 %v1973
      %v1975 = vextract.high.u32 %v1973
      %v1976 = vmul.u32 %v1969, %v1960
      %v1977 = vadd.s32 %v1972, %v1974
      %vm1978 = vc.u32 %v1972, %v1974
      %v1979 = vadd.s32 %v1975, 1
      %v1980 = vsel %vm1978, %v1979, %v1975
      %v1981 = vadd.s32 %v1976, %v1980
      %v1982 = vadd.s32 %v1981, 536870912
      %v1983 = vshrl.u32 %v1982, 30
      %v1984 = vshll.u32 %v1983, 30
      %v1985 = vsub.s32 %v1981, %v1984
      %vm1986 = vcmp.lt.s32.totalorder %v1985, 0
      %v1987 = vsub.s32 0, %v1985
      %v1988 = vsel %vm1986, %v1987, %v1985
      %v1989 = vclz %v1988
      %v1990 = vsub.s32 %v1989, 2
      %vm1991 = vcmp.gt.s32.totalorder 0, %v1990
      %v1992 = vsel %vm1991, 0, %v1990
      %v1993 = vsub.s32 32, %v1992
      %v1994 = vshll.u32 %v1985, %v1992
      %v1995 = vshrl.u32 %v1977, %v1993
      %v1996 = vor.u32 %v1994, %v1995
      %v1997 = vsub.s32 4294967266, %v1992
      %v1998 = vadd.s32 %v1997, 127
      %v1999 = vshll.u32 %v1998, 23
      %v2000 = vor.u32 4788187, %v1999
      %v2001 = vand.u32 2147483647, %v2000
      %v2003 = vcvt.s32.f32 %v1996
      %v2004 = vmul.f32 %v2003, %v2001
      %v2005 = vxor.u32 %v2004, 2147483648
      %v2006 = vsel %vm1923, %v2005, %v2004
      %v2007 = vsub.s32 4, %v1983
      %v2008 = vsel %vm1923, %v2007, %v1983
      %v2009 = vsel %vm1922, %v979, %v2006
      %v2010 = vsel %vm1922, 0, %v2008
      %v2011 = vcosq.f32.pop %v2009
      %v2012 = vsinq.f32.pop %v2009
      %vm2013 = vweird.f32 %v979
      %v2014 = vand.u32 %v2010, 3
      %vm2015 = vcmp.lt.s32.totalorder %v2014, 2
      %vm2016 = vcmp.eq.s32.totalorder %v2014, 0
      %v2017 = vxor.u32 %v2012, 2147483648
      %v2018 = vsel %vm2016, %v2011, %v2017
      %vm2019 = vcmp.eq.s32.totalorder %v2014, 2
      %v2020 = vxor.u32 %v2011, 2147483648
      %v2021 = vsel %vm2019, %v2020, %v2012
      %v2022 = vsel %vm2015, %v2018, %v2021
      %v2023 = vsel %vm2013, nan, %v2022
      %v2024 = vand.u32 2147483647, %v980
      %vm2025 = vcmp.le.f32.partialorder %v2024, 0.7853982
      %vm2026 = vcmp.lt.s32.totalorder %v980, 0
      %v2027 = vand.u32 %v980, 2139095040
      %v2028 = vshrl.u32 %v2027, 23
      %v2029 = vsub.s32 %v2028, 127
      %v2030 = vand.u32 2147483647, %v980
      %v2031 = vand.u32 %v2030, 8388607
      %v2032 = vor.u32 %v2031, 8388608
      %v2033 = vsub.s32 0, %v2032
      %v2034 = vadd.s32 %v2029, 1
      %vm2035 = vcmp.gt.s32.totalorder %v2034, 0
      %v2036 = vsel %vm2035, %v2034, 0
      %v2037 = vshrl.u32 %v2036, 5
      %v2038 = vand.u32 %v2036, 31
      %v2039 = vsub.s32 32, %v2038
      %v2040 = vshrl.u32 683565275, %v2039
      %v2041 = vshll.u32 683565275, %v2038
      %v2042 = vshrl.u32 2475754826, %v2039
      %v2043 = vor.u32 %v2041, %v2042
      %v2044 = vshll.u32 2475754826, %v2038
      %v2045 = vshrl.u32 2131351028, %v2039
      %v2046 = vor.u32 %v2044, %v2045
      %v2047 = vshll.u32 2131351028, %v2038
      %v2048 = vshrl.u32 2102212464, %v2039
      %v2049 = vor.u32 %v2047, %v2048
      %v2050 = vshll.u32 2102212464, %v2038
      %v2051 = vshrl.u32 920167782, %v2039
      %v2052 = vor.u32 %v2050, %v2051
      %v2053 = vshll.u32 920167782, %v2038
      %v2054 = vshrl.u32 1326507024, %v2039
      %v2055 = vor.u32 %v2053, %v2054
      %vm2056 = vcmp.lt.s32.totalorder %v2037, 1
      %vm2057 = vcmp.lt.s32.totalorder %v2037, 2
      %vm2058 = vcmp.lt.s32.totalorder %v2037, 3
      %vm2059 = vcmp.lt.s32.totalorder %v2037, 4
      %v2060 = vsel %vm2056, %v2040, %v2043
      %v2061 = vsel %vm2059, %v2049, 2102212464
      %v2062 = vsel %vm2058, %v2046, %v2061
      %v2063 = vsel %vm2057, %v2060, %v2062
      %v2064 = vsel %vm2056, %v2043, %v2046
      %v2065 = vsel %vm2059, %v2052, 920167782
      %v2066 = vsel %vm2058, %v2049, %v2065
      %v2067 = vsel %vm2057, %v2064, %v2066
      %v2068 = vsel %vm2056, %v2046, %v2049
      %v2069 = vsel %vm2059, %v2055, 1326507024
      %v2070 = vsel %vm2058, %v2052, %v2069
      %v2071 = vsel %vm2057, %v2068, %v2070
      %v2072 = vshll.u32 %v2032, 8
      %v2073 = vmul.u32.u64.compose %v2072, %v2071
      %v2074 = vextract.low.u32 %v2073
      %v2075 = vextract.high.u32 %v2073
      %v2076 = vmul.u32.u64.compose %v2072, %v2067
      %v2077 = vextract.low.u32 %v2076
      %v2078 = vextract.high.u32 %v2076
      %v2079 = vmul.u32 %v2072, %v2063
      %v2080 = vadd.s32 %v2075, %v2077
      %vm2081 = vc.u32 %v2075, %v2077
      %v2082 = vadd.s32 %v2078, 1
      %v2083 = vsel %vm2081, %v2082, %v2078
      %v2084 = vadd.s32 %v2079, %v2083
      %v2085 = vadd.s32 %v2084, 536870912
      %v2086 = vshrl.u32 %v2085, 30
      %v2087 = vshll.u32 %v2086, 30
      %v2088 = vsub.s32 %v2084, %v2087
      %vm2089 = vcmp.lt.s32.totalorder %v2088, 0
      %v2090 = vsub.s32 0, %v2088
      %v2091 = vsel %vm2089, %v2090, %v2088
      %v2092 = vclz %v2091
      %v2093 = vsub.s32 %v2092, 2
      %vm2094 = vcmp.gt.s32.totalorder 0, %v2093
      %v2095 = vsel %vm2094, 0, %v2093
      %v2096 = vsub.s32 32, %v2095
      %v2097 = vshll.u32 %v2088, %v2095
      %v2098 = vshrl.u32 %v2080, %v2096
      %v2099 = vor.u32 %v2097, %v2098
      %v2100 = vsub.s32 4294967266, %v2095
      %v2101 = vadd.s32 %v2100, 127
      %v2102 = vshll.u32 %v2101, 23
      %v2103 = vor.u32 4788187, %v2102
      %v2104 = vand.u32 2147483647, %v2103
      %v2106 = vcvt.s32.f32 %v2099
      %v2107 = vmul.f32 %v2106, %v2104
      %v2108 = vxor.u32 %v2107, 2147483648
      %v2109 = vsel %vm2026, %v2108, %v2107
      %v2110 = vsub.s32 4, %v2086
      %v2111 = vsel %vm2026, %v2110, %v2086
      %v2112 = vsel %vm2025, %v980, %v2109
      %v2113 = vsel %vm2025, 0, %v2111
      %v2114 = vcosq.f32.pop %v2112
      %v2115 = vsinq.f32.pop %v2112
      %vm2116 = vweird.f32 %v980
      %v2117 = vand.u32 %v2113, 3
      %vm2118 = vcmp.lt.s32.totalorder %v2117, 2
      %vm2119 = vcmp.eq.s32.totalorder %v2117, 0
      %v2120 = vxor.u32 %v2115, 2147483648
      %v2121 = vsel %vm2119, %v2114, %v2120
      %vm2122 = vcmp.eq.s32.totalorder %v2117, 2
      %v2123 = vxor.u32 %v2114, 2147483648
      %v2124 = vsel %vm2122, %v2123, %v2115
      %v2125 = vsel %vm2118, %v2121, %v2124
      %v2126 = vsel %vm2116, nan, %v2125
      %v2127 = vand.u32 2147483647, %v981
      %vm2128 = vcmp.le.f32.partialorder %v2127, 0.7853982
      %vm2129 = vcmp.lt.s32.totalorder %v981, 0
      %v2130 = vand.u32 %v981, 2139095040
      %v2131 = vshrl.u32 %v2130, 23
      %v2132 = vsub.s32 %v2131, 127
      %v2133 = vand.u32 2147483647, %v981
      %v2134 = vand.u32 %v2133, 8388607
      %v2135 = vor.u32 %v2134, 8388608
      %v2136 = vsub.s32 0, %v2135
      %v2137 = vadd.s32 %v2132, 1
      %vm2138 = vcmp.gt.s32.totalorder %v2137, 0
      %v2139 = vsel %vm2138, %v2137, 0
      %v2140 = vshrl.u32 %v2139, 5
      %v2141 = vand.u32 %v2139, 31
      %v2142 = vsub.s32 32, %v2141
      %v2143 = vshrl.u32 683565275, %v2142
      %v2144 = vshll.u32 683565275, %v2141
      %v2145 = vshrl.u32 2475754826, %v2142
      %v2146 = vor.u32 %v2144, %v2145
      %v2147 = vshll.u32 2475754826, %v2141
      %v2148 = vshrl.u32 2131351028, %v2142
      %v2149 = vor.u32 %v2147, %v2148
      %v2150 = vshll.u32 2131351028, %v2141
      %v2151 = vshrl.u32 2102212464, %v2142
      %v2152 = vor.u32 %v2150, %v2151
      %v2153 = vshll.u32 2102212464, %v2141
      %v2154 = vshrl.u32 920167782, %v2142
      %v2155 = vor.u32 %v2153, %v2154
      %v2156 = vshll.u32 920167782, %v2141
      %v2157 = vshrl.u32 1326507024, %v2142
      %v2158 = vor.u32 %v2156, %v2157
      %vm2159 = vcmp.lt.s32.totalorder %v2140, 1
      %vm2160 = vcmp.lt.s32.totalorder %v2140, 2
      %vm2161 = vcmp.lt.s32.totalorder %v2140, 3
      %vm2162 = vcmp.lt.s32.totalorder %v2140, 4
      %v2163 = vsel %vm2159, %v2143, %v2146
      %v2164 = vsel %vm2162, %v2152, 2102212464
      %v2165 = vsel %vm2161, %v2149, %v2164
      %v2166 = vsel %vm2160, %v2163, %v2165
      %v2167 = vsel %vm2159, %v2146, %v2149
      %v2168 = vsel %vm2162, %v2155, 920167782
      %v2169 = vsel %vm2161, %v2152, %v2168
      %v2170 = vsel %vm2160, %v2167, %v2169
      %v2171 = vsel %vm2159, %v2149, %v2152
      %v2172 = vsel %vm2162, %v2158, 1326507024
      %v2173 = vsel %vm2161, %v2155, %v2172
      %v2174 = vsel %vm2160, %v2171, %v2173
      %v2175 = vshll.u32 %v2135, 8
      %v2176 = vmul.u32.u64.compose %v2175, %v2174
      %v2177 = vextract.low.u32 %v2176
      %v2178 = vextract.high.u32 %v2176
      %v2179 = vmul.u32.u64.compose %v2175, %v2170
      %v2180 = vextract.low.u32 %v2179
      %v2181 = vextract.high.u32 %v2179
      %v2182 = vmul.u32 %v2175, %v2166
      %v2183 = vadd.s32 %v2178, %v2180
      %vm2184 = vc.u32 %v2178, %v2180
      %v2185 = vadd.s32 %v2181, 1
      %v2186 = vsel %vm2184, %v2185, %v2181
      %v2187 = vadd.s32 %v2182, %v2186
      %v2188 = vadd.s32 %v2187, 536870912
      %v2189 = vshrl.u32 %v2188, 30
      %v2190 = vshll.u32 %v2189, 30
      %v2191 = vsub.s32 %v2187, %v2190
      %vm2192 = vcmp.lt.s32.totalorder %v2191, 0
      %v2193 = vsub.s32 0, %v2191
      %v2194 = vsel %vm2192, %v2193, %v2191
      %v2195 = vclz %v2194
      %v2196 = vsub.s32 %v2195, 2
      %vm2197 = vcmp.gt.s32.totalorder 0, %v2196
      %v2198 = vsel %vm2197, 0, %v2196
      %v2199 = vsub.s32 32, %v2198
      %v2200 = vshll.u32 %v2191, %v2198
      %v2201 = vshrl.u32 %v2183, %v2199
      %v2202 = vor.u32 %v2200, %v2201
      %v2203 = vsub.s32 4294967266, %v2198
      %v2204 = vadd.s32 %v2203, 127
      %v2205 = vshll.u32 %v2204, 23
      %v2206 = vor.u32 4788187, %v2205
      %v2207 = vand.u32 2147483647, %v2206
      %v2209 = vcvt.s32.f32 %v2202
      %v2210 = vmul.f32 %v2209, %v2207
      %v2211 = vxor.u32 %v2210, 2147483648
      %v2212 = vsel %vm2129, %v2211, %v2210
      %v2213 = vsub.s32 4, %v2189
      %v2214 = vsel %vm2129, %v2213, %v2189
      %v2215 = vsel %vm2128, %v981, %v2212
      %v2216 = vsel %vm2128, 0, %v2214
      %v2217 = vcosq.f32.pop %v2215
      %v2218 = vsinq.f32.pop %v2215
      %vm2219 = vweird.f32 %v981
      %v2220 = vand.u32 %v2216, 3
      %vm2221 = vcmp.lt.s32.totalorder %v2220, 2
      %vm2222 = vcmp.eq.s32.totalorder %v2220, 0
      %v2223 = vxor.u32 %v2218, 2147483648
      %v2224 = vsel %vm2222, %v2217, %v2223
      %vm2225 = vcmp.eq.s32.totalorder %v2220, 2
      %v2226 = vxor.u32 %v2217, 2147483648
      %v2227 = vsel %vm2225, %v2226, %v2218
      %v2228 = vsel %vm2221, %v2224, %v2227
      %v2229 = vsel %vm2219, nan, %v2228
      %v2230 = vand.u32 2147483647, %v982
      %vm2231 = vcmp.le.f32.partialorder %v2230, 0.7853982
      %vm2232 = vcmp.lt.s32.totalorder %v982, 0
      %v2233 = vand.u32 %v982, 2139095040
      %v2234 = vshrl.u32 %v2233, 23
      %v2235 = vsub.s32 %v2234, 127
      %v2236 = vand.u32 2147483647, %v982
      %v2237 = vand.u32 %v2236, 8388607
      %v2238 = vor.u32 %v2237, 8388608
      %v2239 = vsub.s32 0, %v2238
      %v2240 = vadd.s32 %v2235, 1
      %vm2241 = vcmp.gt.s32.totalorder %v2240, 0
      %v2242 = vsel %vm2241, %v2240, 0
      %v2243 = vshrl.u32 %v2242, 5
      %v2244 = vand.u32 %v2242, 31
      %v2245 = vsub.s32 32, %v2244
      %v2246 = vshrl.u32 683565275, %v2245
      %v2247 = vshll.u32 683565275, %v2244
      %v2248 = vshrl.u32 2475754826, %v2245
      %v2249 = vor.u32 %v2247, %v2248
      %v2250 = vshll.u32 2475754826, %v2244
      %v2251 = vshrl.u32 2131351028, %v2245
      %v2252 = vor.u32 %v2250, %v2251
      %v2253 = vshll.u32 2131351028, %v2244
      %v2254 = vshrl.u32 2102212464, %v2245
      %v2255 = vor.u32 %v2253, %v2254
      %v2256 = vshll.u32 2102212464, %v2244
      %v2257 = vshrl.u32 920167782, %v2245
      %v2258 = vor.u32 %v2256, %v2257
      %v2259 = vshll.u32 920167782, %v2244
      %v2260 = vshrl.u32 1326507024, %v2245
      %v2261 = vor.u32 %v2259, %v2260
      %vm2262 = vcmp.lt.s32.totalorder %v2243, 1
      %vm2263 = vcmp.lt.s32.totalorder %v2243, 2
      %vm2264 = vcmp.lt.s32.totalorder %v2243, 3
      %vm2265 = vcmp.lt.s32.totalorder %v2243, 4
      %v2266 = vsel %vm2262, %v2246, %v2249
      %v2267 = vsel %vm2265, %v2255, 2102212464
      %v2268 = vsel %vm2264, %v2252, %v2267
      %v2269 = vsel %vm2263, %v2266, %v2268
      %v2270 = vsel %vm2262, %v2249, %v2252
      %v2271 = vsel %vm2265, %v2258, 920167782
      %v2272 = vsel %vm2264, %v2255, %v2271
      %v2273 = vsel %vm2263, %v2270, %v2272
      %v2274 = vsel %vm2262, %v2252, %v2255
      %v2275 = vsel %vm2265, %v2261, 1326507024
      %v2276 = vsel %vm2264, %v2258, %v2275
      %v2277 = vsel %vm2263, %v2274, %v2276
      %v2278 = vshll.u32 %v2238, 8
      %v2279 = vmul.u32.u64.compose %v2278, %v2277
      %v2280 = vextract.low.u32 %v2279
      %v2281 = vextract.high.u32 %v2279
      %v2282 = vmul.u32.u64.compose %v2278, %v2273
      %v2283 = vextract.low.u32 %v2282
      %v2284 = vextract.high.u32 %v2282
      %v2285 = vmul.u32 %v2278, %v2269
      %v2286 = vadd.s32 %v2281, %v2283
      %vm2287 = vc.u32 %v2281, %v2283
      %v2288 = vadd.s32 %v2284, 1
      %v2289 = vsel %vm2287, %v2288, %v2284
      %v2290 = vadd.s32 %v2285, %v2289
      %v2291 = vadd.s32 %v2290, 536870912
      %v2292 = vshrl.u32 %v2291, 30
      %v2293 = vshll.u32 %v2292, 30
      %v2294 = vsub.s32 %v2290, %v2293
      %vm2295 = vcmp.lt.s32.totalorder %v2294, 0
      %v2296 = vsub.s32 0, %v2294
      %v2297 = vsel %vm2295, %v2296, %v2294
      %v2298 = vclz %v2297
      %v2299 = vsub.s32 %v2298, 2
      %vm2300 = vcmp.gt.s32.totalorder 0, %v2299
      %v2301 = vsel %vm2300, 0, %v2299
      %v2302 = vsub.s32 32, %v2301
      %v2303 = vshll.u32 %v2294, %v2301
      %v2304 = vshrl.u32 %v2286, %v2302
      %v2305 = vor.u32 %v2303, %v2304
      %v2306 = vsub.s32 4294967266, %v2301
      %v2307 = vadd.s32 %v2306, 127
      %v2308 = vshll.u32 %v2307, 23
      %v2309 = vor.u32 4788187, %v2308
      %v2310 = vand.u32 2147483647, %v2309
      %v2312 = vcvt.s32.f32 %v2305
      %v2313 = vmul.f32 %v2312, %v2310
      %v2314 = vxor.u32 %v2313, 2147483648
      %v2315 = vsel %vm2232, %v2314, %v2313
      %v2316 = vsub.s32 4, %v2292
      %v2317 = vsel %vm2232, %v2316, %v2292
      %v2318 = vsel %vm2231, %v982, %v2315
      %v2319 = vsel %vm2231, 0, %v2317
      %v2320 = vcosq.f32.pop %v2318
      %v2321 = vsinq.f32.pop %v2318
      %vm2322 = vweird.f32 %v982
      %v2323 = vand.u32 %v2319, 3
      %vm2324 = vcmp.lt.s32.totalorder %v2323, 2
      %vm2325 = vcmp.eq.s32.totalorder %v2323, 0
      %v2326 = vxor.u32 %v2321, 2147483648
      %v2327 = vsel %vm2325, %v2320, %v2326
      %vm2328 = vcmp.eq.s32.totalorder %v2323, 2
      %v2329 = vxor.u32 %v2320, 2147483648
      %v2330 = vsel %vm2328, %v2329, %v2321
      %v2331 = vsel %vm2324, %v2327, %v2330
      %v2332 = vsel %vm2322, nan, %v2331
      %v2333 = vand.u32 2147483647, %v983
      %vm2334 = vcmp.le.f32.partialorder %v2333, 0.7853982
      %vm2335 = vcmp.lt.s32.totalorder %v983, 0
      %v2336 = vand.u32 %v983, 2139095040
      %v2337 = vshrl.u32 %v2336, 23
      %v2338 = vsub.s32 %v2337, 127
      %v2339 = vand.u32 2147483647, %v983
      %v2340 = vand.u32 %v2339, 8388607
      %v2341 = vor.u32 %v2340, 8388608
      %v2342 = vsub.s32 0, %v2341
      %v2343 = vadd.s32 %v2338, 1
      %vm2344 = vcmp.gt.s32.totalorder %v2343, 0
      %v2345 = vsel %vm2344, %v2343, 0
      %v2346 = vshrl.u32 %v2345, 5
      %v2347 = vand.u32 %v2345, 31
      %v2348 = vsub.s32 32, %v2347
      %v2349 = vshrl.u32 683565275, %v2348
      %v2350 = vshll.u32 683565275, %v2347
      %v2351 = vshrl.u32 2475754826, %v2348
      %v2352 = vor.u32 %v2350, %v2351
      %v2353 = vshll.u32 2475754826, %v2347
      %v2354 = vshrl.u32 2131351028, %v2348
      %v2355 = vor.u32 %v2353, %v2354
      %v2356 = vshll.u32 2131351028, %v2347
      %v2357 = vshrl.u32 2102212464, %v2348
      %v2358 = vor.u32 %v2356, %v2357
      %v2359 = vshll.u32 2102212464, %v2347
      %v2360 = vshrl.u32 920167782, %v2348
      %v2361 = vor.u32 %v2359, %v2360
      %v2362 = vshll.u32 920167782, %v2347
      %v2363 = vshrl.u32 1326507024, %v2348
      %v2364 = vor.u32 %v2362, %v2363
      %vm2365 = vcmp.lt.s32.totalorder %v2346, 1
      %vm2366 = vcmp.lt.s32.totalorder %v2346, 2
      %vm2367 = vcmp.lt.s32.totalorder %v2346, 3
      %vm2368 = vcmp.lt.s32.totalorder %v2346, 4
      %v2369 = vsel %vm2365, %v2349, %v2352
      %v2370 = vsel %vm2368, %v2358, 2102212464
      %v2371 = vsel %vm2367, %v2355, %v2370
      %v2372 = vsel %vm2366, %v2369, %v2371
      %v2373 = vsel %vm2365, %v2352, %v2355
      %v2374 = vsel %vm2368, %v2361, 920167782
      %v2375 = vsel %vm2367, %v2358, %v2374
      %v2376 = vsel %vm2366, %v2373, %v2375
      %v2377 = vsel %vm2365, %v2355, %v2358
      %v2378 = vsel %vm2368, %v2364, 1326507024
      %v2379 = vsel %vm2367, %v2361, %v2378
      %v2380 = vsel %vm2366, %v2377, %v2379
      %v2381 = vshll.u32 %v2341, 8
      %v2382 = vmul.u32.u64.compose %v2381, %v2380
      %v2383 = vextract.low.u32 %v2382
      %v2384 = vextract.high.u32 %v2382
      %v2385 = vmul.u32.u64.compose %v2381, %v2376
      %v2386 = vextract.low.u32 %v2385
      %v2387 = vextract.high.u32 %v2385
      %v2388 = vmul.u32 %v2381, %v2372
      %v2389 = vadd.s32 %v2384, %v2386
      %vm2390 = vc.u32 %v2384, %v2386
      %v2391 = vadd.s32 %v2387, 1
      %v2392 = vsel %vm2390, %v2391, %v2387
      %v2393 = vadd.s32 %v2388, %v2392
      %v2394 = vadd.s32 %v2393, 536870912
      %v2395 = vshrl.u32 %v2394, 30
      %v2396 = vshll.u32 %v2395, 30
      %v2397 = vsub.s32 %v2393, %v2396
      %vm2398 = vcmp.lt.s32.totalorder %v2397, 0
      %v2399 = vsub.s32 0, %v2397
      %v2400 = vsel %vm2398, %v2399, %v2397
      %v2401 = vclz %v2400
      %v2402 = vsub.s32 %v2401, 2
      %vm2403 = vcmp.gt.s32.totalorder 0, %v2402
      %v2404 = vsel %vm2403, 0, %v2402
      %v2405 = vsub.s32 32, %v2404
      %v2406 = vshll.u32 %v2397, %v2404
      %v2407 = vshrl.u32 %v2389, %v2405
      %v2408 = vor.u32 %v2406, %v2407
      %v2409 = vsub.s32 4294967266, %v2404
      %v2410 = vadd.s32 %v2409, 127
      %v2411 = vshll.u32 %v2410, 23
      %v2412 = vor.u32 4788187, %v2411
      %v2413 = vand.u32 2147483647, %v2412
      %v2415 = vcvt.s32.f32 %v2408
      %v2416 = vmul.f32 %v2415, %v2413
      %v2417 = vxor.u32 %v2416, 2147483648
      %v2418 = vsel %vm2335, %v2417, %v2416
      %v2419 = vsub.s32 4, %v2395
      %v2420 = vsel %vm2335, %v2419, %v2395
      %v2421 = vsel %vm2334, %v983, %v2418
      %v2422 = vsel %vm2334, 0, %v2420
      %v2423 = vcosq.f32.pop %v2421
      %v2424 = vsinq.f32.pop %v2421
      %vm2425 = vweird.f32 %v983
      %v2426 = vand.u32 %v2422, 3
      %vm2427 = vcmp.lt.s32.totalorder %v2426, 2
      %vm2428 = vcmp.eq.s32.totalorder %v2426, 0
      %v2429 = vxor.u32 %v2424, 2147483648
      %v2430 = vsel %vm2428, %v2423, %v2429
      %vm2431 = vcmp.eq.s32.totalorder %v2426, 2
      %v2432 = vxor.u32 %v2423, 2147483648
      %v2433 = vsel %vm2431, %v2432, %v2424
      %v2434 = vsel %vm2427, %v2430, %v2433
      %v2435 = vsel %vm2425, nan, %v2434
      %v2436 = vand.u32 2147483647, %v984
      %vm2437 = vcmp.le.f32.partialorder %v2436, 0.7853982
      %vm2438 = vcmp.lt.s32.totalorder %v984, 0
      %v2439 = vand.u32 %v984, 2139095040
      %v2440 = vshrl.u32 %v2439, 23
      %v2441 = vsub.s32 %v2440, 127
      %v2442 = vand.u32 2147483647, %v984
      %v2443 = vand.u32 %v2442, 8388607
      %v2444 = vor.u32 %v2443, 8388608
      %v2445 = vsub.s32 0, %v2444
      %v2446 = vadd.s32 %v2441, 1
      %vm2447 = vcmp.gt.s32.totalorder %v2446, 0
      %v2448 = vsel %vm2447, %v2446, 0
      %v2449 = vshrl.u32 %v2448, 5
      %v2450 = vand.u32 %v2448, 31
      %v2451 = vsub.s32 32, %v2450
      %v2452 = vshrl.u32 683565275, %v2451
      %v2453 = vshll.u32 683565275, %v2450
      %v2454 = vshrl.u32 2475754826, %v2451
      %v2455 = vor.u32 %v2453, %v2454
      %v2456 = vshll.u32 2475754826, %v2450
      %v2457 = vshrl.u32 2131351028, %v2451
      %v2458 = vor.u32 %v2456, %v2457
      %v2459 = vshll.u32 2131351028, %v2450
      %v2460 = vshrl.u32 2102212464, %v2451
      %v2461 = vor.u32 %v2459, %v2460
      %v2462 = vshll.u32 2102212464, %v2450
      %v2463 = vshrl.u32 920167782, %v2451
      %v2464 = vor.u32 %v2462, %v2463
      %v2465 = vshll.u32 920167782, %v2450
      %v2466 = vshrl.u32 1326507024, %v2451
      %v2467 = vor.u32 %v2465, %v2466
      %vm2468 = vcmp.lt.s32.totalorder %v2449, 1
      %vm2469 = vcmp.lt.s32.totalorder %v2449, 2
      %vm2470 = vcmp.lt.s32.totalorder %v2449, 3
      %vm2471 = vcmp.lt.s32.totalorder %v2449, 4
      %v2472 = vsel %vm2468, %v2452, %v2455
      %v2473 = vsel %vm2471, %v2461, 2102212464
      %v2474 = vsel %vm2470, %v2458, %v2473
      %v2475 = vsel %vm2469, %v2472, %v2474
      %v2476 = vsel %vm2468, %v2455, %v2458
      %v2477 = vsel %vm2471, %v2464, 920167782
      %v2478 = vsel %vm2470, %v2461, %v2477
      %v2479 = vsel %vm2469, %v2476, %v2478
      %v2480 = vsel %vm2468, %v2458, %v2461
      %v2481 = vsel %vm2471, %v2467, 1326507024
      %v2482 = vsel %vm2470, %v2464, %v2481
      %v2483 = vsel %vm2469, %v2480, %v2482
      %v2484 = vshll.u32 %v2444, 8
      %v2485 = vmul.u32.u64.compose %v2484, %v2483
      %v2486 = vextract.low.u32 %v2485
      %v2487 = vextract.high.u32 %v2485
      %v2488 = vmul.u32.u64.compose %v2484, %v2479
      %v2489 = vextract.low.u32 %v2488
      %v2490 = vextract.high.u32 %v2488
      %v2491 = vmul.u32 %v2484, %v2475
      %v2492 = vadd.s32 %v2487, %v2489
      %vm2493 = vc.u32 %v2487, %v2489
      %v2494 = vadd.s32 %v2490, 1
      %v2495 = vsel %vm2493, %v2494, %v2490
      %v2496 = vadd.s32 %v2491, %v2495
      %v2497 = vadd.s32 %v2496, 536870912
      %v2498 = vshrl.u32 %v2497, 30
      %v2499 = vshll.u32 %v2498, 30
      %v2500 = vsub.s32 %v2496, %v2499
      %vm2501 = vcmp.lt.s32.totalorder %v2500, 0
      %v2502 = vsub.s32 0, %v2500
      %v2503 = vsel %vm2501, %v2502, %v2500
      %v2504 = vclz %v2503
      %v2505 = vsub.s32 %v2504, 2
      %vm2506 = vcmp.gt.s32.totalorder 0, %v2505
      %v2507 = vsel %vm2506, 0, %v2505
      %v2508 = vsub.s32 32, %v2507
      %v2509 = vshll.u32 %v2500, %v2507
      %v2510 = vshrl.u32 %v2492, %v2508
      %v2511 = vor.u32 %v2509, %v2510
      %v2512 = vsub.s32 4294967266, %v2507
      %v2513 = vadd.s32 %v2512, 127
      %v2514 = vshll.u32 %v2513, 23
      %v2515 = vor.u32 4788187, %v2514
      %v2516 = vand.u32 2147483647, %v2515
      %v2518 = vcvt.s32.f32 %v2511
      %v2519 = vmul.f32 %v2518, %v2516
      %v2520 = vxor.u32 %v2519, 2147483648
      %v2521 = vsel %vm2438, %v2520, %v2519
      %v2522 = vsub.s32 4, %v2498
      %v2523 = vsel %vm2438, %v2522, %v2498
      %v2524 = vsel %vm2437, %v984, %v2521
      %v2525 = vsel %vm2437, 0, %v2523
      %v2526 = vcosq.f32.pop %v2524
      %v2527 = vsinq.f32.pop %v2524
      %vm2528 = vweird.f32 %v984
      %v2529 = vand.u32 %v2525, 3
      %vm2530 = vcmp.lt.s32.totalorder %v2529, 2
      %vm2531 = vcmp.eq.s32.totalorder %v2529, 0
      %v2532 = vxor.u32 %v2527, 2147483648
      %v2533 = vsel %vm2531, %v2526, %v2532
      %vm2534 = vcmp.eq.s32.totalorder %v2529, 2
      %v2535 = vxor.u32 %v2526, 2147483648
      %v2536 = vsel %vm2534, %v2535, %v2527
      %v2537 = vsel %vm2530, %v2533, %v2536
      %v2538 = vsel %vm2528, nan, %v2537
      %v2539 = vand.u32 2147483647, %v985
      %vm2540 = vcmp.le.f32.partialorder %v2539, 0.7853982
      %vm2541 = vcmp.lt.s32.totalorder %v985, 0
      %v2542 = vand.u32 %v985, 2139095040
      %v2543 = vshrl.u32 %v2542, 23
      %v2544 = vsub.s32 %v2543, 127
      %v2545 = vand.u32 2147483647, %v985
      %v2546 = vand.u32 %v2545, 8388607
      %v2547 = vor.u32 %v2546, 8388608
      %v2548 = vsub.s32 0, %v2547
      %v2549 = vadd.s32 %v2544, 1
      %vm2550 = vcmp.gt.s32.totalorder %v2549, 0
      %v2551 = vsel %vm2550, %v2549, 0
      %v2552 = vshrl.u32 %v2551, 5
      %v2553 = vand.u32 %v2551, 31
      %v2554 = vsub.s32 32, %v2553
      %v2555 = vshrl.u32 683565275, %v2554
      %v2556 = vshll.u32 683565275, %v2553
      %v2557 = vshrl.u32 2475754826, %v2554
      %v2558 = vor.u32 %v2556, %v2557
      %v2559 = vshll.u32 2475754826, %v2553
      %v2560 = vshrl.u32 2131351028, %v2554
      %v2561 = vor.u32 %v2559, %v2560
      %v2562 = vshll.u32 2131351028, %v2553
      %v2563 = vshrl.u32 2102212464, %v2554
      %v2564 = vor.u32 %v2562, %v2563
      %v2565 = vshll.u32 2102212464, %v2553
      %v2566 = vshrl.u32 920167782, %v2554
      %v2567 = vor.u32 %v2565, %v2566
      %v2568 = vshll.u32 920167782, %v2553
      %v2569 = vshrl.u32 1326507024, %v2554
      %v2570 = vor.u32 %v2568, %v2569
      %vm2571 = vcmp.lt.s32.totalorder %v2552, 1
      %vm2572 = vcmp.lt.s32.totalorder %v2552, 2
      %vm2573 = vcmp.lt.s32.totalorder %v2552, 3
      %vm2574 = vcmp.lt.s32.totalorder %v2552, 4
      %v2575 = vsel %vm2571, %v2555, %v2558
      %v2576 = vsel %vm2574, %v2564, 2102212464
      %v2577 = vsel %vm2573, %v2561, %v2576
      %v2578 = vsel %vm2572, %v2575, %v2577
      %v2579 = vsel %vm2571, %v2558, %v2561
      %v2580 = vsel %vm2574, %v2567, 920167782
      %v2581 = vsel %vm2573, %v2564, %v2580
      %v2582 = vsel %vm2572, %v2579, %v2581
      %v2583 = vsel %vm2571, %v2561, %v2564
      %v2584 = vsel %vm2574, %v2570, 1326507024
      %v2585 = vsel %vm2573, %v2567, %v2584
      %v2586 = vsel %vm2572, %v2583, %v2585
      %v2587 = vshll.u32 %v2547, 8
      %v2588 = vmul.u32.u64.compose %v2587, %v2586
      %v2589 = vextract.low.u32 %v2588
      %v2590 = vextract.high.u32 %v2588
      %v2591 = vmul.u32.u64.compose %v2587, %v2582
      %v2592 = vextract.low.u32 %v2591
      %v2593 = vextract.high.u32 %v2591
      %v2594 = vmul.u32 %v2587, %v2578
      %v2595 = vadd.s32 %v2590, %v2592
      %vm2596 = vc.u32 %v2590, %v2592
      %v2597 = vadd.s32 %v2593, 1
      %v2598 = vsel %vm2596, %v2597, %v2593
      %v2599 = vadd.s32 %v2594, %v2598
      %v2600 = vadd.s32 %v2599, 536870912
      %v2601 = vshrl.u32 %v2600, 30
      %v2602 = vshll.u32 %v2601, 30
      %v2603 = vsub.s32 %v2599, %v2602
      %vm2604 = vcmp.lt.s32.totalorder %v2603, 0
      %v2605 = vsub.s32 0, %v2603
      %v2606 = vsel %vm2604, %v2605, %v2603
      %v2607 = vclz %v2606
      %v2608 = vsub.s32 %v2607, 2
      %vm2609 = vcmp.gt.s32.totalorder 0, %v2608
      %v2610 = vsel %vm2609, 0, %v2608
      %v2611 = vsub.s32 32, %v2610
      %v2612 = vshll.u32 %v2603, %v2610
      %v2613 = vshrl.u32 %v2595, %v2611
      %v2614 = vor.u32 %v2612, %v2613
      %v2615 = vsub.s32 4294967266, %v2610
      %v2616 = vadd.s32 %v2615, 127
      %v2617 = vshll.u32 %v2616, 23
      %v2618 = vor.u32 4788187, %v2617
      %v2619 = vand.u32 2147483647, %v2618
      %v2621 = vcvt.s32.f32 %v2614
      %v2622 = vmul.f32 %v2621, %v2619
      %v2623 = vxor.u32 %v2622, 2147483648
      %v2624 = vsel %vm2541, %v2623, %v2622
      %v2625 = vsub.s32 4, %v2601
      %v2626 = vsel %vm2541, %v2625, %v2601
      %v2627 = vsel %vm2540, %v985, %v2624
      %v2628 = vsel %vm2540, 0, %v2626
      %v2629 = vcosq.f32.pop %v2627
      %v2630 = vsinq.f32.pop %v2627
      %vm2631 = vweird.f32 %v985
      %v2632 = vand.u32 %v2628, 3
      %vm2633 = vcmp.lt.s32.totalorder %v2632, 2
      %vm2634 = vcmp.eq.s32.totalorder %v2632, 0
      %v2635 = vxor.u32 %v2630, 2147483648
      %v2636 = vsel %vm2634, %v2629, %v2635
      %vm2637 = vcmp.eq.s32.totalorder %v2632, 2
      %v2638 = vxor.u32 %v2629, 2147483648
      %v2639 = vsel %vm2637, %v2638, %v2630
      %v2640 = vsel %vm2633, %v2636, %v2639
      %v2641 = vsel %vm2631, nan, %v2640
      %2642 = vrot.lane.b32.xlu0 %v422, 8
      %v2643 = vpop.permute.xlu0 %2642
      %2644 = vrot.lane.b32.xlu0 %v423, 8
      %v2645 = vpop.permute.xlu0 %2644
      %2646 = vrot.lane.b32.xlu0 %v424, 8
      %v2647 = vpop.permute.xlu0 %2646
      %2648 = vrot.lane.b32.xlu0 %v425, 8
      %v2649 = vpop.permute.xlu0 %2648
      %2650 = vrot.lane.b32.xlu0 %v426, 8
      %v2651 = vpop.permute.xlu0 %2650
      %2652 = vrot.lane.b32.xlu0 %v427, 8
      %v2653 = vpop.permute.xlu0 %2652
      %2654 = vrot.lane.b32.xlu0 %v428, 8
      %v2655 = vpop.permute.xlu0 %2654
      %2656 = vrot.lane.b32.xlu0 %v429, 8
      %v2657 = vpop.permute.xlu0 %2656
      %2674 = vrot.lane.b32.xlu0 %v1089, 11
      %v2675 = vpop.permute.xlu0 %2674
      %2676 = vrot.lane.b32.xlu0 %v1193, 11
      %v2677 = vpop.permute.xlu0 %2676
      %2678 = vrot.lane.b32.xlu0 %v1297, 11
      %v2679 = vpop.permute.xlu0 %2678
      %2680 = vrot.lane.b32.xlu0 %v1401, 11
      %v2681 = vpop.permute.xlu0 %2680
      %2682 = vrot.lane.b32.xlu0 %v1505, 11
      %v2683 = vpop.permute.xlu0 %2682
      %2684 = vrot.lane.b32.xlu0 %v1609, 11
      %v2685 = vpop.permute.xlu0 %2684
      %2686 = vrot.lane.b32.xlu0 %v1713, 11
      %v2687 = vpop.permute.xlu0 %2686
      %2688 = vrot.lane.b32.xlu0 %v1817, 11
      %v2689 = vpop.permute.xlu0 %2688
      %2706 = vrot.lane.b32.xlu0 %v1920, 23
      %v2707 = vpop.permute.xlu0 %2706
      %2708 = vrot.lane.b32.xlu0 %v2023, 23
      %v2709 = vpop.permute.xlu0 %2708
      %2710 = vrot.lane.b32.xlu0 %v2126, 23
      %v2711 = vpop.permute.xlu0 %2710
      %2712 = vrot.lane.b32.xlu0 %v2229, 23
      %v2713 = vpop.permute.xlu0 %2712
      %2714 = vrot.lane.b32.xlu0 %v2332, 23
      %v2715 = vpop.permute.xlu0 %2714
      %2716 = vrot.lane.b32.xlu0 %v2435, 23
      %v2717 = vpop.permute.xlu0 %2716
      %2718 = vrot.lane.b32.xlu0 %v2538, 23
      %v2719 = vpop.permute.xlu0 %2718
      %2720 = vrot.lane.b32.xlu0 %v2641, 23
      %v2721 = vpop.permute.xlu0 %2720
      %vm2730 = vcmask 64512
      %v2731 = vsel %vm2730, %v794, %v2643
      %v2732 = vsel %vm2730, %v799, %v2645
      %v2733 = vsel %vm2730, %v804, %v2647
      %v2734 = vsel %vm2730, %v809, %v2649
      %v2735 = vsel %vm2730, %v814, %v2651
      %v2736 = vsel %vm2730, %v819, %v2653
      %v2737 = vsel %vm2730, %v824, %v2655
      %v2738 = vsel %vm2730, %v829, %v2657
      %vm2739 = vcmask 89088
      %v2740 = vsel %vm2739, %v2731, %v2675
      %v2741 = vsel %vm2739, %v2732, %v2677
      %v2742 = vsel %vm2739, %v2733, %v2679
      %v2743 = vsel %vm2739, %v2734, %v2681
      %v2744 = vsel %vm2739, %v2735, %v2683
      %v2745 = vsel %vm2739, %v2736, %v2685
      %v2746 = vsel %vm2739, %v2737, %v2687
      %v2747 = vsel %vm2739, %v2738, %v2689
      %vm2748 = vcmask 187392
      %v2749 = vsel %vm2748, %v2740, %v2707
      %v2750 = vsel %vm2748, %v2741, %v2709
      %v2751 = vsel %vm2748, %v2742, %v2711
      %v2752 = vsel %vm2748, %v2743, %v2713
      %v2753 = vsel %vm2748, %v2744, %v2715
      %v2754 = vsel %vm2748, %v2745, %v2717
      %v2755 = vsel %vm2748, %v2746, %v2719
      %v2756 = vsel %vm2748, %v2747, %v2721
      %v2757 = vld [vmem:[%s4] sm:$0xf]
      %v2758 = vld [vmem:[%s4 + $0x4] sm:$0xf]
      %v2759 = vld [vmem:[%s4 + $0x8] sm:$0xf]
      %v2760 = vld [vmem:[%s4 + $0xc] sm:$0xf]
      %v2761 = vld [vmem:[%s4 + $0x10] sm:$0x3]
      %v2762 = vld [vmem:[%s4 + $0x18] sm:$0xf]
      %v2763 = vld [vmem:[%s4 + $0x1c] sm:$0xf]
      %v2764 = vld [vmem:[%s4 + $0x20] sm:$0xf]
      %v2765 = vld [vmem:[%s4 + $0x24] sm:$0xf]
      %v2766 = vld [vmem:[%s4 + $0x28] sm:$0xf]
      %v2767 = vld [vmem:[%s4 + $0x2c] sm:$0xf]
      %v2768 = vld [vmem:[%s4 + $0x30] sm:$0xf]
      %v2769 = vld [vmem:[%s4 + $0x34] sm:$0xf]
      %v2770 = vld [vmem:[%s4 + $0x38] sm:$0xf]
      %v2771 = vld [vmem:[%s4 + $0x3c] sm:$0xf]
      %v2772 = vld [vmem:[%s4 + $0x40] sm:$0xf]
      %v2773 = vld [vmem:[%s4 + $0x44] sm:$0xf]
      %v2774 = vld [vmem:[%s4 + $0x48] sm:$0xf]
      %v2775 = vld [vmem:[%s4 + $0x4c] sm:$0xf]
      %v2776 = vld [vmem:[%s4 + $0x50] sm:$0xf]
      %v2777 = vld [vmem:[%s4 + $0x54] sm:$0xf]
      %v2778 = vld [vmem:[%s4 + $0x58] sm:$0xf]
      %v2779 = vld [vmem:[%s4 + $0x5c] sm:$0xf]
      %v2780 = vld [vmem:[%s4 + $0x60] sm:$0xf]
      %v2781 = vld [vmem:[%s4 + $0x64] sm:$0xf]
      %v2782 = vld [vmem:[%s5] sm:$0x1]
      %v2783 = vld [vmem:[%s5 + $0x1] sm:$0x1]
      %v2784 = vld [vmem:[%s5 + $0x2] sm:$0x1]
      %v2785 = vld [vmem:[%s5 + $0x3] sm:$0x1]
      %v2786 = vld [vmem:[%s5 + $0x4] sm:$0x1]
      %v2787 = vpack.c.bf16 %v2750, %v2749
      %v2788 = vpack.c.bf16 %v2752, %v2751
      %v2789 = vpack.c.bf16 %v2754, %v2753
      %v2790 = vpack.c.bf16 %v2756, %v2755
      %v2791 = vlaneseq
      %v2792 = vshrl.u32 %v2791, 7
      %v2793 = vsub.s32 0, %v2792
      %v2794 = vrot.slane %v2782, %v2793
      %v2800 = vunpack.c.l.b16 %v2757
      %v2801 = vunpack.c.l.b16 %v2758
      %v2802 = vunpack.c.l.b16 %v2759
      %v2803 = vunpack.c.l.b16 %v2760
      %v2804 = vunpack.c.l.b16 %v2761
      %v2805 = vpack.c.b16 %v2801, %v2800
      %v2806 = vpack.c.b16 %v2803, %v2802
      %v2807 = vpack.c.b16 %v2804, %v2804
      %vm2810 = vcmask 285696
      %v2812 = vsel %vm2810, %v2787, 0
      %v2815 = vsel %vm2810, %v2788, 0
      %v2818 = vsel %vm2810, %v2789, 0
      %v2821 = vsel %vm2810, %v2790, 0
      %vm2823 = vcmask 1040384
      %vm2824 = vcmask 1041408
      %v2825 = vsel %vm2823, 4294967295, 65535
      %v2826 = vsel %vm2824, %v2825, 0
      %v2828 = vand.u32 %v2807, %v2826
      %2830 = vmatprep.subr.bf16.mxu0 0
      %2831 = vmatpush1.bf16.msra.mxu0 0
      %2832 = vmatprep.subr.bf16.mxu0 0
      %2833 = vmatpush1.bf16.msra.mxu0 0
      %2834 = vmatprep.subr.bf16.mxu0 0
      %2835 = vmatpush1.bf16.msra.mxu0 0
      %2836 = vmatprep.subr.bf16.mxu0 0
      %2837 = vmatpush1.bf16.msra.mxu0 0
      %2838 = vmatprep.subr.bf16.mxu0 0
      %2839 = vmatpush1.bf16.msra.mxu0 0
      %2840 = vmatprep.subr.bf16.mxu0 0
      %2841 = vmatpush1.bf16.msra.mxu0 %v2828
      %2842 = vmatprep.subr.bf16.mxu0 0
      %2843 = vmatpush1.bf16.msra.mxu0 %v2806
      %2844 = vmatprep.subr.bf16.mxu0 0
      %2845 = vmatpush1.bf16.msra.mxu0 %v2805
      %2846 = vmatprep.subr.bf16.mxu0 0
      %2847 = vmatpush2.bf16.msra.mxu0 0
      %2848 = vmatprep.subr.bf16.mxu0 0
      %2849 = vmatpush2.bf16.msra.mxu0 0
      %2850 = vmatprep.subr.bf16.mxu0 0
      %2851 = vmatpush2.bf16.msra.mxu0 0
      %2852 = vmatprep.subr.bf16.mxu0 0
      %2853 = vmatpush2.bf16.msra.mxu0 0
      %2854 = vmatprep.subr.bf16.mxu0 0
      %2855 = vmatpush2.bf16.msra.mxu0 0
      %2856 = vmatprep.subr.bf16.mxu0 0
      %2857 = vmatpush2.bf16.msra.mxu0 0
      %2858 = vmatprep.subr.bf16.mxu0 0
      %2859 = vmatpush2.bf16.msra.mxu0 0
      %2860 = vmatprep.subr.bf16.mxu0 0
      %2861 = vmatpush2.bf16.msra.mxu0 0
      %2862 = vmatprep.mubr.bf16.mxu0 0
      %2863 = vmatmul.mubr.bf16.gmra.mxu0 %v2812
      %v2864 = vpop.f32.mrf.mxu0
      %v2865 = vadd.f32 %v2794, %v2864
      %v2866 = vpop.f32.mrf.mxu0
      %v2867 = vpop.f32.mrf.mxu0
      %v2868 = vadd.f32 %v2794, %v2867
      %v2869 = vpop.f32.mrf.mxu0
      %2870 = vmatprep.mubr.bf16.mxu0 0
      %2871 = vmatmul.mubr.bf16.gmra.mxu0 %v2815
      %v2872 = vpop.f32.mrf.mxu0
      %v2873 = vadd.f32 %v2794, %v2872
      %v2874 = vpop.f32.mrf.mxu0
      %v2875 = vpop.f32.mrf.mxu0
      %v2876 = vadd.f32 %v2794, %v2875
      %v2877 = vpop.f32.mrf.mxu0
      %2878 = vmatprep.mubr.bf16.mxu0 0
      %2879 = vmatmul.mubr.bf16.gmra.mxu0 %v2818
      %v2880 = vpop.f32.mrf.mxu0
      %v2881 = vadd.f32 %v2794, %v2880
      %v2882 = vpop.f32.mrf.mxu0
      %v2883 = vpop.f32.mrf.mxu0
      %v2884 = vadd.f32 %v2794, %v2883
      %v2885 = vpop.f32.mrf.mxu0
      %2886 = vmatprep.mubr.bf16.mxu0 0
      %2887 = vmatmul.mubr.bf16.gmra.mxu0 %v2821
      %v2888 = vpop.f32.mrf.mxu0
      %v2889 = vadd.f32 %v2794, %v2888
      %v2890 = vpop.f32.mrf.mxu0
      %v2891 = vpop.f32.mrf.mxu0
      %v2892 = vadd.f32 %v2794, %v2891
      %v2893 = vpop.f32.mrf.mxu0
      %2894 = vdwg.mxu0
      %vm2895 = vcmp.ge.f32.partialorder %v2865, 0.0
      %vm2896 = vcmp.ge.f32.partialorder %v2868, 0.0
      %vm2897 = vcmp.ge.f32.partialorder %v2873, 0.0
      %vm2898 = vcmp.ge.f32.partialorder %v2876, 0.0
      %vm2899 = vcmp.ge.f32.partialorder %v2881, 0.0
      %vm2900 = vcmp.ge.f32.partialorder %v2884, 0.0
      %vm2901 = vcmp.ge.f32.partialorder %v2889, 0.0
      %vm2902 = vcmp.ge.f32.partialorder %v2892, 0.0
      %v2903 = vmul.f32 %v2865, 0.01
      %v2904 = vmul.f32 %v2868, 0.01
      %v2905 = vmul.f32 %v2873, 0.01
      %v2906 = vmul.f32 %v2876, 0.01
      %v2907 = vmul.f32 %v2881, 0.01
      %v2908 = vmul.f32 %v2884, 0.01
      %v2909 = vmul.f32 %v2889, 0.01
      %v2910 = vmul.f32 %v2892, 0.01
      %v2911 = vsel %vm2895, %v2865, %v2903
      %v2912 = vsel %vm2896, %v2868, %v2904
      %v2913 = vsel %vm2897, %v2873, %v2905
      %v2914 = vsel %vm2898, %v2876, %v2906
      %v2915 = vsel %vm2899, %v2881, %v2907
      %v2916 = vsel %vm2900, %v2884, %v2908
      %v2917 = vsel %vm2901, %v2889, %v2909
      %v2918 = vsel %vm2902, %v2892, %v2910
      %v2919 = vpack.c.bf16 %v2912, %v2911
      %v2920 = vpack.c.bf16 %v2914, %v2913
      %v2921 = vpack.c.bf16 %v2916, %v2915
      %v2922 = vpack.c.bf16 %v2918, %v2917
      %v2923 = vlaneseq
      %v2924 = vshrl.u32 %v2923, 7
      %v2925 = vsub.s32 0, %v2924
      %v2926 = vrot.slane %v2783, %v2925
      %v2931 = vunpack.c.l.b16 %v2762
      %v2932 = vunpack.c.l.b16 %v2763
      %v2933 = vunpack.c.l.b16 %v2764
      %v2934 = vunpack.c.l.b16 %v2765
      %v2935 = vpack.c.b16 %v2932, %v2931
      %v2936 = vpack.c.b16 %v2934, %v2933
      %vm2939 = vcmask 261120
      %v2941 = vsel %vm2939, %v2919, 0
      %v2944 = vsel %vm2939, %v2920, 0
      %v2947 = vsel %vm2939, %v2921, 0
      %v2950 = vsel %vm2939, %v2922, 0
      %2952 = vmatprep.subr.bf16.mxu0 0
      %2953 = vmatpush1.bf16.msra.mxu0 0
      %2954 = vmatprep.subr.bf16.mxu0 0
      %2955 = vmatpush1.bf16.msra.mxu0 0
      %2956 = vmatprep.subr.bf16.mxu0 0
      %2957 = vmatpush1.bf16.msra.mxu0 0
      %2958 = vmatprep.subr.bf16.mxu0 0
      %2959 = vmatpush1.bf16.msra.mxu0 0
      %2960 = vmatprep.subr.bf16.mxu0 0
      %2961 = vmatpush1.bf16.msra.mxu0 0
      %2962 = vmatprep.subr.bf16.mxu0 0
      %2963 = vmatpush1.bf16.msra.mxu0 0
      %2964 = vmatprep.subr.bf16.mxu0 0
      %2965 = vmatpush1.bf16.msra.mxu0 %v2936
      %2966 = vmatprep.subr.bf16.mxu0 0
      %2967 = vmatpush1.bf16.msra.mxu0 %v2935
      %2968 = vmatprep.subr.bf16.mxu0 0
      %2969 = vmatpush2.bf16.msra.mxu0 0
      %2970 = vmatprep.subr.bf16.mxu0 0
      %2971 = vmatpush2.bf16.msra.mxu0 0
      %2972 = vmatprep.subr.bf16.mxu0 0
      %2973 = vmatpush2.bf16.msra.mxu0 0
      %2974 = vmatprep.subr.bf16.mxu0 0
      %2975 = vmatpush2.bf16.msra.mxu0 0
      %2976 = vmatprep.subr.bf16.mxu0 0
      %2977 = vmatpush2.bf16.msra.mxu0 0
      %2978 = vmatprep.subr.bf16.mxu0 0
      %2979 = vmatpush2.bf16.msra.mxu0 0
      %2980 = vmatprep.subr.bf16.mxu0 0
      %2981 = vmatpush2.bf16.msra.mxu0 0
      %2982 = vmatprep.subr.bf16.mxu0 0
      %2983 = vmatpush2.bf16.msra.mxu0 0
      %2984 = vmatprep.mubr.bf16.mxu0 0
      %2985 = vmatmul.mubr.bf16.gmra.mxu0 %v2941
      %v2986 = vpop.f32.mrf.mxu0
      %v2987 = vadd.f32 %v2926, %v2986
      %v2988 = vpop.f32.mrf.mxu0
      %v2989 = vpop.f32.mrf.mxu0
      %v2990 = vadd.f32 %v2926, %v2989
      %v2991 = vpop.f32.mrf.mxu0
      %2992 = vmatprep.mubr.bf16.mxu0 0
      %2993 = vmatmul.mubr.bf16.gmra.mxu0 %v2944
      %v2994 = vpop.f32.mrf.mxu0
      %v2995 = vadd.f32 %v2926, %v2994
      %v2996 = vpop.f32.mrf.mxu0
      %v2997 = vpop.f32.mrf.mxu0
      %v2998 = vadd.f32 %v2926, %v2997
      %v2999 = vpop.f32.mrf.mxu0
      %3000 = vmatprep.mubr.bf16.mxu0 0
      %3001 = vmatmul.mubr.bf16.gmra.mxu0 %v2947
      %v3002 = vpop.f32.mrf.mxu0
      %v3003 = vadd.f32 %v2926, %v3002
      %v3004 = vpop.f32.mrf.mxu0
      %v3005 = vpop.f32.mrf.mxu0
      %v3006 = vadd.f32 %v2926, %v3005
      %v3007 = vpop.f32.mrf.mxu0
      %3008 = vmatprep.mubr.bf16.mxu0 0
      %3009 = vmatmul.mubr.bf16.gmra.mxu0 %v2950
      %v3010 = vpop.f32.mrf.mxu0
      %v3011 = vadd.f32 %v2926, %v3010
      %v3012 = vpop.f32.mrf.mxu0
      %v3013 = vpop.f32.mrf.mxu0
      %v3014 = vadd.f32 %v2926, %v3013
      %v3015 = vpop.f32.mrf.mxu0
      %3016 = vdwg.mxu0
      %vm3017 = vcmp.ge.f32.partialorder %v2987, 0.0
      %vm3018 = vcmp.ge.f32.partialorder %v2990, 0.0
      %vm3019 = vcmp.ge.f32.partialorder %v2995, 0.0
      %vm3020 = vcmp.ge.f32.partialorder %v2998, 0.0
      %vm3021 = vcmp.ge.f32.partialorder %v3003, 0.0
      %vm3022 = vcmp.ge.f32.partialorder %v3006, 0.0
      %vm3023 = vcmp.ge.f32.partialorder %v3011, 0.0
      %vm3024 = vcmp.ge.f32.partialorder %v3014, 0.0
      %v3025 = vmul.f32 %v2987, 0.01
      %v3026 = vmul.f32 %v2990, 0.01
      %v3027 = vmul.f32 %v2995, 0.01
      %v3028 = vmul.f32 %v2998, 0.01
      %v3029 = vmul.f32 %v3003, 0.01
      %v3030 = vmul.f32 %v3006, 0.01
      %v3031 = vmul.f32 %v3011, 0.01
      %v3032 = vmul.f32 %v3014, 0.01
      %v3033 = vsel %vm3017, %v2987, %v3025
      %v3034 = vsel %vm3018, %v2990, %v3026
      %v3035 = vsel %vm3019, %v2995, %v3027
      %v3036 = vsel %vm3020, %v2998, %v3028
      %v3037 = vsel %vm3021, %v3003, %v3029
      %v3038 = vsel %vm3022, %v3006, %v3030
      %v3039 = vsel %vm3023, %v3011, %v3031
      %v3040 = vsel %vm3024, %v3014, %v3032
      %v3041 = vpack.c.bf16 %v3034, %v3033
      %v3042 = vpack.c.bf16 %v3036, %v3035
      %v3043 = vpack.c.bf16 %v3038, %v3037
      %v3044 = vpack.c.bf16 %v3040, %v3039
      %v3045 = vlaneseq
      %v3046 = vshrl.u32 %v3045, 7
      %v3047 = vsub.s32 0, %v3046
      %v3048 = vrot.slane %v2784, %v3047
      %v3053 = vunpack.c.l.b16 %v2766
      %v3054 = vunpack.c.l.b16 %v2767
      %v3055 = vunpack.c.l.b16 %v2768
      %v3056 = vunpack.c.l.b16 %v2769
      %v3057 = vpack.c.b16 %v3054, %v3053
      %v3058 = vpack.c.b16 %v3056, %v3055
      %v3062 = vsel %vm2939, %v3041, 0
      %v3065 = vsel %vm2939, %v3042, 0
      %v3068 = vsel %vm2939, %v3043, 0
      %v3071 = vsel %vm2939, %v3044, 0
      %3073 = vmatprep.subr.bf16.mxu0 0
      %3074 = vmatpush1.bf16.msra.mxu0 0
      %3075 = vmatprep.subr.bf16.mxu0 0
      %3076 = vmatpush1.bf16.msra.mxu0 0
      %3077 = vmatprep.subr.bf16.mxu0 0
      %3078 = vmatpush1.bf16.msra.mxu0 0
      %3079 = vmatprep.subr.bf16.mxu0 0
      %3080 = vmatpush1.bf16.msra.mxu0 0
      %3081 = vmatprep.subr.bf16.mxu0 0
      %3082 = vmatpush1.bf16.msra.mxu0 0
      %3083 = vmatprep.subr.bf16.mxu0 0
      %3084 = vmatpush1.bf16.msra.mxu0 0
      %3085 = vmatprep.subr.bf16.mxu0 0
      %3086 = vmatpush1.bf16.msra.mxu0 %v3058
      %3087 = vmatprep.subr.bf16.mxu0 0
      %3088 = vmatpush1.bf16.msra.mxu0 %v3057
      %3089 = vmatprep.subr.bf16.mxu0 0
      %3090 = vmatpush2.bf16.msra.mxu0 0
      %3091 = vmatprep.subr.bf16.mxu0 0
      %3092 = vmatpush2.bf16.msra.mxu0 0
      %3093 = vmatprep.subr.bf16.mxu0 0
      %3094 = vmatpush2.bf16.msra.mxu0 0
      %3095 = vmatprep.subr.bf16.mxu0 0
      %3096 = vmatpush2.bf16.msra.mxu0 0
      %3097 = vmatprep.subr.bf16.mxu0 0
      %3098 = vmatpush2.bf16.msra.mxu0 0
      %3099 = vmatprep.subr.bf16.mxu0 0
      %3100 = vmatpush2.bf16.msra.mxu0 0
      %3101 = vmatprep.subr.bf16.mxu0 0
      %3102 = vmatpush2.bf16.msra.mxu0 0
      %3103 = vmatprep.subr.bf16.mxu0 0
      %3104 = vmatpush2.bf16.msra.mxu0 0
      %3105 = vmatprep.mubr.bf16.mxu0 0
      %3106 = vmatmul.mubr.bf16.gmra.mxu0 %v3062
      %v3107 = vpop.f32.mrf.mxu0
      %v3108 = vadd.f32 %v3048, %v3107
      %v3109 = vpop.f32.mrf.mxu0
      %v3110 = vpop.f32.mrf.mxu0
      %v3111 = vadd.f32 %v3048, %v3110
      %v3112 = vpop.f32.mrf.mxu0
      %3113 = vmatprep.mubr.bf16.mxu0 0
      %3114 = vmatmul.mubr.bf16.gmra.mxu0 %v3065
      %v3115 = vpop.f32.mrf.mxu0
      %v3116 = vadd.f32 %v3048, %v3115
      %v3117 = vpop.f32.mrf.mxu0
      %v3118 = vpop.f32.mrf.mxu0
      %v3119 = vadd.f32 %v3048, %v3118
      %v3120 = vpop.f32.mrf.mxu0
      %3121 = vmatprep.mubr.bf16.mxu0 0
      %3122 = vmatmul.mubr.bf16.gmra.mxu0 %v3068
      %v3123 = vpop.f32.mrf.mxu0
      %v3124 = vadd.f32 %v3048, %v3123
      %v3125 = vpop.f32.mrf.mxu0
      %v3126 = vpop.f32.mrf.mxu0
      %v3127 = vadd.f32 %v3048, %v3126
      %v3128 = vpop.f32.mrf.mxu0
      %3129 = vmatprep.mubr.bf16.mxu0 0
      %3130 = vmatmul.mubr.bf16.gmra.mxu0 %v3071
      %v3131 = vpop.f32.mrf.mxu0
      %v3132 = vadd.f32 %v3048, %v3131
      %v3133 = vpop.f32.mrf.mxu0
      %v3134 = vpop.f32.mrf.mxu0
      %v3135 = vadd.f32 %v3048, %v3134
      %v3136 = vpop.f32.mrf.mxu0
      %3137 = vdwg.mxu0
      %v3138 = vpack.c.bf16 %v3111, %v3108
      %v3139 = vpack.c.bf16 %v3119, %v3116
      %v3140 = vpack.c.bf16 %v3127, %v3124
      %v3141 = vpack.c.bf16 %v3135, %v3132
      %v3142 = vlaneseq
      %v3143 = vshrl.u32 %v3142, 7
      %v3144 = vsub.s32 0, %v3143
      %v3145 = vrot.slane %v2785, %v3144
      %v3150 = vunpack.c.l.b16 %v2770
      %v3151 = vunpack.c.l.b16 %v2771
      %v3152 = vunpack.c.l.b16 %v2772
      %v3153 = vunpack.c.l.b16 %v2773
      %v3154 = vpack.c.b16 %v3151, %v3150
      %v3155 = vpack.c.b16 %v3153, %v3152
      %v3159 = vsel %vm2939, %v3138, 0
      %v3162 = vsel %vm2939, %v3139, 0
      %v3165 = vsel %vm2939, %v3140, 0
      %v3168 = vsel %vm2939, %v3141, 0
      %3170 = vmatprep.subr.bf16.mxu0 0
      %3171 = vmatpush1.bf16.msra.mxu0 0
      %3172 = vmatprep.subr.bf16.mxu0 0
      %3173 = vmatpush1.bf16.msra.mxu0 0
      %3174 = vmatprep.subr.bf16.mxu0 0
      %3175 = vmatpush1.bf16.msra.mxu0 0
      %3176 = vmatprep.subr.bf16.mxu0 0
      %3177 = vmatpush1.bf16.msra.mxu0 0
      %3178 = vmatprep.subr.bf16.mxu0 0
      %3179 = vmatpush1.bf16.msra.mxu0 0
      %3180 = vmatprep.subr.bf16.mxu0 0
      %3181 = vmatpush1.bf16.msra.mxu0 0
      %3182 = vmatprep.subr.bf16.mxu0 0
      %3183 = vmatpush1.bf16.msra.mxu0 %v3155
      %3184 = vmatprep.subr.bf16.mxu0 0
      %3185 = vmatpush1.bf16.msra.mxu0 %v3154
      %3186 = vmatprep.subr.bf16.mxu0 0
      %3187 = vmatpush2.bf16.msra.mxu0 0
      %3188 = vmatprep.subr.bf16.mxu0 0
      %3189 = vmatpush2.bf16.msra.mxu0 0
      %3190 = vmatprep.subr.bf16.mxu0 0
      %3191 = vmatpush2.bf16.msra.mxu0 0
      %3192 = vmatprep.subr.bf16.mxu0 0
      %3193 = vmatpush2.bf16.msra.mxu0 0
      %3194 = vmatprep.subr.bf16.mxu0 0
      %3195 = vmatpush2.bf16.msra.mxu0 0
      %3196 = vmatprep.subr.bf16.mxu0 0
      %3197 = vmatpush2.bf16.msra.mxu0 0
      %3198 = vmatprep.subr.bf16.mxu0 0
      %3199 = vmatpush2.bf16.msra.mxu0 0
      %3200 = vmatprep.subr.bf16.mxu0 0
      %3201 = vmatpush2.bf16.msra.mxu0 0
      %3202 = vmatprep.mubr.bf16.mxu0 0
      %3203 = vmatmul.mubr.bf16.gmra.mxu0 %v3159
      %v3204 = vpop.f32.mrf.mxu0
      %v3205 = vadd.f32 %v3145, %v3204
      %v3206 = vpop.f32.mrf.mxu0
      %v3207 = vpop.f32.mrf.mxu0
      %v3208 = vadd.f32 %v3145, %v3207
      %v3209 = vpop.f32.mrf.mxu0
      %3210 = vmatprep.mubr.bf16.mxu0 0
      %3211 = vmatmul.mubr.bf16.gmra.mxu0 %v3162
      %v3212 = vpop.f32.mrf.mxu0
      %v3213 = vadd.f32 %v3145, %v3212
      %v3214 = vpop.f32.mrf.mxu0
      %v3215 = vpop.f32.mrf.mxu0
      %v3216 = vadd.f32 %v3145, %v3215
      %v3217 = vpop.f32.mrf.mxu0
      %3218 = vmatprep.mubr.bf16.mxu0 0
      %3219 = vmatmul.mubr.bf16.gmra.mxu0 %v3165
      %v3220 = vpop.f32.mrf.mxu0
      %v3221 = vadd.f32 %v3145, %v3220
      %v3222 = vpop.f32.mrf.mxu0
      %v3223 = vpop.f32.mrf.mxu0
      %v3224 = vadd.f32 %v3145, %v3223
      %v3225 = vpop.f32.mrf.mxu0
      %3226 = vmatprep.mubr.bf16.mxu0 0
      %3227 = vmatmul.mubr.bf16.gmra.mxu0 %v3168
      %v3228 = vpop.f32.mrf.mxu0
      %v3229 = vadd.f32 %v3145, %v3228
      %v3230 = vpop.f32.mrf.mxu0
      %v3231 = vpop.f32.mrf.mxu0
      %v3232 = vadd.f32 %v3145, %v3231
      %v3233 = vpop.f32.mrf.mxu0
      %3234 = vdwg.mxu0
      %vm3235 = vcmp.ge.f32.partialorder %v3205, 0.0
      %vm3236 = vcmp.ge.f32.partialorder %v3208, 0.0
      %vm3237 = vcmp.ge.f32.partialorder %v3213, 0.0
      %vm3238 = vcmp.ge.f32.partialorder %v3216, 0.0
      %vm3239 = vcmp.ge.f32.partialorder %v3221, 0.0
      %vm3240 = vcmp.ge.f32.partialorder %v3224, 0.0
      %vm3241 = vcmp.ge.f32.partialorder %v3229, 0.0
      %vm3242 = vcmp.ge.f32.partialorder %v3232, 0.0
      %v3243 = vmul.f32 %v3205, 0.01
      %v3244 = vmul.f32 %v3208, 0.01
      %v3245 = vmul.f32 %v3213, 0.01
      %v3246 = vmul.f32 %v3216, 0.01
      %v3247 = vmul.f32 %v3221, 0.01
      %v3248 = vmul.f32 %v3224, 0.01
      %v3249 = vmul.f32 %v3229, 0.01
      %v3250 = vmul.f32 %v3232, 0.01
      %v3251 = vsel %vm3235, %v3205, %v3243
      %v3252 = vsel %vm3236, %v3208, %v3244
      %v3253 = vsel %vm3237, %v3213, %v3245
      %v3254 = vsel %vm3238, %v3216, %v3246
      %v3255 = vsel %vm3239, %v3221, %v3247
      %v3256 = vsel %vm3240, %v3224, %v3248
      %v3257 = vsel %vm3241, %v3229, %v3249
      %v3258 = vsel %vm3242, %v3232, %v3250
      %v3259 = vpack.c.bf16 %v3252, %v3251
      %v3260 = vpack.c.bf16 %v3254, %v3253
      %v3261 = vpack.c.bf16 %v3256, %v3255
      %v3262 = vpack.c.bf16 %v3258, %v3257
      %v3263 = vlaneseq
      %v3264 = vshrl.u32 %v3263, 7
      %v3265 = vsub.s32 0, %v3264
      %v3266 = vrot.slane %v2786, %v3265
      %v3275 = vunpack.c.l.b16 %v2774
      %v3276 = vunpack.c.l.b16 %v2775
      %v3277 = vunpack.c.l.b16 %v2776
      %v3278 = vunpack.c.l.b16 %v2777
      %v3279 = vunpack.c.l.b16 %v2778
      %v3280 = vunpack.c.l.b16 %v2779
      %v3281 = vunpack.c.l.b16 %v2780
      %v3282 = vunpack.c.l.b16 %v2781
      %v3283 = vpack.c.b16 %v3276, %v3275
      %v3284 = vpack.c.b16 %v3278, %v3277
      %v3285 = vpack.c.b16 %v3280, %v3279
      %v3286 = vpack.c.b16 %v3282, %v3281
      %v3292 = vsel %vm662, %v3259, 0
      %v3295 = vsel %vm662, %v3260, 0
      %v3298 = vsel %vm662, %v3261, 0
      %v3301 = vsel %vm662, %v3262, 0
      %3303 = vmatprep.subr.bf16.mxu0 0
      %3304 = vmatpush1.bf16.msra.mxu0 0
      %3305 = vmatprep.subr.bf16.mxu0 0
      %3306 = vmatpush1.bf16.msra.mxu0 0
      %3307 = vmatprep.subr.bf16.mxu0 0
      %3308 = vmatpush1.bf16.msra.mxu0 0
      %3309 = vmatprep.subr.bf16.mxu0 0
      %3310 = vmatpush1.bf16.msra.mxu0 0
      %3311 = vmatprep.subr.bf16.mxu0 0
      %3312 = vmatpush1.bf16.msra.mxu0 %v3286
      %3313 = vmatprep.subr.bf16.mxu0 0
      %3314 = vmatpush1.bf16.msra.mxu0 %v3285
      %3315 = vmatprep.subr.bf16.mxu0 0
      %3316 = vmatpush1.bf16.msra.mxu0 %v3284
      %3317 = vmatprep.subr.bf16.mxu0 0
      %3318 = vmatpush1.bf16.msra.mxu0 %v3283
      %3319 = vmatprep.subr.bf16.mxu0 0
      %3320 = vmatpush2.bf16.msra.mxu0 0
      %3321 = vmatprep.subr.bf16.mxu0 0
      %3322 = vmatpush2.bf16.msra.mxu0 0
      %3323 = vmatprep.subr.bf16.mxu0 0
      %3324 = vmatpush2.bf16.msra.mxu0 0
      %3325 = vmatprep.subr.bf16.mxu0 0
      %3326 = vmatpush2.bf16.msra.mxu0 0
      %3327 = vmatprep.subr.bf16.mxu0 0
      %3328 = vmatpush2.bf16.msra.mxu0 0
      %3329 = vmatprep.subr.bf16.mxu0 0
      %3330 = vmatpush2.bf16.msra.mxu0 0
      %3331 = vmatprep.subr.bf16.mxu0 0
      %3332 = vmatpush2.bf16.msra.mxu0 0
      %3333 = vmatprep.subr.bf16.mxu0 0
      %3334 = vmatpush2.bf16.msra.mxu0 0
      %3335 = vmatprep.mubr.bf16.mxu0 0
      %3336 = vmatmul.mubr.bf16.gmra.mxu0 %v3292
      %v3337 = vpop.f32.mrf.mxu0
      %v3338 = vadd.f32 %v3266, %v3337
      %v3339 = vpop.f32.mrf.mxu0
      %v3340 = vpop.f32.mrf.mxu0
      %v3341 = vadd.f32 %v3266, %v3340
      %v3342 = vpop.f32.mrf.mxu0
      %3343 = vmatprep.mubr.bf16.mxu0 0
      %3344 = vmatmul.mubr.bf16.gmra.mxu0 %v3295
      %v3345 = vpop.f32.mrf.mxu0
      %v3346 = vadd.f32 %v3266, %v3345
      %v3347 = vpop.f32.mrf.mxu0
      %v3348 = vpop.f32.mrf.mxu0
      %v3349 = vadd.f32 %v3266, %v3348
      %v3350 = vpop.f32.mrf.mxu0
      %3351 = vmatprep.mubr.bf16.mxu0 0
      %3352 = vmatmul.mubr.bf16.gmra.mxu0 %v3298
      %v3353 = vpop.f32.mrf.mxu0
      %v3354 = vadd.f32 %v3266, %v3353
      %v3355 = vpop.f32.mrf.mxu0
      %v3356 = vpop.f32.mrf.mxu0
      %v3357 = vadd.f32 %v3266, %v3356
      %v3358 = vpop.f32.mrf.mxu0
      %3359 = vmatprep.mubr.bf16.mxu0 0
      %3360 = vmatmul.mubr.bf16.gmra.mxu0 %v3301
      %v3361 = vpop.f32.mrf.mxu0
      %v3362 = vadd.f32 %v3266, %v3361
      %v3363 = vpop.f32.mrf.mxu0
      %v3364 = vpop.f32.mrf.mxu0
      %v3365 = vadd.f32 %v3266, %v3364
      %v3366 = vpop.f32.mrf.mxu0
      %3367 = vdwg.mxu0
      %v3368 = vsub.f32 0.0, %v3338
      %v3369 = vsub.f32 0.0, %v3341
      %v3370 = vsub.f32 0.0, %v3346
      %v3371 = vsub.f32 0.0, %v3349
      %v3372 = vsub.f32 0.0, %v3354
      %v3373 = vsub.f32 0.0, %v3357
      %v3374 = vsub.f32 0.0, %v3362
      %v3375 = vsub.f32 0.0, %v3365
      %v3376 = vmul.f32 %v3368, 1.442695
      %v3377 = vpow.pop %v3376
      %v3378 = vmul.f32 %v3369, 1.442695
      %v3379 = vpow.pop %v3378
      %v3380 = vmul.f32 %v3370, 1.442695
      %v3381 = vpow.pop %v3380
      %v3382 = vmul.f32 %v3371, 1.442695
      %v3383 = vpow.pop %v3382
      %v3384 = vmul.f32 %v3372, 1.442695
      %v3385 = vpow.pop %v3384
      %v3386 = vmul.f32 %v3373, 1.442695
      %v3387 = vpow.pop %v3386
      %v3388 = vmul.f32 %v3374, 1.442695
      %v3389 = vpow.pop %v3388
      %v3390 = vmul.f32 %v3375, 1.442695
      %v3391 = vpow.pop %v3390
      %v3392 = vadd.f32 %v3377, 1.0
      %v3393 = vadd.f32 %v3379, 1.0
      %v3394 = vadd.f32 %v3381, 1.0
      %v3395 = vadd.f32 %v3383, 1.0
      %v3396 = vadd.f32 %v3385, 1.0
      %v3397 = vadd.f32 %v3387, 1.0
      %v3398 = vadd.f32 %v3389, 1.0
      %v3399 = vadd.f32 %v3391, 1.0
      %v3400 = vrcp.pop %v3392
      %v3401 = vrcp.pop %v3393
      %v3402 = vrcp.pop %v3394
      %v3403 = vrcp.pop %v3395
      %v3404 = vrcp.pop %v3396
      %v3405 = vrcp.pop %v3397
      %v3406 = vrcp.pop %v3398
      %v3407 = vrcp.pop %v3399
      %v3408 = vand.u32 2147483647, %v3338
      %v3409 = vand.u32 2147483647, %v3341
      %v3410 = vand.u32 2147483647, %v3346
      %v3411 = vand.u32 2147483647, %v3349
      %v3412 = vand.u32 2147483647, %v3354
      %v3413 = vand.u32 2147483647, %v3357
      %v3414 = vand.u32 2147483647, %v3362
      %v3415 = vand.u32 2147483647, %v3365
      %v3416 = vsub.f32 0.0, %v3408
      %v3417 = vsub.f32 0.0, %v3409
      %v3418 = vsub.f32 0.0, %v3410
      %v3419 = vsub.f32 0.0, %v3411
      %v3420 = vsub.f32 0.0, %v3412
      %v3421 = vsub.f32 0.0, %v3413
      %v3422 = vsub.f32 0.0, %v3414
      %v3423 = vsub.f32 0.0, %v3415
      %v3424 = vmul.f32 %v3416, 1.442695
      %v3425 = vpow.pop %v3424
      %v3426 = vmul.f32 %v3417, 1.442695
      %v3427 = vpow.pop %v3426
      %v3428 = vmul.f32 %v3418, 1.442695
      %v3429 = vpow.pop %v3428
      %v3430 = vmul.f32 %v3419, 1.442695
      %v3431 = vpow.pop %v3430
      %v3432 = vmul.f32 %v3420, 1.442695
      %v3433 = vpow.pop %v3432
      %v3434 = vmul.f32 %v3421, 1.442695
      %v3435 = vpow.pop %v3434
      %v3436 = vmul.f32 %v3422, 1.442695
      %v3437 = vpow.pop %v3436
      %v3438 = vmul.f32 %v3423, 1.442695
      %v3439 = vpow.pop %v3438
      %v3440 = vadd.f32 %v3425, 1.0
      %v3441 = vadd.f32 %v3427, 1.0
      %v3442 = vadd.f32 %v3429, 1.0
      %v3443 = vadd.f32 %v3431, 1.0
      %v3444 = vadd.f32 %v3433, 1.0
      %v3445 = vadd.f32 %v3435, 1.0
      %v3446 = vadd.f32 %v3437, 1.0
      %v3447 = vadd.f32 %v3439, 1.0
      %v3448 = vlog2.pop %v3440
      %v3449 = vmul.f32 %v3448, 0.6931472
      %v3450 = vlog2.pop %v3441
      %v3451 = vmul.f32 %v3450, 0.6931472
      %v3452 = vlog2.pop %v3442
      %v3453 = vmul.f32 %v3452, 0.6931472
      %v3454 = vlog2.pop %v3443
      %v3455 = vmul.f32 %v3454, 0.6931472
      %v3456 = vlog2.pop %v3444
      %v3457 = vmul.f32 %v3456, 0.6931472
      %v3458 = vlog2.pop %v3445
      %v3459 = vmul.f32 %v3458, 0.6931472
      %v3460 = vlog2.pop %v3446
      %v3461 = vmul.f32 %v3460, 0.6931472
      %v3462 = vlog2.pop %v3447
      %v3463 = vmul.f32 %v3462, 0.6931472
      %v3464 = vmax.f32 %v3338, 0.0
      %v3465 = vmax.f32 %v3341, 0.0
      %v3466 = vmax.f32 %v3346, 0.0
      %v3467 = vmax.f32 %v3349, 0.0
      %v3468 = vmax.f32 %v3354, 0.0
      %v3469 = vmax.f32 %v3357, 0.0
      %v3470 = vmax.f32 %v3362, 0.0
      %v3471 = vmax.f32 %v3365, 0.0
      %v3472 = vadd.f32 %v3449, %v3464
      %v3473 = vadd.f32 %v3451, %v3465
      %v3474 = vadd.f32 %v3453, %v3466
      %v3475 = vadd.f32 %v3455, %v3467
      %v3476 = vadd.f32 %v3457, %v3468
      %v3477 = vadd.f32 %v3459, %v3469
      %v3478 = vadd.f32 %v3461, %v3470
      %v3479 = vadd.f32 %v3463, %v3471
      %v3480 = vsub.f32 0.0, %v3472
      %v3481 = vsub.f32 0.0, %v3473
      %v3482 = vsub.f32 0.0, %v3474
      %v3483 = vsub.f32 0.0, %v3475
      %v3484 = vsub.f32 0.0, %v3476
      %v3485 = vsub.f32 0.0, %v3477
      %v3486 = vsub.f32 0.0, %v3478
      %v3487 = vsub.f32 0.0, %v3479
      %v3488 = vmul.f32 %v3480, 0.2
      %v3489 = vmul.f32 %v3481, 0.2
      %v3490 = vmul.f32 %v3482, 0.2
      %v3491 = vmul.f32 %v3483, 0.2
      %v3492 = vmul.f32 %v3484, 0.2
      %v3493 = vmul.f32 %v3485, 0.2
      %v3494 = vmul.f32 %v3486, 0.2
      %v3495 = vmul.f32 %v3487, 0.2
      %v3496 = vmul.f32 %v3488, 1.442695
      %v3497 = vpow.pop %v3496
      %v3498 = vmul.f32 %v3489, 1.442695
      %v3499 = vpow.pop %v3498
      %v3500 = vmul.f32 %v3490, 1.442695
      %v3501 = vpow.pop %v3500
      %v3502 = vmul.f32 %v3491, 1.442695
      %v3503 = vpow.pop %v3502
      %v3504 = vmul.f32 %v3492, 1.442695
      %v3505 = vpow.pop %v3504
      %v3506 = vmul.f32 %v3493, 1.442695
      %v3507 = vpow.pop %v3506
      %v3508 = vmul.f32 %v3494, 1.442695
      %v3509 = vpow.pop %v3508
      %v3510 = vmul.f32 %v3495, 1.442695
      %v3511 = vpow.pop %v3510
      %v3512 = vsub.f32 1.0, %v3497
      %v3513 = vsub.f32 1.0, %v3499
      %v3514 = vsub.f32 1.0, %v3501
      %v3515 = vsub.f32 1.0, %v3503
      %v3516 = vsub.f32 1.0, %v3505
      %v3517 = vsub.f32 1.0, %v3507
      %v3518 = vsub.f32 1.0, %v3509
      %v3519 = vsub.f32 1.0, %v3511
      %v3520 = vld [vmem:[#allocation3] sm:$0xff]
      %v3521 = vld [vmem:[#allocation3 + $0x8] sm:$0xff]
      %v3522 = vld [vmem:[#allocation3 + $0x10] sm:$0xff]
      %v3523 = vld [vmem:[#allocation3 + $0x18] sm:$0xff]
      %v3524 = vld [vmem:[#allocation3 + $0x20] sm:$0xff]
      %v3525 = vld [vmem:[#allocation3 + $0x28] sm:$0xff]
      %v3526 = vld [vmem:[#allocation3 + $0x30] sm:$0xff]
      %v3527 = vld [vmem:[#allocation3 + $0x38] sm:$0xff]
      %3536 = vrot.lane.b32.xlu0 %v3512, 125
      %v3537 = vpop.permute.xlu0 %3536
      %3538 = vrot.lane.b32.xlu0 %v3513, 125
      %v3539 = vpop.permute.xlu0 %3538
      %3540 = vrot.lane.b32.xlu0 %v3514, 125
      %v3541 = vpop.permute.xlu0 %3540
      %3542 = vrot.lane.b32.xlu0 %v3515, 125
      %v3543 = vpop.permute.xlu0 %3542
      %3544 = vrot.lane.b32.xlu0 %v3516, 125
      %v3545 = vpop.permute.xlu0 %3544
      %3546 = vrot.lane.b32.xlu0 %v3517, 125
      %v3547 = vpop.permute.xlu0 %3546
      %3548 = vrot.lane.b32.xlu0 %v3518, 125
      %v3549 = vpop.permute.xlu0 %3548
      %3550 = vrot.lane.b32.xlu0 %v3519, 125
      %v3551 = vpop.permute.xlu0 %3550
      %v3560 = vmul.f32 %v3520, %v3537
      %v3561 = vmul.f32 %v3521, %v3539
      %v3562 = vmul.f32 %v3522, %v3541
      %v3563 = vmul.f32 %v3523, %v3543
      %v3564 = vmul.f32 %v3524, %v3545
      %v3565 = vmul.f32 %v3525, %v3547
      %v3566 = vmul.f32 %v3526, %v3549
      %v3567 = vmul.f32 %v3527, %v3551
      %v3568 = vld [vmem:[#allocation2] sm:$0xff]
      %v3569 = vld [vmem:[#allocation2 + $0x8] sm:$0xff]
      %v3570 = vld [vmem:[#allocation2 + $0x10] sm:$0xff]
      %v3571 = vld [vmem:[#allocation2 + $0x18] sm:$0xff]
      %v3572 = vld [vmem:[#allocation2 + $0x20] sm:$0xff]
      %v3573 = vld [vmem:[#allocation2 + $0x28] sm:$0xff]
      %v3574 = vld [vmem:[#allocation2 + $0x30] sm:$0xff]
      %v3575 = vld [vmem:[#allocation2 + $0x38] sm:$0xff]
      %3577 = vset.pattern.permute.xlu0 0
      %3578 = vperm.xlu0 %3577, %v3560
      %v3579 = vpop.permute.xlu0 %3578
      %3582 = vset.pattern.permute.xlu0 0
      %3583 = vperm.xlu0 %3582, %v3561
      %v3584 = vpop.permute.xlu0 %3583
      %3587 = vset.pattern.permute.xlu0 0
      %3588 = vperm.xlu0 %3587, %v3562
      %v3589 = vpop.permute.xlu0 %3588
      %3592 = vset.pattern.permute.xlu0 0
      %3593 = vperm.xlu0 %3592, %v3563
      %v3594 = vpop.permute.xlu0 %3593
      %3597 = vset.pattern.permute.xlu0 0
      %3598 = vperm.xlu0 %3597, %v3564
      %v3599 = vpop.permute.xlu0 %3598
      %3602 = vset.pattern.permute.xlu0 0
      %3603 = vperm.xlu0 %3602, %v3565
      %v3604 = vpop.permute.xlu0 %3603
      %3607 = vset.pattern.permute.xlu0 0
      %3608 = vperm.xlu0 %3607, %v3566
      %v3609 = vpop.permute.xlu0 %3608
      %3612 = vset.pattern.permute.xlu0 0
      %3613 = vperm.xlu0 %3612, %v3567
      %v3614 = vpop.permute.xlu0 %3613
      %v3616 = vmul.f32 %v3579, %v3400
      %v3617 = vmul.f32 %v3584, %v3401
      %v3618 = vmul.f32 %v3589, %v3402
      %v3619 = vmul.f32 %v3594, %v3403
      %v3620 = vmul.f32 %v3599, %v3404
      %v3621 = vmul.f32 %v3604, %v3405
      %v3622 = vmul.f32 %v3609, %v3406
      %v3623 = vmul.f32 %v3614, %v3407
      %3624 = vrot.lane.b32.xlu0 %v3560, 3
      %v3625 = vpop.permute.xlu0 %3624
      %3626 = vrot.lane.b32.xlu0 %v3561, 3
      %v3627 = vpop.permute.xlu0 %3626
      %3628 = vrot.lane.b32.xlu0 %v3562, 3
      %v3629 = vpop.permute.xlu0 %3628
      %3630 = vrot.lane.b32.xlu0 %v3563, 3
      %v3631 = vpop.permute.xlu0 %3630
      %3632 = vrot.lane.b32.xlu0 %v3564, 3
      %v3633 = vpop.permute.xlu0 %3632
      %3634 = vrot.lane.b32.xlu0 %v3565, 3
      %v3635 = vpop.permute.xlu0 %3634
      %3636 = vrot.lane.b32.xlu0 %v3566, 3
      %v3637 = vpop.permute.xlu0 %3636
      %3638 = vrot.lane.b32.xlu0 %v3567, 3
      %v3639 = vpop.permute.xlu0 %3638
      %v3648 = vsel %vm447, %v3616, %v3625
      %v3649 = vsel %vm447, %v3617, %v3627
      %v3650 = vsel %vm447, %v3618, %v3629
      %v3651 = vsel %vm447, %v3619, %v3631
      %v3652 = vsel %vm447, %v3620, %v3633
      %v3653 = vsel %vm447, %v3621, %v3635
      %v3654 = vsel %vm447, %v3622, %v3637
      %v3655 = vsel %vm447, %v3623, %v3639
      %v3656 = vadd.f32 %v3568, %v3648
      %v3657 = vadd.f32 %v3569, %v3649
      %v3658 = vadd.f32 %v3570, %v3650
      %v3659 = vadd.f32 %v3571, %v3651
      %v3660 = vadd.f32 %v3572, %v3652
      %v3661 = vadd.f32 %v3573, %v3653
      %v3662 = vadd.f32 %v3574, %v3654
      %v3663 = vadd.f32 %v3575, %v3655
      %vm3664 = vcmask 31744
      %3665 = vst.msk [vmem:[#allocation2] sm:$0xff] %vm3664, %v3656
      %3666 = vst.msk [vmem:[#allocation2 + $0x8] sm:$0xff] %vm3664, %v3657
      %3667 = vst.msk [vmem:[#allocation2 + $0x10] sm:$0xff] %vm3664, %v3658
      %3668 = vst.msk [vmem:[#allocation2 + $0x18] sm:$0xff] %vm3664, %v3659
      %3669 = vst.msk [vmem:[#allocation2 + $0x20] sm:$0xff] %vm3664, %v3660
      %3670 = vst.msk [vmem:[#allocation2 + $0x28] sm:$0xff] %vm3664, %v3661
      %3671 = vst.msk [vmem:[#allocation2 + $0x30] sm:$0xff] %vm3664, %v3662
      %3672 = vst.msk [vmem:[#allocation2 + $0x38] sm:$0xff] %vm3664, %v3663
      %3681 = vrot.lane.b32.xlu0 %v3497, 125
      %v3682 = vpop.permute.xlu0 %3681
      %3683 = vrot.lane.b32.xlu0 %v3499, 125
      %v3684 = vpop.permute.xlu0 %3683
      %3685 = vrot.lane.b32.xlu0 %v3501, 125
      %v3686 = vpop.permute.xlu0 %3685
      %3687 = vrot.lane.b32.xlu0 %v3503, 125
      %v3688 = vpop.permute.xlu0 %3687
      %3689 = vrot.lane.b32.xlu0 %v3505, 125
      %v3690 = vpop.permute.xlu0 %3689
      %3691 = vrot.lane.b32.xlu0 %v3507, 125
      %v3692 = vpop.permute.xlu0 %3691
      %3693 = vrot.lane.b32.xlu0 %v3509, 125
      %v3694 = vpop.permute.xlu0 %3693
      %3695 = vrot.lane.b32.xlu0 %v3511, 125
      %v3696 = vpop.permute.xlu0 %3695
      %v3705 = vmul.f32 %v3520, %v3682
      %v3706 = vmul.f32 %v3521, %v3684
      %v3707 = vmul.f32 %v3522, %v3686
      %v3708 = vmul.f32 %v3523, %v3688
      %v3709 = vmul.f32 %v3524, %v3690
      %v3710 = vmul.f32 %v3525, %v3692
      %v3711 = vmul.f32 %v3526, %v3694
      %v3712 = vmul.f32 %v3527, %v3696
      %vm3713 = vcmask 7168
      %3714 = vst.msk [vmem:[#allocation3] sm:$0xff] %vm3713, %v3705
      %3715 = vst.msk [vmem:[#allocation3 + $0x8] sm:$0xff] %vm3713, %v3706
      %3716 = vst.msk [vmem:[#allocation3 + $0x10] sm:$0xff] %vm3713, %v3707
      %3717 = vst.msk [vmem:[#allocation3 + $0x18] sm:$0xff] %vm3713, %v3708
      %3718 = vst.msk [vmem:[#allocation3 + $0x20] sm:$0xff] %vm3713, %v3709
      %3719 = vst.msk [vmem:[#allocation3 + $0x28] sm:$0xff] %vm3713, %v3710
      %3720 = vst.msk [vmem:[#allocation3 + $0x30] sm:$0xff] %vm3713, %v3711
      %3721 = vst.msk [vmem:[#allocation3 + $0x38] sm:$0xff] %vm3713, %v3712
      %p3722 = scmp.eq.s32.totalorder %s24, 15
      // Predicated region
      $region49: #{tpu_custom_call.1} parent=43 // pred_check
        %p3723 = pneg %p3722
      $region50: #{tpu_custom_call.1} parent=43 // pred_check_branch
        %3725 = sbr.rel (%p3723) target = $region52
      $region51: #{tpu_custom_call.1} parent=43 // pred_region
        %v3726 = vld [vmem:[#allocation2] sm:$0xff]
        %v3727 = vld [vmem:[#allocation2 + $0x8] sm:$0xff]
        %v3728 = vld [vmem:[#allocation2 + $0x10] sm:$0xff]
        %v3729 = vld [vmem:[#allocation2 + $0x18] sm:$0xff]
        %v3730 = vld [vmem:[#allocation2 + $0x20] sm:$0xff]
        %v3731 = vld [vmem:[#allocation2 + $0x28] sm:$0xff]
        %v3732 = vld [vmem:[#allocation2 + $0x30] sm:$0xff]
        %v3733 = vld [vmem:[#allocation2 + $0x38] sm:$0xff]
        %v3734 = vsub.f32 1.0, %v3726
        %v3735 = vsub.f32 1.0, %v3727
        %v3736 = vsub.f32 1.0, %v3728
        %v3737 = vsub.f32 1.0, %v3729
        %v3738 = vsub.f32 1.0, %v3730
        %v3739 = vsub.f32 1.0, %v3731
        %v3740 = vsub.f32 1.0, %v3732
        %v3741 = vsub.f32 1.0, %v3733
        %3743 = vset.pattern.permute.xlu0 3
        %3744 = vperm.xlu0 %3743, %v3734
        %v3745 = vpop.permute.xlu0 %3744
        %3748 = vset.pattern.permute.xlu0 3
        %3749 = vperm.xlu0 %3748, %v3735
        %v3750 = vpop.permute.xlu0 %3749
        %3753 = vset.pattern.permute.xlu0 3
        %3754 = vperm.xlu0 %3753, %v3736
        %v3755 = vpop.permute.xlu0 %3754
        %3758 = vset.pattern.permute.xlu0 3
        %3759 = vperm.xlu0 %3758, %v3737
        %v3760 = vpop.permute.xlu0 %3759
        %3763 = vset.pattern.permute.xlu0 3
        %3764 = vperm.xlu0 %3763, %v3738
        %v3765 = vpop.permute.xlu0 %3764
        %3768 = vset.pattern.permute.xlu0 3
        %3769 = vperm.xlu0 %3768, %v3739
        %v3770 = vpop.permute.xlu0 %3769
        %3773 = vset.pattern.permute.xlu0 3
        %3774 = vperm.xlu0 %3773, %v3740
        %v3775 = vpop.permute.xlu0 %3774
        %3778 = vset.pattern.permute.xlu0 3
        %3779 = vperm.xlu0 %3778, %v3741
        %v3780 = vpop.permute.xlu0 %3779
        %v3782 = vadd.f32 %v3726, %v3745
        %v3783 = vadd.f32 %v3727, %v3750
        %v3784 = vadd.f32 %v3728, %v3755
        %v3785 = vadd.f32 %v3729, %v3760
        %v3786 = vadd.f32 %v3730, %v3765
        %v3787 = vadd.f32 %v3731, %v3770
        %v3788 = vadd.f32 %v3732, %v3775
        %v3789 = vadd.f32 %v3733, %v3780
        %v3790 = vsel %vm447, %v3782, %v3726
        %v3791 = vsel %vm447, %v3783, %v3727
        %v3792 = vsel %vm447, %v3784, %v3728
        %v3793 = vsel %vm447, %v3785, %v3729
        %v3794 = vsel %vm447, %v3786, %v3730
        %v3795 = vsel %vm447, %v3787, %v3731
        %v3796 = vsel %vm447, %v3788, %v3732
        %v3797 = vsel %vm447, %v3789, %v3733
        %3798 = vst.msk [vmem:[%s369] sm:$0xff] %vm3664, %v3790
        %3799 = vst.msk [vmem:[%s369 + $0x8] sm:$0xff] %vm3664, %v3791
        %3800 = vst.msk [vmem:[%s369 + $0x10] sm:$0xff] %vm3664, %v3792
        %3801 = vst.msk [vmem:[%s369 + $0x18] sm:$0xff] %vm3664, %v3793
        %3802 = vst.msk [vmem:[%s369 + $0x20] sm:$0xff] %vm3664, %v3794
        %3803 = vst.msk [vmem:[%s369 + $0x28] sm:$0xff] %vm3664, %v3795
        %3804 = vst.msk [vmem:[%s369 + $0x30] sm:$0xff] %vm3664, %v3796
        %3805 = vst.msk [vmem:[%s369 + $0x38] sm:$0xff] %vm3664, %v3797
      $region52: #{tpu_custom_call.1} parent=43 // pred_fallthru
        _
      %s3806 = smul.u32 8, %s23
      %p3807 = scmp.lt.s32.totalorder %s22, 1
      %s3808 = scalar_select %p3807, %s22, 1
      %p3809 = scmp.lt.s32.totalorder %s3806, 7
      %s3810 = scalar_select %p3809, %s3806, 7
      %s3811 = smul.addr %s3808, 8
      %s3812 = sadd.s32 %s3810, %s3811
      %s3813 = smul.addr %s3812, 8
      %s3814 = scalar_lea.vmem %s6, %s3813
      // Predicated region
      $region53: #{tpu_custom_call.1} parent=43 // pred_check
        %p3815 = pneg %p206
      $region54: #{tpu_custom_call.1} parent=43 // pred_check_branch
        %3817 = sbr.rel (%p3815) target = $region56
      $region55: #{tpu_custom_call.1} parent=43 // pred_region
        %s3818 = smul.u32 8, %s23
      $region56: #{tpu_custom_call.1} parent=43 // pred_fallthru
        _
    $region44: #{tpu_custom_call.1} parent=5 // pred_fallthru
      _
    %p3819 = scmp.le.s32.totalorder 2, %s12
    // Predicated region
    $region57: #{tpu_custom_call.1} parent=5 // pred_check
      %p3820 = pneg %p3819
    $region58: #{tpu_custom_call.1} parent=5 // pred_check_branch
      %3822 = sbr.rel (%p3820) target = $region60
    $region59: #{tpu_custom_call.1} parent=5 // pred_region
      %s3823 = ssub.s32 %s12, 2
      // Predicated region
      $region61: #{tpu_custom_call.1} parent=59 // pred_check
        %p3824 = pneg %p212
      $region62: #{tpu_custom_call.1} parent=59 // pred_check_branch
        %3826 = sbr.rel (%p3824) target = $region64
      $region63: #{tpu_custom_call.1} parent=59 // pred_region
        %s3827 = smul.u32 8, %s26
        %p3828 = scmp.lt.s32.totalorder %s25, 1
        %s3829 = scalar_select %p3828, %s25, 1
        %p3830 = scmp.lt.s32.totalorder %s3827, 7
        %s3831 = scalar_select %p3830, %s3827, 7
        %s3832 = smul.addr %s3829, 8
        %s3833 = sadd.s32 %s3831, %s3832
        %s3834 = smul.addr %s3833, 8
        %s3835 = scalar_lea.vmem %s6, %s3834
      $region64: #{tpu_custom_call.1} parent=59 // pred_fallthru
        _
    $region60: #{tpu_custom_call.1} parent=5 // pred_fallthru
      _
  $region6: #{tpu_custom_call.1} parent=0 // loop_footer
    %s16 = sadd.s32 1, %s12
  $region7: #{tpu_custom_call.1} parent=0 // loop_footer_branch
    %11 = sbr.rel target = $region3
  $region8: #{tpu_custom_call.1} parent=0 // loop_exit
    _

</llo_original>
